<compile_context>
chip_gen: v5e
topology: v5e:2x2
jax: 0.10.0
libtpu: 0.0.40
codegen_flags: <defaults>
</compile_context>

<pallas_src>
import functools

import jax
import jax.numpy as jnp
from jax.experimental import pallas as pl
from jax.experimental.pallas import tpu as pltpu

EPS = 1e-5  # PyTorch nn.LayerNorm default


def _layernorm(z, gamma, beta):
    mu = jnp.mean(z, axis=-1, keepdims=True)
    var = jnp.mean((z - mu) ** 2, axis=-1, keepdims=True)
    return (z - mu) * jax.lax.rsqrt(var + EPS) * gamma + beta


def _pick_vmem_limit():
    """Per-generation VMEM budget: ~3/4 of physical, capped at 100 MiB."""
    try:
        info = pltpu.get_tpu_info()
        cap = getattr(info, "vmem_capacity_bytes", None)
        if cap:
            return int(min(cap * 3 // 4, 100 * 1024 * 1024))
    except Exception:
        pass
    return 64 * 1024 * 1024


# ---------------------------------------------------------------------------
# Fused kernel: conv3/conv4+norm1 -> cross attention+norm2 -> conv1/conv2+norm3
# ---------------------------------------------------------------------------
def decoder_layer_kernel(x_ref, cross_ref,
                         w3_ref, b3_ref, w4_ref, b4_ref, g1_ref, be1_ref,
                         wq_ref, bq_ref, wkv_ref, bkv_ref, wo_ref, bo_ref,
                         g2_ref, be2_ref,
                         w1_ref, b1_ref, w2_ref, b2_ref, g3_ref, be3_ref,
                         o_ref, ctx_ref, *, n_heads):
    f32, bf16 = jnp.float32, jnp.bfloat16

    x = x_ref[0]                                       # (L, D) f32
    xc = cross_ref[0]                                  # (S, D) f32
    L, D = x.shape
    dh = D // n_heads

    # ---- stage 1: conv3 -> relu -> conv4 -> +x -> LayerNorm(norm1) ---------
    h = jnp.dot(w3_ref[...], x.astype(bf16), preferred_element_type=f32) + b3_ref[...]
    h = jnp.maximum(h, 0.0)                            # (2L, D)
    h2 = jnp.dot(w4_ref[...], h.astype(bf16), preferred_element_type=f32) + b4_ref[...]
    x1 = _layernorm(h2 + x, g1_ref[...], be1_ref[...])             # (L, D) f32

    # ---- stage 2: multi-head cross attention -> +x1 -> LayerNorm(norm2) ----
    # 1/sqrt(dh) is pre-folded into wq/bq in the wrapper.
    xcb = xc.astype(bf16)
    q = jnp.dot(x1.astype(bf16), wq_ref[...], preferred_element_type=f32) + bq_ref[...]
    kv = jnp.dot(xcb, wkv_ref[...], preferred_element_type=f32) + bkv_ref[...]  # (S, 2D)
    k = kv[:, :D].astype(bf16)
    v = kv[:, D:].astype(bf16)

    # Per-head softmax(QK^T)V.  Each iteration is independent and ends in a
    # store to the VMEM context scratch, so no f32 accumulation chain is
    # carried across the unrolled head loop; the output projection is done
    # once with the full (D,D) weight below.
    for hd in range(n_heads):
        sl = slice(hd * dh, (hd + 1) * dh)
        s = jnp.dot(q[:, sl].astype(bf16), k[:, sl].T, preferred_element_type=f32)
        s = s - jnp.max(s, axis=-1, keepdims=True)
        pexp = jnp.exp(s)
        pexp = pexp * pl.reciprocal(jnp.sum(pexp, axis=-1, keepdims=True), approx=True)
        ctx_ref[:, sl] = jnp.dot(pexp.astype(bf16), v[:, sl],
                                 preferred_element_type=f32).astype(bf16)

    attn = jnp.dot(ctx_ref[...], wo_ref[...], preferred_element_type=f32) + bo_ref[...]
    x2 = _layernorm(x1 + attn, g2_ref[...], be2_ref[...])          # (L, D) f32

    # ---- stage 3: conv1 -> relu -> conv2 -> +x2 -> LayerNorm(norm3) --------
    y = jnp.dot(x2.astype(bf16), w1_ref[...], preferred_element_type=f32) + b1_ref[...]
    y = jnp.maximum(y, 0.0)                            # (L, d_ff)
    y = jnp.dot(y.astype(bf16), w2_ref[...], preferred_element_type=f32) + b2_ref[...]
    o_ref[0] = _layernorm(y + x2, g3_ref[...], be3_ref[...]).astype(o_ref.dtype)


# ---------------------------------------------------------------------------
# Wrapper
# ---------------------------------------------------------------------------
def decoder_layer_self_ffn(x, cross, p, n_heads, out_dtype=jnp.float32):
    B, L, D = x.shape
    S = cross.shape[1]
    L2 = 2 * L
    d_ff = p["w1"].shape[1]
    assert D % n_heads == 0
    dh = D // n_heads
    bf16, f32 = jnp.bfloat16, jnp.float32
    scale = 1.0 / (dh ** 0.5)

    # MXU operands in bf16; biases / LN params stay f32.
    w3 = p["w3"].astype(bf16)
    w4 = p["w4"].astype(bf16)
    b3 = p["b3"].astype(f32).reshape(L2, 1)            # broadcast in-kernel
    b4 = p["b4"].astype(f32).reshape(L, 1)
    wq = (p["wq"] * scale).astype(bf16)                 # attention scale folded in
    bq = (p["bq"] * scale).astype(f32)
    wkv = jnp.concatenate([p["wk"], p["wv"]], axis=1).astype(bf16)   # (D, 2D)
    bkv = jnp.concatenate([p["bk"], p["bv"]], axis=1).astype(f32)    # (1, 2D)
    wo = p["wo"].astype(bf16)
    w1, w2 = p["w1"].astype(bf16), p["w2"].astype(bf16)

    flops = B * (
        2 * L2 * L * D + 2 * L * L2 * D                 # conv3 / conv4
        + 2 * L * D * D + 2 * S * D * (2 * D)           # q / fused kv projections
        + 2 * L * S * D + 2 * L * S * D                 # scores + PV (all heads)
        + 2 * L * D * D                                 # output projection
        + 2 * L * D * d_ff + 2 * L * d_ff * D)          # conv1 / conv2
    transcendentals = B * (n_heads * L * S + n_heads * L + 3 * L)
    bytes_accessed = int(
        4 * (x.size + cross.size) + jnp.dtype(out_dtype).itemsize * B * L * D
        + 2 * (w3.size + w4.size + wq.size + wkv.size + wo.size + w1.size + w2.size)
        + 4 * (b3.size + b4.size + bq.size + bkv.size + p["bo"].size
               + p["b1"].size + p["b2"].size + 6 * D))

    def build_and_run(single_buffer_weights):
        def wspec(shape):                               # resident weight block
            nd = len(shape)
            idx = lambda b, _nd=nd: (0,) * _nd
            if single_buffer_weights:
                return pl.BlockSpec(shape, idx,
                                    pipeline_mode=pl.Buffered(buffer_count=1))
            return pl.BlockSpec(shape, idx)

        def per_batch(shape):                           # per-batch activation block
            nd = len(shape)
            return pl.BlockSpec((1,) + shape, lambda b, _nd=nd: (b,) + (0,) * _nd)

        return pl.pallas_call(
            functools.partial(decoder_layer_kernel, n_heads=n_heads),
            out_shape=jax.ShapeDtypeStruct((B, L, D), out_dtype),
            grid=(B,),
            in_specs=[per_batch((L, D)), per_batch((S, D)),
                      wspec((L2, L)), wspec((L2, 1)), wspec((L, L2)), wspec((L, 1)),
                      wspec((1, D)), wspec((1, D)),
                      wspec((D, D)), wspec((1, D)),
                      wspec((D, 2 * D)), wspec((1, 2 * D)),
                      wspec((D, D)), wspec((1, D)),
                      wspec((1, D)), wspec((1, D)),
                      wspec((D, d_ff)), wspec((1, d_ff)),
                      wspec((d_ff, D)), wspec((1, D)),
                      wspec((1, D)), wspec((1, D))],
            out_specs=per_batch((L, D)),
            scratch_shapes=[pltpu.VMEM((L, D), jnp.bfloat16)],   # per-head context
            compiler_params=pltpu.CompilerParams(
                dimension_semantics=("parallel",),
                vmem_limit_bytes=_pick_vmem_limit()),
            cost_estimate=pl.CostEstimate(
                flops=flops, transcendentals=transcendentals,
                bytes_accessed=bytes_accessed),
        )(x, cross,
          w3, b3, w4, b4, p["g1"], p["be1"],
          wq, bq, wkv, bkv, wo, p["bo"], p["g2"], p["be2"],
          w1, p["b1"], w2, p["b2"], p["g3"], p["be3"])

    try:
        return build_and_run(True)
    except Exception:
        # TODO(synk): this jax build rejected pl.Buffered(1) single-buffering;
        # fall back to default double-buffered resident weights.
        return build_and_run(False)


# ---------------------------------------------------------------------------
# Pure-JAX f32 reference (for correctness check)
# ---------------------------------------------------------------------------
def reference(x, cross, p, n_heads):
    def ln(z, g, b):
        mu = z.mean(-1, keepdims=True)
        var = ((z - mu) ** 2).mean(-1, keepdims=True)
        return (z - mu) / jnp.sqrt(var + EPS) * g + b

    # conv3/conv4 over pred_len channels
    h = jax.nn.relu(jnp.einsum("ol,bld->bod", p["w3"], x) + p["b3"])
    h = jnp.einsum("ol,bld->bod", p["w4"], h) + p["b4"]
    x1 = ln(h + x, p["g1"], p["be1"])

    # cross attention
    B, L, D = x1.shape
    S = cross.shape[1]
    H = n_heads
    dh = D // H
    q = (x1 @ p["wq"] + p["bq"]).reshape(B, L, H, dh)
    k = (cross @ p["wk"] + p["bk"]).reshape(B, S, H, dh)
    v = (cross @ p["wv"] + p["bv"]).reshape(B, S, H, dh)
    s = jnp.einsum("blhe,bshe->bhls", q, k) / jnp.sqrt(jnp.float32(dh))
    a = jax.nn.softmax(s, axis=-1)
    o = jnp.einsum("bhls,bshe->blhe", a, v).reshape(B, L, D)
    o = o @ p["wo"] + p["bo"]
    x2 = ln(x1 + o, p["g2"], p["be2"])

    # conv1/conv2 over d_model channels
    y = jax.nn.relu(x2 @ p["w1"] + p["b1"])
    y = y @ p["w2"] + p["b2"]
    return ln(y + x2, p["g3"], p["be3"])


if __name__ == "__main__":
    # batch, pred_len, cross seq, d_model, heads (d_model lane-dense: 128)
    B, L, S, D, H = 2, 8, 16, 128, 4
    d_ff = 4 * D
    L2 = 2 * L

    key = jax.random.PRNGKey(0)
    ks = jax.random.split(key, 20)

    def rn(k, shape, scale=0.1):
        return (scale * jax.random.normal(k, shape)).astype(jnp.float32)

    params = {
        # conv3 / conv4 (Conv1d, kernel_size=1, channels = pred_len)
        "w3": rn(ks[0], (L2, L)), "b3": rn(ks[1], (L2, 1)),
        "w4": rn(ks[2], (L, L2)), "b4": rn(ks[3], (L, 1)),
        "g1": jnp.ones((1, D), jnp.float32), "be1": jnp.zeros((1, D), jnp.float32),
        # cross attention projections (stored as (in, out))
        "wq": rn(ks[4], (D, D)), "bq": rn(ks[5], (1, D)),
        "wk": rn(ks[6], (D, D)), "bk": rn(ks[7], (1, D)),
        "wv": rn(ks[8], (D, D)), "bv": rn(ks[9], (1, D)),
        "wo": rn(ks[10], (D, D)), "bo": rn(ks[11], (1, D)),
        "g2": jnp.ones((1, D), jnp.float32), "be2": jnp.zeros((1, D), jnp.float32),
        # conv1 / conv2 (Conv1d, kernel_size=1, channels = d_model)
        "w1": rn(ks[12], (D, d_ff)), "b1": rn(ks[13], (1, d_ff)),
        "w2": rn(ks[14], (d_ff, D)), "b2": rn(ks[15], (1, D)),
        "g3": jnp.ones((1, D), jnp.float32), "be3": jnp.zeros((1, D), jnp.float32),
    }

    x = rn(ks[16], (B, L, D), scale=1.0)
    cross = rn(ks[17], (B, S, D), scale=1.0)

    out = decoder_layer_self_ffn(x, cross, params, H)
    out = jax.block_until_ready(out)

    ref = reference(x, cross, params, H)
    assert out.shape == (B, L, D)
    max_err = float(jnp.max(jnp.abs(out - ref)))
    # bf16 MXU operands + approx reciprocal -> relaxed tolerance vs f32 reference
    assert jnp.allclose(out, ref, atol=5e-2, rtol=5e-2), max_err
    print("KERNEL_OK")
</pallas_src>

<mosaic_0001>
module attributes {stable_mosaic.version = 11 : i64} {
  func.func @decoder_layer_kernel(%arg0: i32, %arg1: memref<1x8x128xf32, #tpu.memory_space<vmem>>, %arg2: memref<1x16x128xf32, #tpu.memory_space<vmem>>, %arg3: memref<16x8xbf16, #tpu.memory_space<vmem>>, %arg4: memref<16x1xf32, #tpu.memory_space<vmem>>, %arg5: memref<8x16xbf16, #tpu.memory_space<vmem>>, %arg6: memref<8x1xf32, #tpu.memory_space<vmem>>, %arg7: memref<1x128xf32, #tpu.memory_space<vmem>>, %arg8: memref<1x128xf32, #tpu.memory_space<vmem>>, %arg9: memref<128x128xbf16, #tpu.memory_space<vmem>>, %arg10: memref<1x128xf32, #tpu.memory_space<vmem>>, %arg11: memref<128x256xbf16, #tpu.memory_space<vmem>>, %arg12: memref<1x256xf32, #tpu.memory_space<vmem>>, %arg13: memref<128x128xbf16, #tpu.memory_space<vmem>>, %arg14: memref<1x128xf32, #tpu.memory_space<vmem>>, %arg15: memref<1x128xf32, #tpu.memory_space<vmem>>, %arg16: memref<1x128xf32, #tpu.memory_space<vmem>>, %arg17: memref<128x512xbf16, #tpu.memory_space<vmem>>, %arg18: memref<1x512xf32, #tpu.memory_space<vmem>>, %arg19: memref<512x128xbf16, #tpu.memory_space<vmem>>, %arg20: memref<1x128xf32, #tpu.memory_space<vmem>>, %arg21: memref<1x128xf32, #tpu.memory_space<vmem>>, %arg22: memref<1x128xf32, #tpu.memory_space<vmem>>, %arg23: memref<1x8x128xf32, #tpu.memory_space<vmem>>, %arg24: memref<8x128xbf16, #tpu.memory_space<vmem>>) attributes {dimension_semantics = [#tpu.dimension_semantics<parallel>], iteration_bounds = array<i64: 2>, scalar_prefetch = 0 : i64, scratch_operands = 1 : i64, tpu.core_type = #tpu.core_type<tc>, window_params = [{transform_indices = @transform_0, window_bounds = array<i64: 1, 8, 128>}, {transform_indices = @transform_1, window_bounds = array<i64: 1, 16, 128>}, {pipeline_mode = #tpu.pipeline_mode<synchronous>, transform_indices = @transform_2, window_bounds = array<i64: 16, 8>}, {pipeline_mode = #tpu.pipeline_mode<synchronous>, transform_indices = @transform_3, window_bounds = array<i64: 16, 1>}, {pipeline_mode = #tpu.pipeline_mode<synchronous>, transform_indices = @transform_4, window_bounds = array<i64: 8, 16>}, {pipeline_mode = #tpu.pipeline_mode<synchronous>, transform_indices = @transform_5, window_bounds = array<i64: 8, 1>}, {pipeline_mode = #tpu.pipeline_mode<synchronous>, transform_indices = @transform_6, window_bounds = array<i64: 1, 128>}, {pipeline_mode = #tpu.pipeline_mode<synchronous>, transform_indices = @transform_7, window_bounds = array<i64: 1, 128>}, {pipeline_mode = #tpu.pipeline_mode<synchronous>, transform_indices = @transform_8, window_bounds = array<i64: 128, 128>}, {pipeline_mode = #tpu.pipeline_mode<synchronous>, transform_indices = @transform_9, window_bounds = array<i64: 1, 128>}, {pipeline_mode = #tpu.pipeline_mode<synchronous>, transform_indices = @transform_10, window_bounds = array<i64: 128, 256>}, {pipeline_mode = #tpu.pipeline_mode<synchronous>, transform_indices = @transform_11, window_bounds = array<i64: 1, 256>}, {pipeline_mode = #tpu.pipeline_mode<synchronous>, transform_indices = @transform_12, window_bounds = array<i64: 128, 128>}, {pipeline_mode = #tpu.pipeline_mode<synchronous>, transform_indices = @transform_13, window_bounds = array<i64: 1, 128>}, {pipeline_mode = #tpu.pipeline_mode<synchronous>, transform_indices = @transform_14, window_bounds = array<i64: 1, 128>}, {pipeline_mode = #tpu.pipeline_mode<synchronous>, transform_indices = @transform_15, window_bounds = array<i64: 1, 128>}, {pipeline_mode = #tpu.pipeline_mode<synchronous>, transform_indices = @transform_16, window_bounds = array<i64: 128, 512>}, {pipeline_mode = #tpu.pipeline_mode<synchronous>, transform_indices = @transform_17, window_bounds = array<i64: 1, 512>}, {pipeline_mode = #tpu.pipeline_mode<synchronous>, transform_indices = @transform_18, window_bounds = array<i64: 512, 128>}, {pipeline_mode = #tpu.pipeline_mode<synchronous>, transform_indices = @transform_19, window_bounds = array<i64: 1, 128>}, {pipeline_mode = #tpu.pipeline_mode<synchronous>, transform_indices = @transform_20, window_bounds = array<i64: 1, 128>}, {pipeline_mode = #tpu.pipeline_mode<synchronous>, transform_indices = @transform_21, window_bounds = array<i64: 1, 128>}, {transform_indices = @transform_22, window_bounds = array<i64: 1, 8, 128>}]} {
    %c0 = arith.constant 0 : index
    %c0_0 = arith.constant 0 : index
    %c0_1 = arith.constant 0 : index
    %0 = vector.load %arg1[%c0, %c0_0, %c0_1] : memref<1x8x128xf32, #tpu.memory_space<vmem>>, vector<1x8x128xf32>
    %1 = vector.shape_cast %0 : vector<1x8x128xf32> to vector<8x128xf32>
    %c0_2 = arith.constant 0 : index
    %c0_3 = arith.constant 0 : index
    %c0_4 = arith.constant 0 : index
    %2 = vector.load %arg2[%c0_2, %c0_3, %c0_4] : memref<1x16x128xf32, #tpu.memory_space<vmem>>, vector<1x16x128xf32>
    %3 = vector.shape_cast %2 : vector<1x16x128xf32> to vector<16x128xf32>
    %c0_5 = arith.constant 0 : index
    %c0_6 = arith.constant 0 : index
    %4 = vector.load %arg3[%c0_5, %c0_6] : memref<16x8xbf16, #tpu.memory_space<vmem>>, vector<16x8xbf16>
    %5 = arith.truncf %1 : vector<8x128xf32> to vector<8x128xbf16>
    %cst = arith.constant dense<0.000000e+00> : vector<16x128xf32>
    %6 = tpu.matmul %4, %5, %cst {dimension_numbers = #tpu.dot_dimension_numbers<[1], [0], [0], [1], [0, 0, 1, 1], [], []>} : vector<16x8xbf16>, vector<8x128xbf16>, vector<16x128xf32> -> vector<16x128xf32>
    %c0_7 = arith.constant 0 : index
    %c0_8 = arith.constant 0 : index
    %7 = vector.load %arg4[%c0_7, %c0_8] : memref<16x1xf32, #tpu.memory_space<vmem>>, vector<16x1xf32>
    %8 = vector.broadcast %7 : vector<16x1xf32> to vector<16x128xf32>
    %9 = arith.addf %6, %8 : vector<16x128xf32>
    %cst_9 = arith.constant 0.000000e+00 : f32
    %10 = vector.broadcast %cst_9 : f32 to vector<16x128xf32>
    %11 = arith.maximumf %9, %10 : vector<16x128xf32>
    %c0_10 = arith.constant 0 : index
    %c0_11 = arith.constant 0 : index
    %12 = vector.load %arg5[%c0_10, %c0_11] : memref<8x16xbf16, #tpu.memory_space<vmem>>, vector<8x16xbf16>
    %13 = arith.truncf %11 : vector<16x128xf32> to vector<16x128xbf16>
    %cst_12 = arith.constant dense<0.000000e+00> : vector<8x128xf32>
    %14 = tpu.matmul %12, %13, %cst_12 {dimension_numbers = #tpu.dot_dimension_numbers<[1], [0], [0], [1], [0, 0, 1, 1], [], []>} : vector<8x16xbf16>, vector<16x128xbf16>, vector<8x128xf32> -> vector<8x128xf32>
    %c0_13 = arith.constant 0 : index
    %c0_14 = arith.constant 0 : index
    %15 = vector.load %arg6[%c0_13, %c0_14] : memref<8x1xf32, #tpu.memory_space<vmem>>, vector<8x1xf32>
    %16 = vector.broadcast %15 : vector<8x1xf32> to vector<8x128xf32>
    %17 = arith.addf %14, %16 : vector<8x128xf32>
    %18 = arith.addf %17, %1 : vector<8x128xf32>
    %c0_15 = arith.constant 0 : index
    %c0_16 = arith.constant 0 : index
    %19 = vector.load %arg7[%c0_15, %c0_16] : memref<1x128xf32, #tpu.memory_space<vmem>>, vector<1x128xf32>
    %c0_17 = arith.constant 0 : index
    %c0_18 = arith.constant 0 : index
    %20 = vector.load %arg8[%c0_17, %c0_18] : memref<1x128xf32, #tpu.memory_space<vmem>>, vector<1x128xf32>
    %cst_19 = arith.constant dense<0.000000e+00> : vector<8xf32>
    %21 = vector.multi_reduction <add>, %18, %cst_19 [1] : vector<8x128xf32> to vector<8xf32>
    %22 = vector.shape_cast %21 : vector<8xf32> to vector<8x1xf32>
    %cst_20 = arith.constant 1.280000e+02 : f32
    %23 = vector.broadcast %cst_20 : f32 to vector<8x1xf32>
    %24 = arith.divf %22, %23 : vector<8x1xf32>
    %25 = vector.broadcast %24 : vector<8x1xf32> to vector<8x128xf32>
    %26 = arith.subf %18, %25 : vector<8x128xf32>
    %27 = arith.mulf %26, %26 : vector<8x128xf32>
    %cst_21 = arith.constant dense<0.000000e+00> : vector<8xf32>
    %28 = vector.multi_reduction <add>, %27, %cst_21 [1] : vector<8x128xf32> to vector<8xf32>
    %29 = vector.shape_cast %28 : vector<8xf32> to vector<8x1xf32>
    %cst_22 = arith.constant 1.280000e+02 : f32
    %30 = vector.broadcast %cst_22 : f32 to vector<8x1xf32>
    %31 = arith.divf %29, %30 : vector<8x1xf32>
    %32 = vector.broadcast %24 : vector<8x1xf32> to vector<8x128xf32>
    %33 = arith.subf %18, %32 : vector<8x128xf32>
    %cst_23 = arith.constant 9.99999974E-6 : f32
    %34 = vector.broadcast %cst_23 : f32 to vector<8x1xf32>
    %35 = arith.addf %31, %34 : vector<8x1xf32>
    %36 = math.rsqrt %35 : vector<8x1xf32>
    %37 = vector.broadcast %36 : vector<8x1xf32> to vector<8x128xf32>
    %38 = arith.mulf %33, %37 : vector<8x128xf32>
    %39 = vector.broadcast %19 : vector<1x128xf32> to vector<8x128xf32>
    %40 = arith.mulf %38, %39 : vector<8x128xf32>
    %41 = vector.broadcast %20 : vector<1x128xf32> to vector<8x128xf32>
    %42 = arith.addf %40, %41 : vector<8x128xf32>
    %43 = arith.truncf %3 : vector<16x128xf32> to vector<16x128xbf16>
    %44 = arith.truncf %42 : vector<8x128xf32> to vector<8x128xbf16>
    %c0_24 = arith.constant 0 : index
    %c0_25 = arith.constant 0 : index
    %45 = vector.load %arg9[%c0_24, %c0_25] : memref<128x128xbf16, #tpu.memory_space<vmem>>, vector<128x128xbf16>
    %cst_26 = arith.constant dense<0.000000e+00> : vector<8x128xf32>
    %46 = tpu.matmul %44, %45, %cst_26 {dimension_numbers = #tpu.dot_dimension_numbers<[1], [0], [0], [1], [0, 0, 1, 1], [], []>} : vector<8x128xbf16>, vector<128x128xbf16>, vector<8x128xf32> -> vector<8x128xf32>
    %c0_27 = arith.constant 0 : index
    %c0_28 = arith.constant 0 : index
    %47 = vector.load %arg10[%c0_27, %c0_28] : memref<1x128xf32, #tpu.memory_space<vmem>>, vector<1x128xf32>
    %48 = vector.broadcast %47 : vector<1x128xf32> to vector<8x128xf32>
    %49 = arith.addf %46, %48 : vector<8x128xf32>
    %c0_29 = arith.constant 0 : index
    %c0_30 = arith.constant 0 : index
    %50 = vector.load %arg11[%c0_29, %c0_30] : memref<128x256xbf16, #tpu.memory_space<vmem>>, vector<128x256xbf16>
    %cst_31 = arith.constant dense<0.000000e+00> : vector<16x256xf32>
    %51 = tpu.matmul %43, %50, %cst_31 {dimension_numbers = #tpu.dot_dimension_numbers<[1], [0], [0], [1], [0, 0, 1, 1], [], []>} : vector<16x128xbf16>, vector<128x256xbf16>, vector<16x256xf32> -> vector<16x256xf32>
    %c0_32 = arith.constant 0 : index
    %c0_33 = arith.constant 0 : index
    %52 = vector.load %arg12[%c0_32, %c0_33] : memref<1x256xf32, #tpu.memory_space<vmem>>, vector<1x256xf32>
    %53 = vector.broadcast %52 : vector<1x256xf32> to vector<16x256xf32>
    %54 = arith.addf %51, %53 : vector<16x256xf32>
    %55 = vector.extract_strided_slice %54 {offsets = [0, 0], sizes = [16, 128], strides = [1, 1]} : vector<16x256xf32> to vector<16x128xf32>
    %56 = arith.truncf %55 : vector<16x128xf32> to vector<16x128xbf16>
    %57 = vector.extract_strided_slice %54 {offsets = [0, 128], sizes = [16, 128], strides = [1, 1]} : vector<16x256xf32> to vector<16x128xf32>
    %58 = arith.truncf %57 : vector<16x128xf32> to vector<16x128xbf16>
    %59 = vector.extract_strided_slice %49 {offsets = [0, 0], sizes = [8, 32], strides = [1, 1]} : vector<8x128xf32> to vector<8x32xf32>
    %60 = arith.truncf %59 : vector<8x32xf32> to vector<8x32xbf16>
    %61 = vector.extract_strided_slice %56 {offsets = [0, 0], sizes = [16, 32], strides = [1, 1]} : vector<16x128xbf16> to vector<16x32xbf16>
    %62 = tpu.transpose %61, [1, 0] : vector<16x32xbf16> -> vector<32x16xbf16>
    %cst_34 = arith.constant dense<0.000000e+00> : vector<8x16xf32>
    %63 = tpu.matmul %60, %62, %cst_34 {dimension_numbers = #tpu.dot_dimension_numbers<[1], [0], [0], [1], [0, 0, 1, 1], [], []>} : vector<8x32xbf16>, vector<32x16xbf16>, vector<8x16xf32> -> vector<8x16xf32>
    %cst_35 = arith.constant dense<0xFF800000> : vector<8xf32>
    %64 = vector.multi_reduction <maximumf>, %63, %cst_35 [1] : vector<8x16xf32> to vector<8xf32>
    %65 = vector.shape_cast %64 : vector<8xf32> to vector<8x1xf32>
    %66 = vector.broadcast %65 : vector<8x1xf32> to vector<8x16xf32>
    %67 = arith.subf %63, %66 : vector<8x16xf32>
    %68 = math.exp %67 : vector<8x16xf32>
    %cst_36 = arith.constant dense<0.000000e+00> : vector<8xf32>
    %69 = vector.multi_reduction <add>, %68, %cst_36 [1] : vector<8x16xf32> to vector<8xf32>
    %70 = vector.shape_cast %69 : vector<8xf32> to vector<8x1xf32>
    %71 = tpu.reciprocal %70 {approx = true} : vector<8x1xf32> -> vector<8x1xf32>
    %72 = vector.broadcast %71 : vector<8x1xf32> to vector<8x16xf32>
    %73 = arith.mulf %68, %72 : vector<8x16xf32>
    %74 = arith.truncf %73 : vector<8x16xf32> to vector<8x16xbf16>
    %75 = vector.extract_strided_slice %58 {offsets = [0, 0], sizes = [16, 32], strides = [1, 1]} : vector<16x128xbf16> to vector<16x32xbf16>
    %cst_37 = arith.constant dense<0.000000e+00> : vector<8x32xf32>
    %76 = tpu.matmul %74, %75, %cst_37 {dimension_numbers = #tpu.dot_dimension_numbers<[1], [0], [0], [1], [0, 0, 1, 1], [], []>} : vector<8x16xbf16>, vector<16x32xbf16>, vector<8x32xf32> -> vector<8x32xf32>
    %77 = arith.truncf %76 : vector<8x32xf32> to vector<8x32xbf16>
    %c0_38 = arith.constant 0 : index
    %c0_39 = arith.constant 0 : index
    %78 = vector.load %arg24[%c0_38, %c0_39] : memref<8x128xbf16, #tpu.memory_space<vmem>>, vector<8x32xbf16>
    tpu.vector_store %arg24[%c0_38, %c0_39], %77 {strides = array<i32>} : memref<8x128xbf16, #tpu.memory_space<vmem>>, vector<8x32xbf16>,
    %79 = vector.extract_strided_slice %49 {offsets = [0, 32], sizes = [8, 32], strides = [1, 1]} : vector<8x128xf32> to vector<8x32xf32>
    %80 = arith.truncf %79 : vector<8x32xf32> to vector<8x32xbf16>
    %81 = vector.extract_strided_slice %56 {offsets = [0, 32], sizes = [16, 32], strides = [1, 1]} : vector<16x128xbf16> to vector<16x32xbf16>
    %82 = tpu.transpose %81, [1, 0] : vector<16x32xbf16> -> vector<32x16xbf16>
    %cst_40 = arith.constant dense<0.000000e+00> : vector<8x16xf32>
    %83 = tpu.matmul %80, %82, %cst_40 {dimension_numbers = #tpu.dot_dimension_numbers<[1], [0], [0], [1], [0, 0, 1, 1], [], []>} : vector<8x32xbf16>, vector<32x16xbf16>, vector<8x16xf32> -> vector<8x16xf32>
    %cst_41 = arith.constant dense<0xFF800000> : vector<8xf32>
    %84 = vector.multi_reduction <maximumf>, %83, %cst_41 [1] : vector<8x16xf32> to vector<8xf32>
    %85 = vector.shape_cast %84 : vector<8xf32> to vector<8x1xf32>
    %86 = vector.broadcast %85 : vector<8x1xf32> to vector<8x16xf32>
    %87 = arith.subf %83, %86 : vector<8x16xf32>
    %88 = math.exp %87 : vector<8x16xf32>
    %cst_42 = arith.constant dense<0.000000e+00> : vector<8xf32>
    %89 = vector.multi_reduction <add>, %88, %cst_42 [1] : vector<8x16xf32> to vector<8xf32>
    %90 = vector.shape_cast %89 : vector<8xf32> to vector<8x1xf32>
    %91 = tpu.reciprocal %90 {approx = true} : vector<8x1xf32> -> vector<8x1xf32>
    %92 = vector.broadcast %91 : vector<8x1xf32> to vector<8x16xf32>
    %93 = arith.mulf %88, %92 : vector<8x16xf32>
    %94 = arith.truncf %93 : vector<8x16xf32> to vector<8x16xbf16>
    %95 = vector.extract_strided_slice %58 {offsets = [0, 32], sizes = [16, 32], strides = [1, 1]} : vector<16x128xbf16> to vector<16x32xbf16>
    %cst_43 = arith.constant dense<0.000000e+00> : vector<8x32xf32>
    %96 = tpu.matmul %94, %95, %cst_43 {dimension_numbers = #tpu.dot_dimension_numbers<[1], [0], [0], [1], [0, 0, 1, 1], [], []>} : vector<8x16xbf16>, vector<16x32xbf16>, vector<8x32xf32> -> vector<8x32xf32>
    %97 = arith.truncf %96 : vector<8x32xf32> to vector<8x32xbf16>
    %c0_44 = arith.constant 0 : index
    %c32 = arith.constant 32 : index
    %98 = vector.load %arg24[%c0_44, %c32] : memref<8x128xbf16, #tpu.memory_space<vmem>>, vector<8x32xbf16>
    tpu.vector_store %arg24[%c0_44, %c32], %97 {strides = array<i32>} : memref<8x128xbf16, #tpu.memory_space<vmem>>, vector<8x32xbf16>,
    %99 = vector.extract_strided_slice %49 {offsets = [0, 64], sizes = [8, 32], strides = [1, 1]} : vector<8x128xf32> to vector<8x32xf32>
    %100 = arith.truncf %99 : vector<8x32xf32> to vector<8x32xbf16>
    %101 = vector.extract_strided_slice %56 {offsets = [0, 64], sizes = [16, 32], strides = [1, 1]} : vector<16x128xbf16> to vector<16x32xbf16>
    %102 = tpu.transpose %101, [1, 0] : vector<16x32xbf16> -> vector<32x16xbf16>
    %cst_45 = arith.constant dense<0.000000e+00> : vector<8x16xf32>
    %103 = tpu.matmul %100, %102, %cst_45 {dimension_numbers = #tpu.dot_dimension_numbers<[1], [0], [0], [1], [0, 0, 1, 1], [], []>} : vector<8x32xbf16>, vector<32x16xbf16>, vector<8x16xf32> -> vector<8x16xf32>
    %cst_46 = arith.constant dense<0xFF800000> : vector<8xf32>
    %104 = vector.multi_reduction <maximumf>, %103, %cst_46 [1] : vector<8x16xf32> to vector<8xf32>
    %105 = vector.shape_cast %104 : vector<8xf32> to vector<8x1xf32>
    %106 = vector.broadcast %105 : vector<8x1xf32> to vector<8x16xf32>
    %107 = arith.subf %103, %106 : vector<8x16xf32>
    %108 = math.exp %107 : vector<8x16xf32>
    %cst_47 = arith.constant dense<0.000000e+00> : vector<8xf32>
    %109 = vector.multi_reduction <add>, %108, %cst_47 [1] : vector<8x16xf32> to vector<8xf32>
    %110 = vector.shape_cast %109 : vector<8xf32> to vector<8x1xf32>
    %111 = tpu.reciprocal %110 {approx = true} : vector<8x1xf32> -> vector<8x1xf32>
    %112 = vector.broadcast %111 : vector<8x1xf32> to vector<8x16xf32>
    %113 = arith.mulf %108, %112 : vector<8x16xf32>
    %114 = arith.truncf %113 : vector<8x16xf32> to vector<8x16xbf16>
    %115 = vector.extract_strided_slice %58 {offsets = [0, 64], sizes = [16, 32], strides = [1, 1]} : vector<16x128xbf16> to vector<16x32xbf16>
    %cst_48 = arith.constant dense<0.000000e+00> : vector<8x32xf32>
    %116 = tpu.matmul %114, %115, %cst_48 {dimension_numbers = #tpu.dot_dimension_numbers<[1], [0], [0], [1], [0, 0, 1, 1], [], []>} : vector<8x16xbf16>, vector<16x32xbf16>, vector<8x32xf32> -> vector<8x32xf32>
    %117 = arith.truncf %116 : vector<8x32xf32> to vector<8x32xbf16>
    %c0_49 = arith.constant 0 : index
    %c64 = arith.constant 64 : index
    %118 = vector.load %arg24[%c0_49, %c64] : memref<8x128xbf16, #tpu.memory_space<vmem>>, vector<8x32xbf16>
    tpu.vector_store %arg24[%c0_49, %c64], %117 {strides = array<i32>} : memref<8x128xbf16, #tpu.memory_space<vmem>>, vector<8x32xbf16>,
    %119 = vector.extract_strided_slice %49 {offsets = [0, 96], sizes = [8, 32], strides = [1, 1]} : vector<8x128xf32> to vector<8x32xf32>
    %120 = arith.truncf %119 : vector<8x32xf32> to vector<8x32xbf16>
    %121 = vector.extract_strided_slice %56 {offsets = [0, 96], sizes = [16, 32], strides = [1, 1]} : vector<16x128xbf16> to vector<16x32xbf16>
    %122 = tpu.transpose %121, [1, 0] : vector<16x32xbf16> -> vector<32x16xbf16>
    %cst_50 = arith.constant dense<0.000000e+00> : vector<8x16xf32>
    %123 = tpu.matmul %120, %122, %cst_50 {dimension_numbers = #tpu.dot_dimension_numbers<[1], [0], [0], [1], [0, 0, 1, 1], [], []>} : vector<8x32xbf16>, vector<32x16xbf16>, vector<8x16xf32> -> vector<8x16xf32>
    %cst_51 = arith.constant dense<0xFF800000> : vector<8xf32>
    %124 = vector.multi_reduction <maximumf>, %123, %cst_51 [1] : vector<8x16xf32> to vector<8xf32>
    %125 = vector.shape_cast %124 : vector<8xf32> to vector<8x1xf32>
    %126 = vector.broadcast %125 : vector<8x1xf32> to vector<8x16xf32>
    %127 = arith.subf %123, %126 : vector<8x16xf32>
    %128 = math.exp %127 : vector<8x16xf32>
    %cst_52 = arith.constant dense<0.000000e+00> : vector<8xf32>
    %129 = vector.multi_reduction <add>, %128, %cst_52 [1] : vector<8x16xf32> to vector<8xf32>
    %130 = vector.shape_cast %129 : vector<8xf32> to vector<8x1xf32>
    %131 = tpu.reciprocal %130 {approx = true} : vector<8x1xf32> -> vector<8x1xf32>
    %132 = vector.broadcast %131 : vector<8x1xf32> to vector<8x16xf32>
    %133 = arith.mulf %128, %132 : vector<8x16xf32>
    %134 = arith.truncf %133 : vector<8x16xf32> to vector<8x16xbf16>
    %135 = vector.extract_strided_slice %58 {offsets = [0, 96], sizes = [16, 32], strides = [1, 1]} : vector<16x128xbf16> to vector<16x32xbf16>
    %cst_53 = arith.constant dense<0.000000e+00> : vector<8x32xf32>
    %136 = tpu.matmul %134, %135, %cst_53 {dimension_numbers = #tpu.dot_dimension_numbers<[1], [0], [0], [1], [0, 0, 1, 1], [], []>} : vector<8x16xbf16>, vector<16x32xbf16>, vector<8x32xf32> -> vector<8x32xf32>
    %137 = arith.truncf %136 : vector<8x32xf32> to vector<8x32xbf16>
    %c0_54 = arith.constant 0 : index
    %c96 = arith.constant 96 : index
    %138 = vector.load %arg24[%c0_54, %c96] : memref<8x128xbf16, #tpu.memory_space<vmem>>, vector<8x32xbf16>
    tpu.vector_store %arg24[%c0_54, %c96], %137 {strides = array<i32>} : memref<8x128xbf16, #tpu.memory_space<vmem>>, vector<8x32xbf16>,
    %c0_55 = arith.constant 0 : index
    %c0_56 = arith.constant 0 : index
    %139 = vector.load %arg24[%c0_55, %c0_56] : memref<8x128xbf16, #tpu.memory_space<vmem>>, vector<8x128xbf16>
    %c0_57 = arith.constant 0 : index
    %c0_58 = arith.constant 0 : index
    %140 = vector.load %arg13[%c0_57, %c0_58] : memref<128x128xbf16, #tpu.memory_space<vmem>>, vector<128x128xbf16>
    %cst_59 = arith.constant dense<0.000000e+00> : vector<8x128xf32>
    %141 = tpu.matmul %139, %140, %cst_59 {dimension_numbers = #tpu.dot_dimension_numbers<[1], [0], [0], [1], [0, 0, 1, 1], [], []>} : vector<8x128xbf16>, vector<128x128xbf16>, vector<8x128xf32> -> vector<8x128xf32>
    %c0_60 = arith.constant 0 : index
    %c0_61 = arith.constant 0 : index
    %142 = vector.load %arg14[%c0_60, %c0_61] : memref<1x128xf32, #tpu.memory_space<vmem>>, vector<1x128xf32>
    %143 = vector.broadcast %142 : vector<1x128xf32> to vector<8x128xf32>
    %144 = arith.addf %141, %143 : vector<8x128xf32>
    %145 = arith.addf %42, %144 : vector<8x128xf32>
    %c0_62 = arith.constant 0 : index
    %c0_63 = arith.constant 0 : index
    %146 = vector.load %arg15[%c0_62, %c0_63] : memref<1x128xf32, #tpu.memory_space<vmem>>, vector<1x128xf32>
    %c0_64 = arith.constant 0 : index
    %c0_65 = arith.constant 0 : index
    %147 = vector.load %arg16[%c0_64, %c0_65] : memref<1x128xf32, #tpu.memory_space<vmem>>, vector<1x128xf32>
    %cst_66 = arith.constant dense<0.000000e+00> : vector<8xf32>
    %148 = vector.multi_reduction <add>, %145, %cst_66 [1] : vector<8x128xf32> to vector<8xf32>
    %149 = vector.shape_cast %148 : vector<8xf32> to vector<8x1xf32>
    %cst_67 = arith.constant 1.280000e+02 : f32
    %150 = vector.broadcast %cst_67 : f32 to vector<8x1xf32>
    %151 = arith.divf %149, %150 : vector<8x1xf32>
    %152 = vector.broadcast %151 : vector<8x1xf32> to vector<8x128xf32>
    %153 = arith.subf %145, %152 : vector<8x128xf32>
    %154 = arith.mulf %153, %153 : vector<8x128xf32>
    %cst_68 = arith.constant dense<0.000000e+00> : vector<8xf32>
    %155 = vector.multi_reduction <add>, %154, %cst_68 [1] : vector<8x128xf32> to vector<8xf32>
    %156 = vector.shape_cast %155 : vector<8xf32> to vector<8x1xf32>
    %cst_69 = arith.constant 1.280000e+02 : f32
    %157 = vector.broadcast %cst_69 : f32 to vector<8x1xf32>
    %158 = arith.divf %156, %157 : vector<8x1xf32>
    %159 = vector.broadcast %151 : vector<8x1xf32> to vector<8x128xf32>
    %160 = arith.subf %145, %159 : vector<8x128xf32>
    %cst_70 = arith.constant 9.99999974E-6 : f32
    %161 = vector.broadcast %cst_70 : f32 to vector<8x1xf32>
    %162 = arith.addf %158, %161 : vector<8x1xf32>
    %163 = math.rsqrt %162 : vector<8x1xf32>
    %164 = vector.broadcast %163 : vector<8x1xf32> to vector<8x128xf32>
    %165 = arith.mulf %160, %164 : vector<8x128xf32>
    %166 = vector.broadcast %146 : vector<1x128xf32> to vector<8x128xf32>
    %167 = arith.mulf %165, %166 : vector<8x128xf32>
    %168 = vector.broadcast %147 : vector<1x128xf32> to vector<8x128xf32>
    %169 = arith.addf %167, %168 : vector<8x128xf32>
    %170 = arith.truncf %169 : vector<8x128xf32> to vector<8x128xbf16>
    %c0_71 = arith.constant 0 : index
    %c0_72 = arith.constant 0 : index
    %171 = vector.load %arg17[%c0_71, %c0_72] : memref<128x512xbf16, #tpu.memory_space<vmem>>, vector<128x512xbf16>
    %cst_73 = arith.constant dense<0.000000e+00> : vector<8x512xf32>
    %172 = tpu.matmul %170, %171, %cst_73 {dimension_numbers = #tpu.dot_dimension_numbers<[1], [0], [0], [1], [0, 0, 1, 1], [], []>} : vector<8x128xbf16>, vector<128x512xbf16>, vector<8x512xf32> -> vector<8x512xf32>
    %c0_74 = arith.constant 0 : index
    %c0_75 = arith.constant 0 : index
    %173 = vector.load %arg18[%c0_74, %c0_75] : memref<1x512xf32, #tpu.memory_space<vmem>>, vector<1x512xf32>
    %174 = vector.broadcast %173 : vector<1x512xf32> to vector<8x512xf32>
    %175 = arith.addf %172, %174 : vector<8x512xf32>
    %cst_76 = arith.constant 0.000000e+00 : f32
    %176 = vector.broadcast %cst_76 : f32 to vector<8x512xf32>
    %177 = arith.maximumf %175, %176 : vector<8x512xf32>
    %178 = arith.truncf %177 : vector<8x512xf32> to vector<8x512xbf16>
    %c0_77 = arith.constant 0 : index
    %c0_78 = arith.constant 0 : index
    %179 = vector.load %arg19[%c0_77, %c0_78] : memref<512x128xbf16, #tpu.memory_space<vmem>>, vector<512x128xbf16>
    %cst_79 = arith.constant dense<0.000000e+00> : vector<8x128xf32>
    %180 = tpu.matmul %178, %179, %cst_79 {dimension_numbers = #tpu.dot_dimension_numbers<[1], [0], [0], [1], [0, 0, 1, 1], [], []>} : vector<8x512xbf16>, vector<512x128xbf16>, vector<8x128xf32> -> vector<8x128xf32>
    %c0_80 = arith.constant 0 : index
    %c0_81 = arith.constant 0 : index
    %181 = vector.load %arg20[%c0_80, %c0_81] : memref<1x128xf32, #tpu.memory_space<vmem>>, vector<1x128xf32>
    %182 = vector.broadcast %181 : vector<1x128xf32> to vector<8x128xf32>
    %183 = arith.addf %180, %182 : vector<8x128xf32>
    %184 = arith.addf %183, %169 : vector<8x128xf32>
    %c0_82 = arith.constant 0 : index
    %c0_83 = arith.constant 0 : index
    %185 = vector.load %arg21[%c0_82, %c0_83] : memref<1x128xf32, #tpu.memory_space<vmem>>, vector<1x128xf32>
    %c0_84 = arith.constant 0 : index
    %c0_85 = arith.constant 0 : index
    %186 = vector.load %arg22[%c0_84, %c0_85] : memref<1x128xf32, #tpu.memory_space<vmem>>, vector<1x128xf32>
    %cst_86 = arith.constant dense<0.000000e+00> : vector<8xf32>
    %187 = vector.multi_reduction <add>, %184, %cst_86 [1] : vector<8x128xf32> to vector<8xf32>
    %188 = vector.shape_cast %187 : vector<8xf32> to vector<8x1xf32>
    %cst_87 = arith.constant 1.280000e+02 : f32
    %189 = vector.broadcast %cst_87 : f32 to vector<8x1xf32>
    %190 = arith.divf %188, %189 : vector<8x1xf32>
    %191 = vector.broadcast %190 : vector<8x1xf32> to vector<8x128xf32>
    %192 = arith.subf %184, %191 : vector<8x128xf32>
    %193 = arith.mulf %192, %192 : vector<8x128xf32>
    %cst_88 = arith.constant dense<0.000000e+00> : vector<8xf32>
    %194 = vector.multi_reduction <add>, %193, %cst_88 [1] : vector<8x128xf32> to vector<8xf32>
    %195 = vector.shape_cast %194 : vector<8xf32> to vector<8x1xf32>
    %cst_89 = arith.constant 1.280000e+02 : f32
    %196 = vector.broadcast %cst_89 : f32 to vector<8x1xf32>
    %197 = arith.divf %195, %196 : vector<8x1xf32>
    %198 = vector.broadcast %190 : vector<8x1xf32> to vector<8x128xf32>
    %199 = arith.subf %184, %198 : vector<8x128xf32>
    %cst_90 = arith.constant 9.99999974E-6 : f32
    %200 = vector.broadcast %cst_90 : f32 to vector<8x1xf32>
    %201 = arith.addf %197, %200 : vector<8x1xf32>
    %202 = math.rsqrt %201 : vector<8x1xf32>
    %203 = vector.broadcast %202 : vector<8x1xf32> to vector<8x128xf32>
    %204 = arith.mulf %199, %203 : vector<8x128xf32>
    %205 = vector.broadcast %185 : vector<1x128xf32> to vector<8x128xf32>
    %206 = arith.mulf %204, %205 : vector<8x128xf32>
    %207 = vector.broadcast %186 : vector<1x128xf32> to vector<8x128xf32>
    %208 = arith.addf %206, %207 : vector<8x128xf32>
    %c0_91 = arith.constant 0 : index
    %c0_92 = arith.constant 0 : index
    %c0_93 = arith.constant 0 : index
    %209 = vector.load %arg23[%c0_91, %c0_92, %c0_93] : memref<1x8x128xf32, #tpu.memory_space<vmem>>, vector<1x8x128xf32>
    %210 = vector.shape_cast %209 : vector<1x8x128xf32> to vector<8x128xf32>
    %211 = vector.shape_cast %208 : vector<8x128xf32> to vector<1x8x128xf32>
    tpu.vector_store %arg23[%c0_91, %c0_92, %c0_93], %211 {strides = array<i32>} : memref<1x8x128xf32, #tpu.memory_space<vmem>>, vector<1x8x128xf32>,
    return
  }
  func.func @transform_0(%arg0: i32) -> (i32, i32, i32) {
    %c0_i32 = arith.constant 0 : i32
    %c0_i32_0 = arith.constant 0 : i32
    %c0_i32_1 = arith.constant 0 : i32
    return %arg0, %c0_i32, %c0_i32_0 : i32, i32, i32
  }
  func.func @transform_1(%arg0: i32) -> (i32, i32, i32) {
    %c0_i32 = arith.constant 0 : i32
    %c0_i32_0 = arith.constant 0 : i32
    %c0_i32_1 = arith.constant 0 : i32
    return %arg0, %c0_i32, %c0_i32_0 : i32, i32, i32
  }
  func.func @transform_2(%arg0: i32) -> (i32, i32) {
    %c0_i32 = arith.constant 0 : i32
    %c0_i32_0 = arith.constant 0 : i32
    %c0_i32_1 = arith.constant 0 : i32
    return %c0_i32, %c0_i32_0 : i32, i32
  }
  func.func @transform_3(%arg0: i32) -> (i32, i32) {
    %c0_i32 = arith.constant 0 : i32
    %c0_i32_0 = arith.constant 0 : i32
    %c0_i32_1 = arith.constant 0 : i32
    return %c0_i32, %c0_i32_0 : i32, i32
  }
  func.func @transform_4(%arg0: i32) -> (i32, i32) {
    %c0_i32 = arith.constant 0 : i32
    %c0_i32_0 = arith.constant 0 : i32
    %c0_i32_1 = arith.constant 0 : i32
    return %c0_i32, %c0_i32_0 : i32, i32
  }
  func.func @transform_5(%arg0: i32) -> (i32, i32) {
    %c0_i32 = arith.constant 0 : i32
    %c0_i32_0 = arith.constant 0 : i32
    %c0_i32_1 = arith.constant 0 : i32
    return %c0_i32, %c0_i32_0 : i32, i32
  }
  func.func @transform_6(%arg0: i32) -> (i32, i32) {
    %c0_i32 = arith.constant 0 : i32
    %c0_i32_0 = arith.constant 0 : i32
    %c0_i32_1 = arith.constant 0 : i32
    return %c0_i32, %c0_i32_0 : i32, i32
  }
  func.func @transform_7(%arg0: i32) -> (i32, i32) {
    %c0_i32 = arith.constant 0 : i32
    %c0_i32_0 = arith.constant 0 : i32
    %c0_i32_1 = arith.constant 0 : i32
    return %c0_i32, %c0_i32_0 : i32, i32
  }
  func.func @transform_8(%arg0: i32) -> (i32, i32) {
    %c0_i32 = arith.constant 0 : i32
    %c0_i32_0 = arith.constant 0 : i32
    %c0_i32_1 = arith.constant 0 : i32
    return %c0_i32, %c0_i32_0 : i32, i32
  }
  func.func @transform_9(%arg0: i32) -> (i32, i32) {
    %c0_i32 = arith.constant 0 : i32
    %c0_i32_0 = arith.constant 0 : i32
    %c0_i32_1 = arith.constant 0 : i32
    return %c0_i32, %c0_i32_0 : i32, i32
  }
  func.func @transform_10(%arg0: i32) -> (i32, i32) {
    %c0_i32 = arith.constant 0 : i32
    %c0_i32_0 = arith.constant 0 : i32
    %c0_i32_1 = arith.constant 0 : i32
    return %c0_i32, %c0_i32_0 : i32, i32
  }
  func.func @transform_11(%arg0: i32) -> (i32, i32) {
    %c0_i32 = arith.constant 0 : i32
    %c0_i32_0 = arith.constant 0 : i32
    %c0_i32_1 = arith.constant 0 : i32
    return %c0_i32, %c0_i32_0 : i32, i32
  }
  func.func @transform_12(%arg0: i32) -> (i32, i32) {
    %c0_i32 = arith.constant 0 : i32
    %c0_i32_0 = arith.constant 0 : i32
    %c0_i32_1 = arith.constant 0 : i32
    return %c0_i32, %c0_i32_0 : i32, i32
  }
  func.func @transform_13(%arg0: i32) -> (i32, i32) {
    %c0_i32 = arith.constant 0 : i32
    %c0_i32_0 = arith.constant 0 : i32
    %c0_i32_1 = arith.constant 0 : i32
    return %c0_i32, %c0_i32_0 : i32, i32
  }
  func.func @transform_14(%arg0: i32) -> (i32, i32) {
    %c0_i32 = arith.constant 0 : i32
    %c0_i32_0 = arith.constant 0 : i32
    %c0_i32_1 = arith.constant 0 : i32
    return %c0_i32, %c0_i32_0 : i32, i32
  }
  func.func @transform_15(%arg0: i32) -> (i32, i32) {
    %c0_i32 = arith.constant 0 : i32
    %c0_i32_0 = arith.constant 0 : i32
    %c0_i32_1 = arith.constant 0 : i32
    return %c0_i32, %c0_i32_0 : i32, i32
  }
  func.func @transform_16(%arg0: i32) -> (i32, i32) {
    %c0_i32 = arith.constant 0 : i32
    %c0_i32_0 = arith.constant 0 : i32
    %c0_i32_1 = arith.constant 0 : i32
    return %c0_i32, %c0_i32_0 : i32, i32
  }
  func.func @transform_17(%arg0: i32) -> (i32, i32) {
    %c0_i32 = arith.constant 0 : i32
    %c0_i32_0 = arith.constant 0 : i32
    %c0_i32_1 = arith.constant 0 : i32
    return %c0_i32, %c0_i32_0 : i32, i32
  }
  func.func @transform_18(%arg0: i32) -> (i32, i32) {
    %c0_i32 = arith.constant 0 : i32
    %c0_i32_0 = arith.constant 0 : i32
    %c0_i32_1 = arith.constant 0 : i32
    return %c0_i32, %c0_i32_0 : i32, i32
  }
  func.func @transform_19(%arg0: i32) -> (i32, i32) {
    %c0_i32 = arith.constant 0 : i32
    %c0_i32_0 = arith.constant 0 : i32
    %c0_i32_1 = arith.constant 0 : i32
    return %c0_i32, %c0_i32_0 : i32, i32
  }
  func.func @transform_20(%arg0: i32) -> (i32, i32) {
    %c0_i32 = arith.constant 0 : i32
    %c0_i32_0 = arith.constant 0 : i32
    %c0_i32_1 = arith.constant 0 : i32
    return %c0_i32, %c0_i32_0 : i32, i32
  }
  func.func @transform_21(%arg0: i32) -> (i32, i32) {
    %c0_i32 = arith.constant 0 : i32
    %c0_i32_0 = arith.constant 0 : i32
    %c0_i32_1 = arith.constant 0 : i32
    return %c0_i32, %c0_i32_0 : i32, i32
  }
  func.func @transform_22(%arg0: i32) -> (i32, i32, i32) {
    %c0_i32 = arith.constant 0 : i32
    %c0_i32_0 = arith.constant 0 : i32
    %c0_i32_1 = arith.constant 0 : i32
    return %arg0, %c0_i32, %c0_i32_0 : i32, i32, i32
  }
}

module attributes {stable_mosaic.version = 11 : i64} {
  func.func @decoder_layer_kernel(%arg0: i32, %arg1: memref<1x8x128xf32, #tpu.memory_space<vmem>>, %arg2: memref<1x16x128xf32, #tpu.memory_space<vmem>>, %arg3: memref<16x8xbf16, #tpu.memory_space<vmem>>, %arg4: memref<16x1xf32, #tpu.memory_space<vmem>>, %arg5: memref<8x16xbf16, #tpu.memory_space<vmem>>, %arg6: memref<8x1xf32, #tpu.memory_space<vmem>>, %arg7: memref<1x128xf32, #tpu.memory_space<vmem>>, %arg8: memref<1x128xf32, #tpu.memory_space<vmem>>, %arg9: memref<128x128xbf16, #tpu.memory_space<vmem>>, %arg10: memref<1x128xf32, #tpu.memory_space<vmem>>, %arg11: memref<128x256xbf16, #tpu.memory_space<vmem>>, %arg12: memref<1x256xf32, #tpu.memory_space<vmem>>, %arg13: memref<128x128xbf16, #tpu.memory_space<vmem>>, %arg14: memref<1x128xf32, #tpu.memory_space<vmem>>, %arg15: memref<1x128xf32, #tpu.memory_space<vmem>>, %arg16: memref<1x128xf32, #tpu.memory_space<vmem>>, %arg17: memref<128x512xbf16, #tpu.memory_space<vmem>>, %arg18: memref<1x512xf32, #tpu.memory_space<vmem>>, %arg19: memref<512x128xbf16, #tpu.memory_space<vmem>>, %arg20: memref<1x128xf32, #tpu.memory_space<vmem>>, %arg21: memref<1x128xf32, #tpu.memory_space<vmem>>, %arg22: memref<1x128xf32, #tpu.memory_space<vmem>>, %arg23: memref<1x8x128xf32, #tpu.memory_space<vmem>>, %arg24: memref<8x128xbf16, #tpu.memory_space<vmem>>) attributes {dimension_semantics = [#tpu.dimension_semantics<parallel>], iteration_bounds = array<i64: 2>, scalar_prefetch = 0 : i64, scratch_operands = 1 : i64, tpu.core_type = #tpu.core_type<tc>, window_params = [{transform_indices = @transform_0, window_bounds = array<i64: 1, 8, 128>}, {transform_indices = @transform_1, window_bounds = array<i64: 1, 16, 128>}, {pipeline_mode = #tpu.pipeline_mode<synchronous>, transform_indices = @transform_2, window_bounds = array<i64: 16, 8>}, {pipeline_mode = #tpu.pipeline_mode<synchronous>, transform_indices = @transform_3, window_bounds = array<i64: 16, 1>}, {pipeline_mode = #tpu.pipeline_mode<synchronous>, transform_indices = @transform_4, window_bounds = array<i64: 8, 16>}, {pipeline_mode = #tpu.pipeline_mode<synchronous>, transform_indices = @transform_5, window_bounds = array<i64: 8, 1>}, {pipeline_mode = #tpu.pipeline_mode<synchronous>, transform_indices = @transform_6, window_bounds = array<i64: 1, 128>}, {pipeline_mode = #tpu.pipeline_mode<synchronous>, transform_indices = @transform_7, window_bounds = array<i64: 1, 128>}, {pipeline_mode = #tpu.pipeline_mode<synchronous>, transform_indices = @transform_8, window_bounds = array<i64: 128, 128>}, {pipeline_mode = #tpu.pipeline_mode<synchronous>, transform_indices = @transform_9, window_bounds = array<i64: 1, 128>}, {pipeline_mode = #tpu.pipeline_mode<synchronous>, transform_indices = @transform_10, window_bounds = array<i64: 128, 256>}, {pipeline_mode = #tpu.pipeline_mode<synchronous>, transform_indices = @transform_11, window_bounds = array<i64: 1, 256>}, {pipeline_mode = #tpu.pipeline_mode<synchronous>, transform_indices = @transform_12, window_bounds = array<i64: 128, 128>}, {pipeline_mode = #tpu.pipeline_mode<synchronous>, transform_indices = @transform_13, window_bounds = array<i64: 1, 128>}, {pipeline_mode = #tpu.pipeline_mode<synchronous>, transform_indices = @transform_14, window_bounds = array<i64: 1, 128>}, {pipeline_mode = #tpu.pipeline_mode<synchronous>, transform_indices = @transform_15, window_bounds = array<i64: 1, 128>}, {pipeline_mode = #tpu.pipeline_mode<synchronous>, transform_indices = @transform_16, window_bounds = array<i64: 128, 512>}, {pipeline_mode = #tpu.pipeline_mode<synchronous>, transform_indices = @transform_17, window_bounds = array<i64: 1, 512>}, {pipeline_mode = #tpu.pipeline_mode<synchronous>, transform_indices = @transform_18, window_bounds = array<i64: 512, 128>}, {pipeline_mode = #tpu.pipeline_mode<synchronous>, transform_indices = @transform_19, window_bounds = array<i64: 1, 128>}, {pipeline_mode = #tpu.pipeline_mode<synchronous>, transform_indices = @transform_20, window_bounds = array<i64: 1, 128>}, {pipeline_mode = #tpu.pipeline_mode<synchronous>, transform_indices = @transform_21, window_bounds = array<i64: 1, 128>}, {transform_indices = @transform_22, window_bounds = array<i64: 1, 8, 128>}]} {
    %c0 = arith.constant 0 : index
    %c0_0 = arith.constant 0 : index
    %c0_1 = arith.constant 0 : index
    %0 = vector.load %arg1[%c0, %c0_0, %c0_1] : memref<1x8x128xf32, #tpu.memory_space<vmem>>, vector<1x8x128xf32>
    %1 = vector.shape_cast %0 : vector<1x8x128xf32> to vector<8x128xf32>
    %c0_2 = arith.constant 0 : index
    %c0_3 = arith.constant 0 : index
    %c0_4 = arith.constant 0 : index
    %2 = vector.load %arg2[%c0_2, %c0_3, %c0_4] : memref<1x16x128xf32, #tpu.memory_space<vmem>>, vector<1x16x128xf32>
    %3 = vector.shape_cast %2 : vector<1x16x128xf32> to vector<16x128xf32>
    %c0_5 = arith.constant 0 : index
    %c0_6 = arith.constant 0 : index
    %4 = vector.load %arg3[%c0_5, %c0_6] : memref<16x8xbf16, #tpu.memory_space<vmem>>, vector<16x8xbf16>
    %5 = arith.truncf %1 : vector<8x128xf32> to vector<8x128xbf16>
    %cst = arith.constant dense<0.000000e+00> : vector<16x128xf32>
    %6 = tpu.matmul %4, %5, %cst {dimension_numbers = #tpu.dot_dimension_numbers<[1], [0], [0], [1], [0, 0, 1, 1], [], []>} : vector<16x8xbf16>, vector<8x128xbf16>, vector<16x128xf32> -> vector<16x128xf32>
    %c0_7 = arith.constant 0 : index
    %c0_8 = arith.constant 0 : index
    %7 = vector.load %arg4[%c0_7, %c0_8] : memref<16x1xf32, #tpu.memory_space<vmem>>, vector<16x1xf32>
    %8 = vector.broadcast %7 : vector<16x1xf32> to vector<16x128xf32>
    %9 = arith.addf %6, %8 : vector<16x128xf32>
    %cst_9 = arith.constant 0.000000e+00 : f32
    %10 = vector.broadcast %cst_9 : f32 to vector<16x128xf32>
    %11 = arith.maximumf %9, %10 : vector<16x128xf32>
    %c0_10 = arith.constant 0 : index
    %c0_11 = arith.constant 0 : index
    %12 = vector.load %arg5[%c0_10, %c0_11] : memref<8x16xbf16, #tpu.memory_space<vmem>>, vector<8x16xbf16>
    %13 = arith.truncf %11 : vector<16x128xf32> to vector<16x128xbf16>
    %cst_12 = arith.constant dense<0.000000e+00> : vector<8x128xf32>
    %14 = tpu.matmul %12, %13, %cst_12 {dimension_numbers = #tpu.dot_dimension_numbers<[1], [0], [0], [1], [0, 0, 1, 1], [], []>} : vector<8x16xbf16>, vector<16x128xbf16>, vector<8x128xf32> -> vector<8x128xf32>
    %c0_13 = arith.constant 0 : index
    %c0_14 = arith.constant 0 : index
    %15 = vector.load %arg6[%c0_13, %c0_14] : memref<8x1xf32, #tpu.memory_space<vmem>>, vector<8x1xf32>
    %16 = vector.broadcast %15 : vector<8x1xf32> to vector<8x128xf32>
    %17 = arith.addf %14, %16 : vector<8x128xf32>
    %18 = arith.addf %17, %1 : vector<8x128xf32>
    %c0_15 = arith.constant 0 : index
    %c0_16 = arith.constant 0 : index
    %19 = vector.load %arg7[%c0_15, %c0_16] : memref<1x128xf32, #tpu.memory_space<vmem>>, vector<1x128xf32>
    %c0_17 = arith.constant 0 : index
    %c0_18 = arith.constant 0 : index
    %20 = vector.load %arg8[%c0_17, %c0_18] : memref<1x128xf32, #tpu.memory_space<vmem>>, vector<1x128xf32>
    %cst_19 = arith.constant dense<0.000000e+00> : vector<8xf32>
    %21 = vector.multi_reduction <add>, %18, %cst_19 [1] : vector<8x128xf32> to vector<8xf32>
    %22 = vector.shape_cast %21 : vector<8xf32> to vector<8x1xf32>
    %cst_20 = arith.constant 1.280000e+02 : f32
    %23 = vector.broadcast %cst_20 : f32 to vector<8x1xf32>
    %24 = arith.divf %22, %23 : vector<8x1xf32>
    %25 = vector.broadcast %24 : vector<8x1xf32> to vector<8x128xf32>
    %26 = arith.subf %18, %25 : vector<8x128xf32>
    %27 = arith.mulf %26, %26 : vector<8x128xf32>
    %cst_21 = arith.constant dense<0.000000e+00> : vector<8xf32>
    %28 = vector.multi_reduction <add>, %27, %cst_21 [1] : vector<8x128xf32> to vector<8xf32>
    %29 = vector.shape_cast %28 : vector<8xf32> to vector<8x1xf32>
    %cst_22 = arith.constant 1.280000e+02 : f32
    %30 = vector.broadcast %cst_22 : f32 to vector<8x1xf32>
    %31 = arith.divf %29, %30 : vector<8x1xf32>
    %32 = vector.broadcast %24 : vector<8x1xf32> to vector<8x128xf32>
    %33 = arith.subf %18, %32 : vector<8x128xf32>
    %cst_23 = arith.constant 9.99999974E-6 : f32
    %34 = vector.broadcast %cst_23 : f32 to vector<8x1xf32>
    %35 = arith.addf %31, %34 : vector<8x1xf32>
    %36 = math.rsqrt %35 : vector<8x1xf32>
    %37 = vector.broadcast %36 : vector<8x1xf32> to vector<8x128xf32>
    %38 = arith.mulf %33, %37 : vector<8x128xf32>
    %39 = vector.broadcast %19 : vector<1x128xf32> to vector<8x128xf32>
    %40 = arith.mulf %38, %39 : vector<8x128xf32>
    %41 = vector.broadcast %20 : vector<1x128xf32> to vector<8x128xf32>
    %42 = arith.addf %40, %41 : vector<8x128xf32>
    %43 = arith.truncf %3 : vector<16x128xf32> to vector<16x128xbf16>
    %44 = arith.truncf %42 : vector<8x128xf32> to vector<8x128xbf16>
    %c0_24 = arith.constant 0 : index
    %c0_25 = arith.constant 0 : index
    %45 = vector.load %arg9[%c0_24, %c0_25] : memref<128x128xbf16, #tpu.memory_space<vmem>>, vector<128x128xbf16>
    %cst_26 = arith.constant dense<0.000000e+00> : vector<8x128xf32>
    %46 = tpu.matmul %44, %45, %cst_26 {dimension_numbers = #tpu.dot_dimension_numbers<[1], [0], [0], [1], [0, 0, 1, 1], [], []>} : vector<8x128xbf16>, vector<128x128xbf16>, vector<8x128xf32> -> vector<8x128xf32>
    %c0_27 = arith.constant 0 : index
    %c0_28 = arith.constant 0 : index
    %47 = vector.load %arg10[%c0_27, %c0_28] : memref<1x128xf32, #tpu.memory_space<vmem>>, vector<1x128xf32>
    %48 = vector.broadcast %47 : vector<1x128xf32> to vector<8x128xf32>
    %49 = arith.addf %46, %48 : vector<8x128xf32>
    %c0_29 = arith.constant 0 : index
    %c0_30 = arith.constant 0 : index
    %50 = vector.load %arg11[%c0_29, %c0_30] : memref<128x256xbf16, #tpu.memory_space<vmem>>, vector<128x256xbf16>
    %cst_31 = arith.constant dense<0.000000e+00> : vector<16x256xf32>
    %51 = tpu.matmul %43, %50, %cst_31 {dimension_numbers = #tpu.dot_dimension_numbers<[1], [0], [0], [1], [0, 0, 1, 1], [], []>} : vector<16x128xbf16>, vector<128x256xbf16>, vector<16x256xf32> -> vector<16x256xf32>
    %c0_32 = arith.constant 0 : index
    %c0_33 = arith.constant 0 : index
    %52 = vector.load %arg12[%c0_32, %c0_33] : memref<1x256xf32, #tpu.memory_space<vmem>>, vector<1x256xf32>
    %53 = vector.broadcast %52 : vector<1x256xf32> to vector<16x256xf32>
    %54 = arith.addf %51, %53 : vector<16x256xf32>
    %55 = vector.extract_strided_slice %54 {offsets = [0, 0], sizes = [16, 128], strides = [1, 1]} : vector<16x256xf32> to vector<16x128xf32>
    %56 = arith.truncf %55 : vector<16x128xf32> to vector<16x128xbf16>
    %57 = vector.extract_strided_slice %54 {offsets = [0, 128], sizes = [16, 128], strides = [1, 1]} : vector<16x256xf32> to vector<16x128xf32>
    %58 = arith.truncf %57 : vector<16x128xf32> to vector<16x128xbf16>
    %59 = vector.extract_strided_slice %49 {offsets = [0, 0], sizes = [8, 32], strides = [1, 1]} : vector<8x128xf32> to vector<8x32xf32>
    %60 = arith.truncf %59 : vector<8x32xf32> to vector<8x32xbf16>
    %61 = vector.extract_strided_slice %56 {offsets = [0, 0], sizes = [16, 32], strides = [1, 1]} : vector<16x128xbf16> to vector<16x32xbf16>
    %62 = tpu.transpose %61, [1, 0] : vector<16x32xbf16> -> vector<32x16xbf16>
    %cst_34 = arith.constant dense<0.000000e+00> : vector<8x16xf32>
    %63 = tpu.matmul %60, %62, %cst_34 {dimension_numbers = #tpu.dot_dimension_numbers<[1], [0], [0], [1], [0, 0, 1, 1], [], []>} : vector<8x32xbf16>, vector<32x16xbf16>, vector<8x16xf32> -> vector<8x16xf32>
    %cst_35 = arith.constant dense<0xFF800000> : vector<8xf32>
    %64 = vector.multi_reduction <maximumf>, %63, %cst_35 [1] : vector<8x16xf32> to vector<8xf32>
    %65 = vector.shape_cast %64 : vector<8xf32> to vector<8x1xf32>
    %66 = vector.broadcast %65 : vector<8x1xf32> to vector<8x16xf32>
    %67 = arith.subf %63, %66 : vector<8x16xf32>
    %68 = math.exp %67 : vector<8x16xf32>
    %cst_36 = arith.constant dense<0.000000e+00> : vector<8xf32>
    %69 = vector.multi_reduction <add>, %68, %cst_36 [1] : vector<8x16xf32> to vector<8xf32>
    %70 = vector.shape_cast %69 : vector<8xf32> to vector<8x1xf32>
    %71 = tpu.reciprocal %70 {approx = true} : vector<8x1xf32> -> vector<8x1xf32>
    %72 = vector.broadcast %71 : vector<8x1xf32> to vector<8x16xf32>
    %73 = arith.mulf %68, %72 : vector<8x16xf32>
    %74 = arith.truncf %73 : vector<8x16xf32> to vector<8x16xbf16>
    %75 = vector.extract_strided_slice %58 {offsets = [0, 0], sizes = [16, 32], strides = [1, 1]} : vector<16x128xbf16> to vector<16x32xbf16>
    %cst_37 = arith.constant dense<0.000000e+00> : vector<8x32xf32>
    %76 = tpu.matmul %74, %75, %cst_37 {dimension_numbers = #tpu.dot_dimension_numbers<[1], [0], [0], [1], [0, 0, 1, 1], [], []>} : vector<8x16xbf16>, vector<16x32xbf16>, vector<8x32xf32> -> vector<8x32xf32>
    %77 = arith.truncf %76 : vector<8x32xf32> to vector<8x32xbf16>
    %c0_38 = arith.constant 0 : index
    %c0_39 = arith.constant 0 : index
    %78 = vector.load %arg24[%c0_38, %c0_39] : memref<8x128xbf16, #tpu.memory_space<vmem>>, vector<8x32xbf16>
    tpu.vector_store %arg24[%c0_38, %c0_39], %77 {strides = array<i32>} : memref<8x128xbf16, #tpu.memory_space<vmem>>, vector<8x32xbf16>,
    %79 = vector.extract_strided_slice %49 {offsets = [0, 32], sizes = [8, 32], strides = [1, 1]} : vector<8x128xf32> to vector<8x32xf32>
    %80 = arith.truncf %79 : vector<8x32xf32> to vector<8x32xbf16>
    %81 = vector.extract_strided_slice %56 {offsets = [0, 32], sizes = [16, 32], strides = [1, 1]} : vector<16x128xbf16> to vector<16x32xbf16>
    %82 = tpu.transpose %81, [1, 0] : vector<16x32xbf16> -> vector<32x16xbf16>
    %cst_40 = arith.constant dense<0.000000e+00> : vector<8x16xf32>
    %83 = tpu.matmul %80, %82, %cst_40 {dimension_numbers = #tpu.dot_dimension_numbers<[1], [0], [0], [1], [0, 0, 1, 1], [], []>} : vector<8x32xbf16>, vector<32x16xbf16>, vector<8x16xf32> -> vector<8x16xf32>
    %cst_41 = arith.constant dense<0xFF800000> : vector<8xf32>
    %84 = vector.multi_reduction <maximumf>, %83, %cst_41 [1] : vector<8x16xf32> to vector<8xf32>
    %85 = vector.shape_cast %84 : vector<8xf32> to vector<8x1xf32>
    %86 = vector.broadcast %85 : vector<8x1xf32> to vector<8x16xf32>
    %87 = arith.subf %83, %86 : vector<8x16xf32>
    %88 = math.exp %87 : vector<8x16xf32>
    %cst_42 = arith.constant dense<0.000000e+00> : vector<8xf32>
    %89 = vector.multi_reduction <add>, %88, %cst_42 [1] : vector<8x16xf32> to vector<8xf32>
    %90 = vector.shape_cast %89 : vector<8xf32> to vector<8x1xf32>
    %91 = tpu.reciprocal %90 {approx = true} : vector<8x1xf32> -> vector<8x1xf32>
    %92 = vector.broadcast %91 : vector<8x1xf32> to vector<8x16xf32>
    %93 = arith.mulf %88, %92 : vector<8x16xf32>
    %94 = arith.truncf %93 : vector<8x16xf32> to vector<8x16xbf16>
    %95 = vector.extract_strided_slice %58 {offsets = [0, 32], sizes = [16, 32], strides = [1, 1]} : vector<16x128xbf16> to vector<16x32xbf16>
    %cst_43 = arith.constant dense<0.000000e+00> : vector<8x32xf32>
    %96 = tpu.matmul %94, %95, %cst_43 {dimension_numbers = #tpu.dot_dimension_numbers<[1], [0], [0], [1], [0, 0, 1, 1], [], []>} : vector<8x16xbf16>, vector<16x32xbf16>, vector<8x32xf32> -> vector<8x32xf32>
    %97 = arith.truncf %96 : vector<8x32xf32> to vector<8x32xbf16>
    %c0_44 = arith.constant 0 : index
    %c32 = arith.constant 32 : index
    %98 = vector.load %arg24[%c0_44, %c32] : memref<8x128xbf16, #tpu.memory_space<vmem>>, vector<8x32xbf16>
    tpu.vector_store %arg24[%c0_44, %c32], %97 {strides = array<i32>} : memref<8x128xbf16, #tpu.memory_space<vmem>>, vector<8x32xbf16>,
    %99 = vector.extract_strided_slice %49 {offsets = [0, 64], sizes = [8, 32], strides = [1, 1]} : vector<8x128xf32> to vector<8x32xf32>
    %100 = arith.truncf %99 : vector<8x32xf32> to vector<8x32xbf16>
    %101 = vector.extract_strided_slice %56 {offsets = [0, 64], sizes = [16, 32], strides = [1, 1]} : vector<16x128xbf16> to vector<16x32xbf16>
    %102 = tpu.transpose %101, [1, 0] : vector<16x32xbf16> -> vector<32x16xbf16>
    %cst_45 = arith.constant dense<0.000000e+00> : vector<8x16xf32>
    %103 = tpu.matmul %100, %102, %cst_45 {dimension_numbers = #tpu.dot_dimension_numbers<[1], [0], [0], [1], [0, 0, 1, 1], [], []>} : vector<8x32xbf16>, vector<32x16xbf16>, vector<8x16xf32> -> vector<8x16xf32>
    %cst_46 = arith.constant dense<0xFF800000> : vector<8xf32>
    %104 = vector.multi_reduction <maximumf>, %103, %cst_46 [1] : vector<8x16xf32> to vector<8xf32>
    %105 = vector.shape_cast %104 : vector<8xf32> to vector<8x1xf32>
    %106 = vector.broadcast %105 : vector<8x1xf32> to vector<8x16xf32>
    %107 = arith.subf %103, %106 : vector<8x16xf32>
    %108 = math.exp %107 : vector<8x16xf32>
    %cst_47 = arith.constant dense<0.000000e+00> : vector<8xf32>
    %109 = vector.multi_reduction <add>, %108, %cst_47 [1] : vector<8x16xf32> to vector<8xf32>
    %110 = vector.shape_cast %109 : vector<8xf32> to vector<8x1xf32>
    %111 = tpu.reciprocal %110 {approx = true} : vector<8x1xf32> -> vector<8x1xf32>
    %112 = vector.broadcast %111 : vector<8x1xf32> to vector<8x16xf32>
    %113 = arith.mulf %108, %112 : vector<8x16xf32>
    %114 = arith.truncf %113 : vector<8x16xf32> to vector<8x16xbf16>
    %115 = vector.extract_strided_slice %58 {offsets = [0, 64], sizes = [16, 32], strides = [1, 1]} : vector<16x128xbf16> to vector<16x32xbf16>
    %cst_48 = arith.constant dense<0.000000e+00> : vector<8x32xf32>
    %116 = tpu.matmul %114, %115, %cst_48 {dimension_numbers = #tpu.dot_dimension_numbers<[1], [0], [0], [1], [0, 0, 1, 1], [], []>} : vector<8x16xbf16>, vector<16x32xbf16>, vector<8x32xf32> -> vector<8x32xf32>
    %117 = arith.truncf %116 : vector<8x32xf32> to vector<8x32xbf16>
    %c0_49 = arith.constant 0 : index
    %c64 = arith.constant 64 : index
    %118 = vector.load %arg24[%c0_49, %c64] : memref<8x128xbf16, #tpu.memory_space<vmem>>, vector<8x32xbf16>
    tpu.vector_store %arg24[%c0_49, %c64], %117 {strides = array<i32>} : memref<8x128xbf16, #tpu.memory_space<vmem>>, vector<8x32xbf16>,
    %119 = vector.extract_strided_slice %49 {offsets = [0, 96], sizes = [8, 32], strides = [1, 1]} : vector<8x128xf32> to vector<8x32xf32>
    %120 = arith.truncf %119 : vector<8x32xf32> to vector<8x32xbf16>
    %121 = vector.extract_strided_slice %56 {offsets = [0, 96], sizes = [16, 32], strides = [1, 1]} : vector<16x128xbf16> to vector<16x32xbf16>
    %122 = tpu.transpose %121, [1, 0] : vector<16x32xbf16> -> vector<32x16xbf16>
    %cst_50 = arith.constant dense<0.000000e+00> : vector<8x16xf32>
    %123 = tpu.matmul %120, %122, %cst_50 {dimension_numbers = #tpu.dot_dimension_numbers<[1], [0], [0], [1], [0, 0, 1, 1], [], []>} : vector<8x32xbf16>, vector<32x16xbf16>, vector<8x16xf32> -> vector<8x16xf32>
    %cst_51 = arith.constant dense<0xFF800000> : vector<8xf32>
    %124 = vector.multi_reduction <maximumf>, %123, %cst_51 [1] : vector<8x16xf32> to vector<8xf32>
    %125 = vector.shape_cast %124 : vector<8xf32> to vector<8x1xf32>
    %126 = vector.broadcast %125 : vector<8x1xf32> to vector<8x16xf32>
    %127 = arith.subf %123, %126 : vector<8x16xf32>
    %128 = math.exp %127 : vector<8x16xf32>
    %cst_52 = arith.constant dense<0.000000e+00> : vector<8xf32>
    %129 = vector.multi_reduction <add>, %128, %cst_52 [1] : vector<8x16xf32> to vector<8xf32>
    %130 = vector.shape_cast %129 : vector<8xf32> to vector<8x1xf32>
    %131 = tpu.reciprocal %130 {approx = true} : vector<8x1xf32> -> vector<8x1xf32>
    %132 = vector.broadcast %131 : vector<8x1xf32> to vector<8x16xf32>
    %133 = arith.mulf %128, %132 : vector<8x16xf32>
    %134 = arith.truncf %133 : vector<8x16xf32> to vector<8x16xbf16>
    %135 = vector.extract_strided_slice %58 {offsets = [0, 96], sizes = [16, 32], strides = [1, 1]} : vector<16x128xbf16> to vector<16x32xbf16>
    %cst_53 = arith.constant dense<0.000000e+00> : vector<8x32xf32>
    %136 = tpu.matmul %134, %135, %cst_53 {dimension_numbers = #tpu.dot_dimension_numbers<[1], [0], [0], [1], [0, 0, 1, 1], [], []>} : vector<8x16xbf16>, vector<16x32xbf16>, vector<8x32xf32> -> vector<8x32xf32>
    %137 = arith.truncf %136 : vector<8x32xf32> to vector<8x32xbf16>
    %c0_54 = arith.constant 0 : index
    %c96 = arith.constant 96 : index
    %138 = vector.load %arg24[%c0_54, %c96] : memref<8x128xbf16, #tpu.memory_space<vmem>>, vector<8x32xbf16>
    tpu.vector_store %arg24[%c0_54, %c96], %137 {strides = array<i32>} : memref<8x128xbf16, #tpu.memory_space<vmem>>, vector<8x32xbf16>,
    %c0_55 = arith.constant 0 : index
    %c0_56 = arith.constant 0 : index
    %139 = vector.load %arg24[%c0_55, %c0_56] : memref<8x128xbf16, #tpu.memory_space<vmem>>, vector<8x128xbf16>
    %c0_57 = arith.constant 0 : index
    %c0_58 = arith.constant 0 : index
    %140 = vector.load %arg13[%c0_57, %c0_58] : memref<128x128xbf16, #tpu.memory_space<vmem>>, vector<128x128xbf16>
    %cst_59 = arith.constant dense<0.000000e+00> : vector<8x128xf32>
    %141 = tpu.matmul %139, %140, %cst_59 {dimension_numbers = #tpu.dot_dimension_numbers<[1], [0], [0], [1], [0, 0, 1, 1], [], []>} : vector<8x128xbf16>, vector<128x128xbf16>, vector<8x128xf32> -> vector<8x128xf32>
    %c0_60 = arith.constant 0 : index
    %c0_61 = arith.constant 0 : index
    %142 = vector.load %arg14[%c0_60, %c0_61] : memref<1x128xf32, #tpu.memory_space<vmem>>, vector<1x128xf32>
    %143 = vector.broadcast %142 : vector<1x128xf32> to vector<8x128xf32>
    %144 = arith.addf %141, %143 : vector<8x128xf32>
    %145 = arith.addf %42, %144 : vector<8x128xf32>
    %c0_62 = arith.constant 0 : index
    %c0_63 = arith.constant 0 : index
    %146 = vector.load %arg15[%c0_62, %c0_63] : memref<1x128xf32, #tpu.memory_space<vmem>>, vector<1x128xf32>
    %c0_64 = arith.constant 0 : index
    %c0_65 = arith.constant 0 : index
    %147 = vector.load %arg16[%c0_64, %c0_65] : memref<1x128xf32, #tpu.memory_space<vmem>>, vector<1x128xf32>
    %cst_66 = arith.constant dense<0.000000e+00> : vector<8xf32>
    %148 = vector.multi_reduction <add>, %145, %cst_66 [1] : vector<8x128xf32> to vector<8xf32>
    %149 = vector.shape_cast %148 : vector<8xf32> to vector<8x1xf32>
    %cst_67 = arith.constant 1.280000e+02 : f32
    %150 = vector.broadcast %cst_67 : f32 to vector<8x1xf32>
    %151 = arith.divf %149, %150 : vector<8x1xf32>
    %152 = vector.broadcast %151 : vector<8x1xf32> to vector<8x128xf32>
    %153 = arith.subf %145, %152 : vector<8x128xf32>
    %154 = arith.mulf %153, %153 : vector<8x128xf32>
    %cst_68 = arith.constant dense<0.000000e+00> : vector<8xf32>
    %155 = vector.multi_reduction <add>, %154, %cst_68 [1] : vector<8x128xf32> to vector<8xf32>
    %156 = vector.shape_cast %155 : vector<8xf32> to vector<8x1xf32>
    %cst_69 = arith.constant 1.280000e+02 : f32
    %157 = vector.broadcast %cst_69 : f32 to vector<8x1xf32>
    %158 = arith.divf %156, %157 : vector<8x1xf32>
    %159 = vector.broadcast %151 : vector<8x1xf32> to vector<8x128xf32>
    %160 = arith.subf %145, %159 : vector<8x128xf32>
    %cst_70 = arith.constant 9.99999974E-6 : f32
    %161 = vector.broadcast %cst_70 : f32 to vector<8x1xf32>
    %162 = arith.addf %158, %161 : vector<8x1xf32>
    %163 = math.rsqrt %162 : vector<8x1xf32>
    %164 = vector.broadcast %163 : vector<8x1xf32> to vector<8x128xf32>
    %165 = arith.mulf %160, %164 : vector<8x128xf32>
    %166 = vector.broadcast %146 : vector<1x128xf32> to vector<8x128xf32>
    %167 = arith.mulf %165, %166 : vector<8x128xf32>
    %168 = vector.broadcast %147 : vector<1x128xf32> to vector<8x128xf32>
    %169 = arith.addf %167, %168 : vector<8x128xf32>
    %170 = arith.truncf %169 : vector<8x128xf32> to vector<8x128xbf16>
    %c0_71 = arith.constant 0 : index
    %c0_72 = arith.constant 0 : index
    %171 = vector.load %arg17[%c0_71, %c0_72] : memref<128x512xbf16, #tpu.memory_space<vmem>>, vector<128x512xbf16>
    %cst_73 = arith.constant dense<0.000000e+00> : vector<8x512xf32>
    %172 = tpu.matmul %170, %171, %cst_73 {dimension_numbers = #tpu.dot_dimension_numbers<[1], [0], [0], [1], [0, 0, 1, 1], [], []>} : vector<8x128xbf16>, vector<128x512xbf16>, vector<8x512xf32> -> vector<8x512xf32>
    %c0_74 = arith.constant 0 : index
    %c0_75 = arith.constant 0 : index
    %173 = vector.load %arg18[%c0_74, %c0_75] : memref<1x512xf32, #tpu.memory_space<vmem>>, vector<1x512xf32>
    %174 = vector.broadcast %173 : vector<1x512xf32> to vector<8x512xf32>
    %175 = arith.addf %172, %174 : vector<8x512xf32>
    %cst_76 = arith.constant 0.000000e+00 : f32
    %176 = vector.broadcast %cst_76 : f32 to vector<8x512xf32>
    %177 = arith.maximumf %175, %176 : vector<8x512xf32>
    %178 = arith.truncf %177 : vector<8x512xf32> to vector<8x512xbf16>
    %c0_77 = arith.constant 0 : index
    %c0_78 = arith.constant 0 : index
    %179 = vector.load %arg19[%c0_77, %c0_78] : memref<512x128xbf16, #tpu.memory_space<vmem>>, vector<512x128xbf16>
    %cst_79 = arith.constant dense<0.000000e+00> : vector<8x128xf32>
    %180 = tpu.matmul %178, %179, %cst_79 {dimension_numbers = #tpu.dot_dimension_numbers<[1], [0], [0], [1], [0, 0, 1, 1], [], []>} : vector<8x512xbf16>, vector<512x128xbf16>, vector<8x128xf32> -> vector<8x128xf32>
    %c0_80 = arith.constant 0 : index
    %c0_81 = arith.constant 0 : index
    %181 = vector.load %arg20[%c0_80, %c0_81] : memref<1x128xf32, #tpu.memory_space<vmem>>, vector<1x128xf32>
    %182 = vector.broadcast %181 : vector<1x128xf32> to vector<8x128xf32>
    %183 = arith.addf %180, %182 : vector<8x128xf32>
    %184 = arith.addf %183, %169 : vector<8x128xf32>
    %c0_82 = arith.constant 0 : index
    %c0_83 = arith.constant 0 : index
    %185 = vector.load %arg21[%c0_82, %c0_83] : memref<1x128xf32, #tpu.memory_space<vmem>>, vector<1x128xf32>
    %c0_84 = arith.constant 0 : index
    %c0_85 = arith.constant 0 : index
    %186 = vector.load %arg22[%c0_84, %c0_85] : memref<1x128xf32, #tpu.memory_space<vmem>>, vector<1x128xf32>
    %cst_86 = arith.constant dense<0.000000e+00> : vector<8xf32>
    %187 = vector.multi_reduction <add>, %184, %cst_86 [1] : vector<8x128xf32> to vector<8xf32>
    %188 = vector.shape_cast %187 : vector<8xf32> to vector<8x1xf32>
    %cst_87 = arith.constant 1.280000e+02 : f32
    %189 = vector.broadcast %cst_87 : f32 to vector<8x1xf32>
    %190 = arith.divf %188, %189 : vector<8x1xf32>
    %191 = vector.broadcast %190 : vector<8x1xf32> to vector<8x128xf32>
    %192 = arith.subf %184, %191 : vector<8x128xf32>
    %193 = arith.mulf %192, %192 : vector<8x128xf32>
    %cst_88 = arith.constant dense<0.000000e+00> : vector<8xf32>
    %194 = vector.multi_reduction <add>, %193, %cst_88 [1] : vector<8x128xf32> to vector<8xf32>
    %195 = vector.shape_cast %194 : vector<8xf32> to vector<8x1xf32>
    %cst_89 = arith.constant 1.280000e+02 : f32
    %196 = vector.broadcast %cst_89 : f32 to vector<8x1xf32>
    %197 = arith.divf %195, %196 : vector<8x1xf32>
    %198 = vector.broadcast %190 : vector<8x1xf32> to vector<8x128xf32>
    %199 = arith.subf %184, %198 : vector<8x128xf32>
    %cst_90 = arith.constant 9.99999974E-6 : f32
    %200 = vector.broadcast %cst_90 : f32 to vector<8x1xf32>
    %201 = arith.addf %197, %200 : vector<8x1xf32>
    %202 = math.rsqrt %201 : vector<8x1xf32>
    %203 = vector.broadcast %202 : vector<8x1xf32> to vector<8x128xf32>
    %204 = arith.mulf %199, %203 : vector<8x128xf32>
    %205 = vector.broadcast %185 : vector<1x128xf32> to vector<8x128xf32>
    %206 = arith.mulf %204, %205 : vector<8x128xf32>
    %207 = vector.broadcast %186 : vector<1x128xf32> to vector<8x128xf32>
    %208 = arith.addf %206, %207 : vector<8x128xf32>
    %c0_91 = arith.constant 0 : index
    %c0_92 = arith.constant 0 : index
    %c0_93 = arith.constant 0 : index
    %209 = vector.load %arg23[%c0_91, %c0_92, %c0_93] : memref<1x8x128xf32, #tpu.memory_space<vmem>>, vector<1x8x128xf32>
    %210 = vector.shape_cast %209 : vector<1x8x128xf32> to vector<8x128xf32>
    %211 = vector.shape_cast %208 : vector<8x128xf32> to vector<1x8x128xf32>
    tpu.vector_store %arg23[%c0_91, %c0_92, %c0_93], %211 {strides = array<i32>} : memref<1x8x128xf32, #tpu.memory_space<vmem>>, vector<1x8x128xf32>,
    return
  }
  func.func @transform_0(%arg0: i32) -> (i32, i32, i32) {
    %c0_i32 = arith.constant 0 : i32
    %c0_i32_0 = arith.constant 0 : i32
    %c0_i32_1 = arith.constant 0 : i32
    return %arg0, %c0_i32, %c0_i32_0 : i32, i32, i32
  }
  func.func @transform_1(%arg0: i32) -> (i32, i32, i32) {
    %c0_i32 = arith.constant 0 : i32
    %c0_i32_0 = arith.constant 0 : i32
    %c0_i32_1 = arith.constant 0 : i32
    return %arg0, %c0_i32, %c0_i32_0 : i32, i32, i32
  }
  func.func @transform_2(%arg0: i32) -> (i32, i32) {
    %c0_i32 = arith.constant 0 : i32
    %c0_i32_0 = arith.constant 0 : i32
    %c0_i32_1 = arith.constant 0 : i32
    return %c0_i32, %c0_i32_0 : i32, i32
  }
  func.func @transform_3(%arg0: i32) -> (i32, i32) {
    %c0_i32 = arith.constant 0 : i32
    %c0_i32_0 = arith.constant 0 : i32
    %c0_i32_1 = arith.constant 0 : i32
    return %c0_i32, %c0_i32_0 : i32, i32
  }
  func.func @transform_4(%arg0: i32) -> (i32, i32) {
    %c0_i32 = arith.constant 0 : i32
    %c0_i32_0 = arith.constant 0 : i32
    %c0_i32_1 = arith.constant 0 : i32
    return %c0_i32, %c0_i32_0 : i32, i32
  }
  func.func @transform_5(%arg0: i32) -> (i32, i32) {
    %c0_i32 = arith.constant 0 : i32
    %c0_i32_0 = arith.constant 0 : i32
    %c0_i32_1 = arith.constant 0 : i32
    return %c0_i32, %c0_i32_0 : i32, i32
  }
  func.func @transform_6(%arg0: i32) -> (i32, i32) {
    %c0_i32 = arith.constant 0 : i32
    %c0_i32_0 = arith.constant 0 : i32
    %c0_i32_1 = arith.constant 0 : i32
    return %c0_i32, %c0_i32_0 : i32, i32
  }
  func.func @transform_7(%arg0: i32) -> (i32, i32) {
    %c0_i32 = arith.constant 0 : i32
    %c0_i32_0 = arith.constant 0 : i32
    %c0_i32_1 = arith.constant 0 : i32
    return %c0_i32, %c0_i32_0 : i32, i32
  }
  func.func @transform_8(%arg0: i32) -> (i32, i32) {
    %c0_i32 = arith.constant 0 : i32
    %c0_i32_0 = arith.constant 0 : i32
    %c0_i32_1 = arith.constant 0 : i32
    return %c0_i32, %c0_i32_0 : i32, i32
  }
  func.func @transform_9(%arg0: i32) -> (i32, i32) {
    %c0_i32 = arith.constant 0 : i32
    %c0_i32_0 = arith.constant 0 : i32
    %c0_i32_1 = arith.constant 0 : i32
    return %c0_i32, %c0_i32_0 : i32, i32
  }
  func.func @transform_10(%arg0: i32) -> (i32, i32) {
    %c0_i32 = arith.constant 0 : i32
    %c0_i32_0 = arith.constant 0 : i32
    %c0_i32_1 = arith.constant 0 : i32
    return %c0_i32, %c0_i32_0 : i32, i32
  }
  func.func @transform_11(%arg0: i32) -> (i32, i32) {
    %c0_i32 = arith.constant 0 : i32
    %c0_i32_0 = arith.constant 0 : i32
    %c0_i32_1 = arith.constant 0 : i32
    return %c0_i32, %c0_i32_0 : i32, i32
  }
  func.func @transform_12(%arg0: i32) -> (i32, i32) {
    %c0_i32 = arith.constant 0 : i32
    %c0_i32_0 = arith.constant 0 : i32
    %c0_i32_1 = arith.constant 0 : i32
    return %c0_i32, %c0_i32_0 : i32, i32
  }
  func.func @transform_13(%arg0: i32) -> (i32, i32) {
    %c0_i32 = arith.constant 0 : i32
    %c0_i32_0 = arith.constant 0 : i32
    %c0_i32_1 = arith.constant 0 : i32
    return %c0_i32, %c0_i32_0 : i32, i32
  }
  func.func @transform_14(%arg0: i32) -> (i32, i32) {
    %c0_i32 = arith.constant 0 : i32
    %c0_i32_0 = arith.constant 0 : i32
    %c0_i32_1 = arith.constant 0 : i32
    return %c0_i32, %c0_i32_0 : i32, i32
  }
  func.func @transform_15(%arg0: i32) -> (i32, i32) {
    %c0_i32 = arith.constant 0 : i32
    %c0_i32_0 = arith.constant 0 : i32
    %c0_i32_1 = arith.constant 0 : i32
    return %c0_i32, %c0_i32_0 : i32, i32
  }
  func.func @transform_16(%arg0: i32) -> (i32, i32) {
    %c0_i32 = arith.constant 0 : i32
    %c0_i32_0 = arith.constant 0 : i32
    %c0_i32_1 = arith.constant 0 : i32
    return %c0_i32, %c0_i32_0 : i32, i32
  }
  func.func @transform_17(%arg0: i32) -> (i32, i32) {
    %c0_i32 = arith.constant 0 : i32
    %c0_i32_0 = arith.constant 0 : i32
    %c0_i32_1 = arith.constant 0 : i32
    return %c0_i32, %c0_i32_0 : i32, i32
  }
  func.func @transform_18(%arg0: i32) -> (i32, i32) {
    %c0_i32 = arith.constant 0 : i32
    %c0_i32_0 = arith.constant 0 : i32
    %c0_i32_1 = arith.constant 0 : i32
    return %c0_i32, %c0_i32_0 : i32, i32
  }
  func.func @transform_19(%arg0: i32) -> (i32, i32) {
    %c0_i32 = arith.constant 0 : i32
    %c0_i32_0 = arith.constant 0 : i32
    %c0_i32_1 = arith.constant 0 : i32
    return %c0_i32, %c0_i32_0 : i32, i32
  }
  func.func @transform_20(%arg0: i32) -> (i32, i32) {
    %c0_i32 = arith.constant 0 : i32
    %c0_i32_0 = arith.constant 0 : i32
    %c0_i32_1 = arith.constant 0 : i32
    return %c0_i32, %c0_i32_0 : i32, i32
  }
  func.func @transform_21(%arg0: i32) -> (i32, i32) {
    %c0_i32 = arith.constant 0 : i32
    %c0_i32_0 = arith.constant 0 : i32
    %c0_i32_1 = arith.constant 0 : i32
    return %c0_i32, %c0_i32_0 : i32, i32
  }
  func.func @transform_22(%arg0: i32) -> (i32, i32, i32) {
    %c0_i32 = arith.constant 0 : i32
    %c0_i32_0 = arith.constant 0 : i32
    %c0_i32_1 = arith.constant 0 : i32
    return %arg0, %c0_i32, %c0_i32_0 : i32, i32, i32
  }
}

</mosaic_0001>

<llo_original>
// kernel: tpu_custom_call.1
$region0: #{tpu_custom_call.1}
  #allocation0 [shape = 'u32[]', space=smem, size = 0x4, offset = 0x4, fixed_abs, tag = 'smem constant byte address 0x4 - core index']
  #allocation1 [shape = 'u32[72,128]{1,0:T(1,128)}', space=vmem, size = 0x9000, scoped, tag = 'internal scratch']
  #allocation2 [shape = 'bf16[8,128]{1,0:T(8,128)(2,1)}', space=vmem, size = 0x800, scoped, tag = 'scratch operand']
  %s0 = inlined_call_operand.hbm [shape: f32[2,8,128], index: 0, kind: input, shape index: {}]
  %s1 = inlined_call_operand.vmem [shape: f32[2,16,128], index: 1, kind: input, shape index: {}]
  %s2 = inlined_call_operand.vmem [shape: bf16[16,8], index: 2, kind: input, shape index: {}]
  %s3 = inlined_call_operand.vmem [shape: f32[16,1], index: 3, kind: input, shape index: {}]
  %s4 = inlined_call_operand.vmem [shape: bf16[8,16], index: 4, kind: input, shape index: {}]
  %s5 = inlined_call_operand.vmem [shape: f32[8,1], index: 5, kind: input, shape index: {}]
  %s6 = inlined_call_operand.vmem [shape: f32[1,128], index: 6, kind: input, shape index: {}]
  %s7 = inlined_call_operand.vmem [shape: f32[1,128], index: 7, kind: input, shape index: {}]
  %s8 = inlined_call_operand.hbm [shape: bf16[128,128], index: 8, kind: input, shape index: {}]
  %s9 = inlined_call_operand.vmem [shape: f32[1,128], index: 9, kind: input, shape index: {}]
  %s10 = inlined_call_operand.hbm [shape: bf16[128,256], index: 10, kind: input, shape index: {}]
  %s11 = inlined_call_operand.vmem [shape: f32[1,256], index: 11, kind: input, shape index: {}]
  %s12 = inlined_call_operand.hbm [shape: bf16[128,128], index: 12, kind: input, shape index: {}]
  %s13 = inlined_call_operand.vmem [shape: f32[1,128], index: 13, kind: input, shape index: {}]
  %s14 = inlined_call_operand.vmem [shape: f32[1,128], index: 14, kind: input, shape index: {}]
  %s15 = inlined_call_operand.vmem [shape: f32[1,128], index: 15, kind: input, shape index: {}]
  %s16 = inlined_call_operand.hbm [shape: bf16[128,512], index: 16, kind: input, shape index: {}]
  %s17 = inlined_call_operand.vmem [shape: f32[1,512], index: 17, kind: input, shape index: {}]
  %s18 = inlined_call_operand.hbm [shape: bf16[512,128], index: 18, kind: input, shape index: {}]
  %s19 = inlined_call_operand.vmem [shape: f32[1,128], index: 19, kind: input, shape index: {}]
  %s20 = inlined_call_operand.vmem [shape: f32[1,128], index: 20, kind: input, shape index: {}]
  %s21 = inlined_call_operand.vmem [shape: f32[1,128], index: 21, kind: input, shape index: {}]
  %s22 = inlined_call_operand.hbm [shape: f32[2,8,128], index: 22, kind: output, shape index: {}]
  %s23 = sld [smem:[#allocation0]]
  $region145: #{tpu_custom_call.1} parent=0
    _
  %s25 = ssub.s32 1, %s23
  %s26 = scalar_select 0, %s25, %s23
  $region1: #{tpu_custom_call.1} parent=0
    #allocation3 [shape = 'u8[8192]{0}', space=vmem, size = 0x2000, scoped, tag = 'input window, operand 0']
    #allocation4 [shape = 's32[2]{0}', space=sflag, size = 0x8, scoped, tag = 'scoped memory for tpu_custom_call.1']
    #allocation5 [shape = 's32[2]{0}', space=sflag, size = 0x8, scoped, tag = 'scoped memory for tpu_custom_call.1']
    #allocation6 [shape = 'u8[32768]{0}', space=vmem, size = 0x8000, scoped, tag = 'input window, operand 8, single buffered']
    #allocation7 [shape = 's32[1]{0}', space=sflag, size = 0x4, scoped, tag = 'scoped memory for tpu_custom_call.1']
    #allocation8 [shape = 'u8[65536]{0}', space=vmem, size = 0x10000, scoped, tag = 'input window, operand 10, single buffered']
    #allocation9 [shape = 'u8[32768]{0}', space=vmem, size = 0x8000, scoped, tag = 'input window, operand 12, single buffered']
    #allocation10 [shape = 's32[1]{0}', space=sflag, size = 0x4, scoped, tag = 'scoped memory for tpu_custom_call.1']
    #allocation11 [shape = 'u8[131072]{0}', space=vmem, size = 0x20000, scoped, tag = 'input window, operand 16, single buffered']
    #allocation12 [shape = 'u8[131072]{0}', space=vmem, size = 0x20000, scoped, tag = 'input window, operand 18, single buffered']
    #allocation13 [shape = 's32[1]{0}', space=sflag, size = 0x4, scoped, tag = 'scoped memory for tpu_custom_call.1']
    #allocation14 [shape = 'u8[8192]{0}', space=vmem, size = 0x2000, scoped, tag = 'output window, operand 0']
    %27 = vsyncpa [#allocation4], 0
    %s28 = scalar_lea.sflag [#allocation4], 1
    %29 = vsyncpa %s28, 0
    %30 = vsyncpa [#allocation7], 0
    %31 = vsyncpa [#allocation10], 0
    %32 = vsyncpa [#allocation13], 0
    %33 = vsyncpa [#allocation5], 0
    %s34 = scalar_lea.sflag [#allocation5], 1
    %35 = vsyncpa %s34, 0
    loop: start=0, step=1, limit=4
    $region2: #{tpu_custom_call.1} parent=1 // loop_pre_header
      _
    $region3: #{tpu_custom_call.1} parent=1 // loop_header
      %s37 = sphi 0, %s41
      %p38 = scmp.ge.s32.totalorder %s37, 4
      %s47 = sphi 0, %s49
      %s50 = sphi 0, %s47
      %s51 = sphi 0, %s50
      %s67 = sphi 0, %s51
      %s73 = sphi 0, %s75
      %s76 = sphi 0, %s73
      %s77 = sphi 0, %s76
      %s93 = sphi 0, %s77
      %s97 = sphi 0, %s97
      %s99 = sphi 0, %s97
      %s100 = sphi 0, %s99
      %s114 = sphi 0, %s100
      %s118 = sphi 0, %s118
      %s120 = sphi 0, %s118
      %s121 = sphi 0, %s120
      %s135 = sphi 0, %s121
      %s139 = sphi 0, %s139
      %s141 = sphi 0, %s139
      %s142 = sphi 0, %s141
      %s156 = sphi 0, %s142
      %s160 = sphi 0, %s160
      %s162 = sphi 0, %s160
      %s163 = sphi 0, %s162
      %s177 = sphi 0, %s163
      %s181 = sphi 0, %s181
      %s183 = sphi 0, %s181
      %s184 = sphi 0, %s183
      %s198 = sphi 0, %s184
      %s202 = sphi 0, %s202
      %s204 = sphi 0, %s202
      %s205 = sphi 0, %s204
      %s219 = sphi 0, %s205
      %s223 = sphi 0, %s223
      %s225 = sphi 0, %s223
      %s226 = sphi 0, %s225
      %s240 = sphi 0, %s226
      %s244 = sphi 0, %s244
      %s246 = sphi 0, %s244
      %s247 = sphi 0, %s246
      %s261 = sphi 0, %s247
      %s265 = sphi 0, %s265
      %s267 = sphi 0, %s265
      %s268 = sphi 0, %s267
      %s282 = sphi 0, %s268
      %s286 = sphi 0, %s286
      %s288 = sphi 0, %s286
      %s289 = sphi 0, %s288
      %s303 = sphi 0, %s289
      %s307 = sphi 0, %s307
      %s309 = sphi 0, %s307
      %s310 = sphi 0, %s309
      %s324 = sphi 0, %s310
      %s328 = sphi 0, %s328
      %s330 = sphi 0, %s328
      %s331 = sphi 0, %s330
      %s345 = sphi 0, %s331
      %s349 = sphi 0, %s349
      %s351 = sphi 0, %s349
      %s352 = sphi 0, %s351
      %s366 = sphi 0, %s352
      %s370 = sphi 0, %s370
      %s372 = sphi 0, %s370
      %s373 = sphi 0, %s372
      %s387 = sphi 0, %s373
      %s391 = sphi 0, %s391
      %s393 = sphi 0, %s391
      %s394 = sphi 0, %s393
      %s408 = sphi 0, %s394
      %s412 = sphi 0, %s412
      %s414 = sphi 0, %s412
      %s415 = sphi 0, %s414
      %s429 = sphi 0, %s415
      %s433 = sphi 0, %s433
      %s435 = sphi 0, %s433
      %s436 = sphi 0, %s435
      %s450 = sphi 0, %s436
      %s454 = sphi 0, %s454
      %s456 = sphi 0, %s454
      %s457 = sphi 0, %s456
      %s471 = sphi 0, %s457
      %s475 = sphi 0, %s475
      %s477 = sphi 0, %s475
      %s478 = sphi 0, %s477
      %s492 = sphi 0, %s478
      %s496 = sphi 0, %s496
      %s498 = sphi 0, %s496
      %s499 = sphi 0, %s498
      %s513 = sphi 0, %s499
      %s519 = sphi 0, %s521
      %s522 = sphi 0, %s519
      %s523 = sphi 0, %s522
      %s539 = sphi 0, %s523
    $region4: #{tpu_custom_call.1} parent=1 // loop_header_branch
      %40 = sbr.rel (%p38) target = $region8
    $region5: #{tpu_custom_call.1} parent=1 // loop_body
      %s42 = ssub.s32 %s37, 1
      %s43 = ssub.s32 %s37, 2
      %s44 = sadd.s32 %s37, 1
      %s45 = ssub.s32 %s37, %s44
      %p46 = scmp.eq.s32.totalorder %s45, 0
      %s48 = sadd.s32 %s47, 1
      %s49 = scalar_select %p46, %s47, %s48
      %p52 = pneg %p46
      %p53 = scmp.eq.s32.totalorder %s37, 1
      %p54 = por %p52, %p53
      %p55 = scmp.ne.s32.totalorder %s47, %s50
      %p56 = scmp.eq.s32.totalorder %s37, 0
      %p57 = por %p55, %p56
      %p58 = scmp.ne.s32.totalorder %s47, %s50
      %p59 = scmp.eq.s32.totalorder %s42, 1
      %p60 = por %p58, %p59
      %p61 = scmp.ne.s32.totalorder %s50, %s51
      %p62 = scmp.eq.s32.totalorder %s42, 0
      %p63 = por %p61, %p62
      %p64 = scmp.ne.s32.totalorder %s50, %s51
      %p65 = scmp.eq.s32.totalorder %s43, 1
      %p66 = por %p64, %p65
      %p68 = scmp.ne.s32.totalorder %s51, %s67
      %p69 = scmp.eq.s32.totalorder %s43, 0
      %p70 = por %p68, %p69
      %s71 = ssub.s32 %s37, %s44
      %p72 = scmp.eq.s32.totalorder %s71, 0
      %s74 = sadd.s32 %s73, 1
      %s75 = scalar_select %p72, %s73, %s74
      %p78 = pneg %p72
      %p79 = scmp.eq.s32.totalorder %s37, 1
      %p80 = por %p78, %p79
      %p81 = scmp.ne.s32.totalorder %s73, %s76
      %p82 = scmp.eq.s32.totalorder %s37, 0
      %p83 = por %p81, %p82
      %p84 = scmp.ne.s32.totalorder %s73, %s76
      %p85 = scmp.eq.s32.totalorder %s42, 1
      %p86 = por %p84, %p85
      %p87 = scmp.ne.s32.totalorder %s76, %s77
      %p88 = scmp.eq.s32.totalorder %s42, 0
      %p89 = por %p87, %p88
      %p90 = scmp.ne.s32.totalorder %s76, %s77
      %p91 = scmp.eq.s32.totalorder %s43, 1
      %p92 = por %p90, %p91
      %p94 = scmp.ne.s32.totalorder %s77, %s93
      %p95 = scmp.eq.s32.totalorder %s43, 0
      %p96 = por %p94, %p95
      %s98 = sadd.s32 %s97, 1
      %p101 = scmp.eq.s32.totalorder %s37, 1
      %p102 = scmp.ne.s32.totalorder %s97, %s99
      %p103 = scmp.eq.s32.totalorder %s37, 0
      %p104 = por %p102, %p103
      %p105 = scmp.ne.s32.totalorder %s97, %s99
      %p106 = scmp.eq.s32.totalorder %s42, 1
      %p107 = por %p105, %p106
      %p108 = scmp.ne.s32.totalorder %s99, %s100
      %p109 = scmp.eq.s32.totalorder %s42, 0
      %p110 = por %p108, %p109
      %p111 = scmp.ne.s32.totalorder %s99, %s100
      %p112 = scmp.eq.s32.totalorder %s43, 1
      %p113 = por %p111, %p112
      %p115 = scmp.ne.s32.totalorder %s100, %s114
      %p116 = scmp.eq.s32.totalorder %s43, 0
      %p117 = por %p115, %p116
      %s119 = sadd.s32 %s118, 1
      %p122 = scmp.eq.s32.totalorder %s37, 1
      %p123 = scmp.ne.s32.totalorder %s118, %s120
      %p124 = scmp.eq.s32.totalorder %s37, 0
      %p125 = por %p123, %p124
      %p126 = scmp.ne.s32.totalorder %s118, %s120
      %p127 = scmp.eq.s32.totalorder %s42, 1
      %p128 = por %p126, %p127
      %p129 = scmp.ne.s32.totalorder %s120, %s121
      %p130 = scmp.eq.s32.totalorder %s42, 0
      %p131 = por %p129, %p130
      %p132 = scmp.ne.s32.totalorder %s120, %s121
      %p133 = scmp.eq.s32.totalorder %s43, 1
      %p134 = por %p132, %p133
      %p136 = scmp.ne.s32.totalorder %s121, %s135
      %p137 = scmp.eq.s32.totalorder %s43, 0
      %p138 = por %p136, %p137
      %s140 = sadd.s32 %s139, 1
      %p143 = scmp.eq.s32.totalorder %s37, 1
      %p144 = scmp.ne.s32.totalorder %s139, %s141
      %p145 = scmp.eq.s32.totalorder %s37, 0
      %p146 = por %p144, %p145
      %p147 = scmp.ne.s32.totalorder %s139, %s141
      %p148 = scmp.eq.s32.totalorder %s42, 1
      %p149 = por %p147, %p148
      %p150 = scmp.ne.s32.totalorder %s141, %s142
      %p151 = scmp.eq.s32.totalorder %s42, 0
      %p152 = por %p150, %p151
      %p153 = scmp.ne.s32.totalorder %s141, %s142
      %p154 = scmp.eq.s32.totalorder %s43, 1
      %p155 = por %p153, %p154
      %p157 = scmp.ne.s32.totalorder %s142, %s156
      %p158 = scmp.eq.s32.totalorder %s43, 0
      %p159 = por %p157, %p158
      %s161 = sadd.s32 %s160, 1
      %p164 = scmp.eq.s32.totalorder %s37, 1
      %p165 = scmp.ne.s32.totalorder %s160, %s162
      %p166 = scmp.eq.s32.totalorder %s37, 0
      %p167 = por %p165, %p166
      %p168 = scmp.ne.s32.totalorder %s160, %s162
      %p169 = scmp.eq.s32.totalorder %s42, 1
      %p170 = por %p168, %p169
      %p171 = scmp.ne.s32.totalorder %s162, %s163
      %p172 = scmp.eq.s32.totalorder %s42, 0
      %p173 = por %p171, %p172
      %p174 = scmp.ne.s32.totalorder %s162, %s163
      %p175 = scmp.eq.s32.totalorder %s43, 1
      %p176 = por %p174, %p175
      %p178 = scmp.ne.s32.totalorder %s163, %s177
      %p179 = scmp.eq.s32.totalorder %s43, 0
      %p180 = por %p178, %p179
      %s182 = sadd.s32 %s181, 1
      %p185 = scmp.eq.s32.totalorder %s37, 1
      %p186 = scmp.ne.s32.totalorder %s181, %s183
      %p187 = scmp.eq.s32.totalorder %s37, 0
      %p188 = por %p186, %p187
      %p189 = scmp.ne.s32.totalorder %s181, %s183
      %p190 = scmp.eq.s32.totalorder %s42, 1
      %p191 = por %p189, %p190
      %p192 = scmp.ne.s32.totalorder %s183, %s184
      %p193 = scmp.eq.s32.totalorder %s42, 0
      %p194 = por %p192, %p193
      %p195 = scmp.ne.s32.totalorder %s183, %s184
      %p196 = scmp.eq.s32.totalorder %s43, 1
      %p197 = por %p195, %p196
      %p199 = scmp.ne.s32.totalorder %s184, %s198
      %p200 = scmp.eq.s32.totalorder %s43, 0
      %p201 = por %p199, %p200
      %s203 = sadd.s32 %s202, 1
      %p206 = scmp.eq.s32.totalorder %s37, 1
      %p207 = scmp.ne.s32.totalorder %s202, %s204
      %p208 = scmp.eq.s32.totalorder %s37, 0
      %p209 = por %p207, %p208
      %p210 = scmp.ne.s32.totalorder %s202, %s204
      %p211 = scmp.eq.s32.totalorder %s42, 1
      %p212 = por %p210, %p211
      %p213 = scmp.ne.s32.totalorder %s204, %s205
      %p214 = scmp.eq.s32.totalorder %s42, 0
      %p215 = por %p213, %p214
      %p216 = scmp.ne.s32.totalorder %s204, %s205
      %p217 = scmp.eq.s32.totalorder %s43, 1
      %p218 = por %p216, %p217
      %p220 = scmp.ne.s32.totalorder %s205, %s219
      %p221 = scmp.eq.s32.totalorder %s43, 0
      %p222 = por %p220, %p221
      %s224 = sadd.s32 %s223, 1
      %p227 = scmp.eq.s32.totalorder %s37, 1
      %p228 = scmp.ne.s32.totalorder %s223, %s225
      %p229 = scmp.eq.s32.totalorder %s37, 0
      %p230 = por %p228, %p229
      %p231 = scmp.ne.s32.totalorder %s223, %s225
      %p232 = scmp.eq.s32.totalorder %s42, 1
      %p233 = por %p231, %p232
      %p234 = scmp.ne.s32.totalorder %s225, %s226
      %p235 = scmp.eq.s32.totalorder %s42, 0
      %p236 = por %p234, %p235
      %p237 = scmp.ne.s32.totalorder %s225, %s226
      %p238 = scmp.eq.s32.totalorder %s43, 1
      %p239 = por %p237, %p238
      %p241 = scmp.ne.s32.totalorder %s226, %s240
      %p242 = scmp.eq.s32.totalorder %s43, 0
      %p243 = por %p241, %p242
      %s245 = sadd.s32 %s244, 1
      %p248 = scmp.eq.s32.totalorder %s37, 1
      %p249 = scmp.ne.s32.totalorder %s244, %s246
      %p250 = scmp.eq.s32.totalorder %s37, 0
      %p251 = por %p249, %p250
      %p252 = scmp.ne.s32.totalorder %s244, %s246
      %p253 = scmp.eq.s32.totalorder %s42, 1
      %p254 = por %p252, %p253
      %p255 = scmp.ne.s32.totalorder %s246, %s247
      %p256 = scmp.eq.s32.totalorder %s42, 0
      %p257 = por %p255, %p256
      %p258 = scmp.ne.s32.totalorder %s246, %s247
      %p259 = scmp.eq.s32.totalorder %s43, 1
      %p260 = por %p258, %p259
      %p262 = scmp.ne.s32.totalorder %s247, %s261
      %p263 = scmp.eq.s32.totalorder %s43, 0
      %p264 = por %p262, %p263
      %s266 = sadd.s32 %s265, 1
      %p269 = scmp.eq.s32.totalorder %s37, 1
      %p270 = scmp.ne.s32.totalorder %s265, %s267
      %p271 = scmp.eq.s32.totalorder %s37, 0
      %p272 = por %p270, %p271
      %p273 = scmp.ne.s32.totalorder %s265, %s267
      %p274 = scmp.eq.s32.totalorder %s42, 1
      %p275 = por %p273, %p274
      %p276 = scmp.ne.s32.totalorder %s267, %s268
      %p277 = scmp.eq.s32.totalorder %s42, 0
      %p278 = por %p276, %p277
      %p279 = scmp.ne.s32.totalorder %s267, %s268
      %p280 = scmp.eq.s32.totalorder %s43, 1
      %p281 = por %p279, %p280
      %p283 = scmp.ne.s32.totalorder %s268, %s282
      %p284 = scmp.eq.s32.totalorder %s43, 0
      %p285 = por %p283, %p284
      %s287 = sadd.s32 %s286, 1
      %p290 = scmp.eq.s32.totalorder %s37, 1
      %p291 = scmp.ne.s32.totalorder %s286, %s288
      %p292 = scmp.eq.s32.totalorder %s37, 0
      %p293 = por %p291, %p292
      %p294 = scmp.ne.s32.totalorder %s286, %s288
      %p295 = scmp.eq.s32.totalorder %s42, 1
      %p296 = por %p294, %p295
      %p297 = scmp.ne.s32.totalorder %s288, %s289
      %p298 = scmp.eq.s32.totalorder %s42, 0
      %p299 = por %p297, %p298
      %p300 = scmp.ne.s32.totalorder %s288, %s289
      %p301 = scmp.eq.s32.totalorder %s43, 1
      %p302 = por %p300, %p301
      %p304 = scmp.ne.s32.totalorder %s289, %s303
      %p305 = scmp.eq.s32.totalorder %s43, 0
      %p306 = por %p304, %p305
      %s308 = sadd.s32 %s307, 1
      %p311 = scmp.eq.s32.totalorder %s37, 1
      %p312 = scmp.ne.s32.totalorder %s307, %s309
      %p313 = scmp.eq.s32.totalorder %s37, 0
      %p314 = por %p312, %p313
      %p315 = scmp.ne.s32.totalorder %s307, %s309
      %p316 = scmp.eq.s32.totalorder %s42, 1
      %p317 = por %p315, %p316
      %p318 = scmp.ne.s32.totalorder %s309, %s310
      %p319 = scmp.eq.s32.totalorder %s42, 0
      %p320 = por %p318, %p319
      %p321 = scmp.ne.s32.totalorder %s309, %s310
      %p322 = scmp.eq.s32.totalorder %s43, 1
      %p323 = por %p321, %p322
      %p325 = scmp.ne.s32.totalorder %s310, %s324
      %p326 = scmp.eq.s32.totalorder %s43, 0
      %p327 = por %p325, %p326
      %s329 = sadd.s32 %s328, 1
      %p332 = scmp.eq.s32.totalorder %s37, 1
      %p333 = scmp.ne.s32.totalorder %s328, %s330
      %p334 = scmp.eq.s32.totalorder %s37, 0
      %p335 = por %p333, %p334
      %p336 = scmp.ne.s32.totalorder %s328, %s330
      %p337 = scmp.eq.s32.totalorder %s42, 1
      %p338 = por %p336, %p337
      %p339 = scmp.ne.s32.totalorder %s330, %s331
      %p340 = scmp.eq.s32.totalorder %s42, 0
      %p341 = por %p339, %p340
      %p342 = scmp.ne.s32.totalorder %s330, %s331
      %p343 = scmp.eq.s32.totalorder %s43, 1
      %p344 = por %p342, %p343
      %p346 = scmp.ne.s32.totalorder %s331, %s345
      %p347 = scmp.eq.s32.totalorder %s43, 0
      %p348 = por %p346, %p347
      %s350 = sadd.s32 %s349, 1
      %p353 = scmp.eq.s32.totalorder %s37, 1
      %p354 = scmp.ne.s32.totalorder %s349, %s351
      %p355 = scmp.eq.s32.totalorder %s37, 0
      %p356 = por %p354, %p355
      %p357 = scmp.ne.s32.totalorder %s349, %s351
      %p358 = scmp.eq.s32.totalorder %s42, 1
      %p359 = por %p357, %p358
      %p360 = scmp.ne.s32.totalorder %s351, %s352
      %p361 = scmp.eq.s32.totalorder %s42, 0
      %p362 = por %p360, %p361
      %p363 = scmp.ne.s32.totalorder %s351, %s352
      %p364 = scmp.eq.s32.totalorder %s43, 1
      %p365 = por %p363, %p364
      %p367 = scmp.ne.s32.totalorder %s352, %s366
      %p368 = scmp.eq.s32.totalorder %s43, 0
      %p369 = por %p367, %p368
      %s371 = sadd.s32 %s370, 1
      %p374 = scmp.eq.s32.totalorder %s37, 1
      %p375 = scmp.ne.s32.totalorder %s370, %s372
      %p376 = scmp.eq.s32.totalorder %s37, 0
      %p377 = por %p375, %p376
      %p378 = scmp.ne.s32.totalorder %s370, %s372
      %p379 = scmp.eq.s32.totalorder %s42, 1
      %p380 = por %p378, %p379
      %p381 = scmp.ne.s32.totalorder %s372, %s373
      %p382 = scmp.eq.s32.totalorder %s42, 0
      %p383 = por %p381, %p382
      %p384 = scmp.ne.s32.totalorder %s372, %s373
      %p385 = scmp.eq.s32.totalorder %s43, 1
      %p386 = por %p384, %p385
      %p388 = scmp.ne.s32.totalorder %s373, %s387
      %p389 = scmp.eq.s32.totalorder %s43, 0
      %p390 = por %p388, %p389
      %s392 = sadd.s32 %s391, 1
      %p395 = scmp.eq.s32.totalorder %s37, 1
      %p396 = scmp.ne.s32.totalorder %s391, %s393
      %p397 = scmp.eq.s32.totalorder %s37, 0
      %p398 = por %p396, %p397
      %p399 = scmp.ne.s32.totalorder %s391, %s393
      %p400 = scmp.eq.s32.totalorder %s42, 1
      %p401 = por %p399, %p400
      %p402 = scmp.ne.s32.totalorder %s393, %s394
      %p403 = scmp.eq.s32.totalorder %s42, 0
      %p404 = por %p402, %p403
      %p405 = scmp.ne.s32.totalorder %s393, %s394
      %p406 = scmp.eq.s32.totalorder %s43, 1
      %p407 = por %p405, %p406
      %p409 = scmp.ne.s32.totalorder %s394, %s408
      %p410 = scmp.eq.s32.totalorder %s43, 0
      %p411 = por %p409, %p410
      %s413 = sadd.s32 %s412, 1
      %p416 = scmp.eq.s32.totalorder %s37, 1
      %p417 = scmp.ne.s32.totalorder %s412, %s414
      %p418 = scmp.eq.s32.totalorder %s37, 0
      %p419 = por %p417, %p418
      %p420 = scmp.ne.s32.totalorder %s412, %s414
      %p421 = scmp.eq.s32.totalorder %s42, 1
      %p422 = por %p420, %p421
      %p423 = scmp.ne.s32.totalorder %s414, %s415
      %p424 = scmp.eq.s32.totalorder %s42, 0
      %p425 = por %p423, %p424
      %p426 = scmp.ne.s32.totalorder %s414, %s415
      %p427 = scmp.eq.s32.totalorder %s43, 1
      %p428 = por %p426, %p427
      %p430 = scmp.ne.s32.totalorder %s415, %s429
      %p431 = scmp.eq.s32.totalorder %s43, 0
      %p432 = por %p430, %p431
      %s434 = sadd.s32 %s433, 1
      %p437 = scmp.eq.s32.totalorder %s37, 1
      %p438 = scmp.ne.s32.totalorder %s433, %s435
      %p439 = scmp.eq.s32.totalorder %s37, 0
      %p440 = por %p438, %p439
      %p441 = scmp.ne.s32.totalorder %s433, %s435
      %p442 = scmp.eq.s32.totalorder %s42, 1
      %p443 = por %p441, %p442
      %p444 = scmp.ne.s32.totalorder %s435, %s436
      %p445 = scmp.eq.s32.totalorder %s42, 0
      %p446 = por %p444, %p445
      %p447 = scmp.ne.s32.totalorder %s435, %s436
      %p448 = scmp.eq.s32.totalorder %s43, 1
      %p449 = por %p447, %p448
      %p451 = scmp.ne.s32.totalorder %s436, %s450
      %p452 = scmp.eq.s32.totalorder %s43, 0
      %p453 = por %p451, %p452
      %s455 = sadd.s32 %s454, 1
      %p458 = scmp.eq.s32.totalorder %s37, 1
      %p459 = scmp.ne.s32.totalorder %s454, %s456
      %p460 = scmp.eq.s32.totalorder %s37, 0
      %p461 = por %p459, %p460
      %p462 = scmp.ne.s32.totalorder %s454, %s456
      %p463 = scmp.eq.s32.totalorder %s42, 1
      %p464 = por %p462, %p463
      %p465 = scmp.ne.s32.totalorder %s456, %s457
      %p466 = scmp.eq.s32.totalorder %s42, 0
      %p467 = por %p465, %p466
      %p468 = scmp.ne.s32.totalorder %s456, %s457
      %p469 = scmp.eq.s32.totalorder %s43, 1
      %p470 = por %p468, %p469
      %p472 = scmp.ne.s32.totalorder %s457, %s471
      %p473 = scmp.eq.s32.totalorder %s43, 0
      %p474 = por %p472, %p473
      %s476 = sadd.s32 %s475, 1
      %p479 = scmp.eq.s32.totalorder %s37, 1
      %p480 = scmp.ne.s32.totalorder %s475, %s477
      %p481 = scmp.eq.s32.totalorder %s37, 0
      %p482 = por %p480, %p481
      %p483 = scmp.ne.s32.totalorder %s475, %s477
      %p484 = scmp.eq.s32.totalorder %s42, 1
      %p485 = por %p483, %p484
      %p486 = scmp.ne.s32.totalorder %s477, %s478
      %p487 = scmp.eq.s32.totalorder %s42, 0
      %p488 = por %p486, %p487
      %p489 = scmp.ne.s32.totalorder %s477, %s478
      %p490 = scmp.eq.s32.totalorder %s43, 1
      %p491 = por %p489, %p490
      %p493 = scmp.ne.s32.totalorder %s478, %s492
      %p494 = scmp.eq.s32.totalorder %s43, 0
      %p495 = por %p493, %p494
      %s497 = sadd.s32 %s496, 1
      %p500 = scmp.eq.s32.totalorder %s37, 1
      %p501 = scmp.ne.s32.totalorder %s496, %s498
      %p502 = scmp.eq.s32.totalorder %s37, 0
      %p503 = por %p501, %p502
      %p504 = scmp.ne.s32.totalorder %s496, %s498
      %p505 = scmp.eq.s32.totalorder %s42, 1
      %p506 = por %p504, %p505
      %p507 = scmp.ne.s32.totalorder %s498, %s499
      %p508 = scmp.eq.s32.totalorder %s42, 0
      %p509 = por %p507, %p508
      %p510 = scmp.ne.s32.totalorder %s498, %s499
      %p511 = scmp.eq.s32.totalorder %s43, 1
      %p512 = por %p510, %p511
      %p514 = scmp.ne.s32.totalorder %s499, %s513
      %p515 = scmp.eq.s32.totalorder %s43, 0
      %p516 = por %p514, %p515
      %s517 = ssub.s32 %s37, %s44
      %p518 = scmp.eq.s32.totalorder %s517, 0
      %s520 = sadd.s32 %s519, 1
      %s521 = scalar_select %p518, %s519, %s520
      %p524 = pneg %p518
      %p525 = scmp.eq.s32.totalorder %s37, 1
      %p526 = por %p524, %p525
      %p527 = scmp.ne.s32.totalorder %s519, %s522
      %p528 = scmp.eq.s32.totalorder %s37, 0
      %p529 = por %p527, %p528
      %p530 = scmp.ne.s32.totalorder %s519, %s522
      %p531 = scmp.eq.s32.totalorder %s42, 1
      %p532 = por %p530, %p531
      %p533 = scmp.ne.s32.totalorder %s522, %s523
      %p534 = scmp.eq.s32.totalorder %s42, 0
      %p535 = por %p533, %p534
      %p536 = scmp.ne.s32.totalorder %s522, %s523
      %p537 = scmp.eq.s32.totalorder %s43, 1
      %p538 = por %p536, %p537
      %p540 = scmp.ne.s32.totalorder %s523, %s539
      %p541 = scmp.eq.s32.totalorder %s43, 0
      %p542 = por %p540, %p541
      %p543 = scmp.le.s32.totalorder 1, %s37
      %p544 = scmp.lt.s32.totalorder %s37, 3
      %p545 = pnand %p543, %p544
      %p546 = pneg %p545
      // Predicated region
      $region9: #{tpu_custom_call.1} parent=5 // pred_check
        _
      $region10: #{tpu_custom_call.1} parent=5 // pred_check_branch
        %548 = sbr.rel (%p545) target = $region12
      $region11: #{tpu_custom_call.1} parent=5 // pred_region
        %s549 = ssub.s32 %s37, 1
        // Predicated region
        $region13: #{tpu_custom_call.1} parent=11 // pred_check
          %p550 = pneg %p110
        $region14: #{tpu_custom_call.1} parent=11 // pred_check_branch
          %552 = sbr.rel (%p550) target = $region16
        $region15: #{tpu_custom_call.1} parent=11 // pred_region
          _
        $region16: #{tpu_custom_call.1} parent=11 // pred_fallthru
          _
        // Predicated region
        $region17: #{tpu_custom_call.1} parent=11 // pred_check
          %p553 = pneg %p131
        $region18: #{tpu_custom_call.1} parent=11 // pred_check_branch
          %555 = sbr.rel (%p553) target = $region20
        $region19: #{tpu_custom_call.1} parent=11 // pred_region
          _
        $region20: #{tpu_custom_call.1} parent=11 // pred_fallthru
          _
        // Predicated region
        $region21: #{tpu_custom_call.1} parent=11 // pred_check
          %p556 = pneg %p152
        $region22: #{tpu_custom_call.1} parent=11 // pred_check_branch
          %558 = sbr.rel (%p556) target = $region24
        $region23: #{tpu_custom_call.1} parent=11 // pred_region
          _
        $region24: #{tpu_custom_call.1} parent=11 // pred_fallthru
          _
        // Predicated region
        $region25: #{tpu_custom_call.1} parent=11 // pred_check
          %p559 = pneg %p173
        $region26: #{tpu_custom_call.1} parent=11 // pred_check_branch
          %561 = sbr.rel (%p559) target = $region28
        $region27: #{tpu_custom_call.1} parent=11 // pred_region
          _
        $region28: #{tpu_custom_call.1} parent=11 // pred_fallthru
          _
        // Predicated region
        $region29: #{tpu_custom_call.1} parent=11 // pred_check
          %p562 = pneg %p194
        $region30: #{tpu_custom_call.1} parent=11 // pred_check_branch
          %564 = sbr.rel (%p562) target = $region32
        $region31: #{tpu_custom_call.1} parent=11 // pred_region
          _
        $region32: #{tpu_custom_call.1} parent=11 // pred_fallthru
          _
        // Predicated region
        $region33: #{tpu_custom_call.1} parent=11 // pred_check
          %p565 = pneg %p215
        $region34: #{tpu_custom_call.1} parent=11 // pred_check_branch
          %567 = sbr.rel (%p565) target = $region36
        $region35: #{tpu_custom_call.1} parent=11 // pred_region
          _
        $region36: #{tpu_custom_call.1} parent=11 // pred_fallthru
          _
        // Predicated region
        $region37: #{tpu_custom_call.1} parent=11 // pred_check
          %p568 = pneg %p236
        $region38: #{tpu_custom_call.1} parent=11 // pred_check_branch
          %570 = sbr.rel (%p568) target = $region40
        $region39: #{tpu_custom_call.1} parent=11 // pred_region
          %572 = vsyncadd [#allocation7], 0
          %s573 = sshll.u32 %s8, 4
          %s574 = int_to_ptr.hbm [resolvable:$true] %s573
          %s575 = sshll.u32 [#allocation6], 4
          %s576 = int_to_ptr.vmem [resolvable:$true] %s575
          %581 = dma.hbm_to_vmem [thread:$0]  %s574, 1024, %s576, [#allocation7], 64, 64, 4
        $region40: #{tpu_custom_call.1} parent=11 // pred_fallthru
          _
        // Predicated region
        $region41: #{tpu_custom_call.1} parent=11 // pred_check
          %p582 = pneg %p257
        $region42: #{tpu_custom_call.1} parent=11 // pred_check_branch
          %584 = sbr.rel (%p582) target = $region44
        $region43: #{tpu_custom_call.1} parent=11 // pred_region
          _
        $region44: #{tpu_custom_call.1} parent=11 // pred_fallthru
          _
        // Predicated region
        $region45: #{tpu_custom_call.1} parent=11 // pred_check
          %p585 = pneg %p278
        $region46: #{tpu_custom_call.1} parent=11 // pred_check_branch
          %587 = sbr.rel (%p585) target = $region48
        $region47: #{tpu_custom_call.1} parent=11 // pred_region
          %589 = vsyncadd [#allocation7], 0
          %s590 = sshll.u32 %s10, 4
          %s591 = int_to_ptr.hbm [resolvable:$true] %s590
          %s592 = sshll.u32 [#allocation8], 4
          %s593 = int_to_ptr.vmem [resolvable:$true] %s592
          %598 = dma.hbm_to_vmem [thread:$0]  %s591, 2048, %s593, [#allocation7], 128, 128, 8
        $region48: #{tpu_custom_call.1} parent=11 // pred_fallthru
          _
        // Predicated region
        $region49: #{tpu_custom_call.1} parent=11 // pred_check
          %p599 = pneg %p299
        $region50: #{tpu_custom_call.1} parent=11 // pred_check_branch
          %601 = sbr.rel (%p599) target = $region52
        $region51: #{tpu_custom_call.1} parent=11 // pred_region
          _
        $region52: #{tpu_custom_call.1} parent=11 // pred_fallthru
          _
        // Predicated region
        $region53: #{tpu_custom_call.1} parent=11 // pred_check
          %p602 = pneg %p320
        $region54: #{tpu_custom_call.1} parent=11 // pred_check_branch
          %604 = sbr.rel (%p602) target = $region56
        $region55: #{tpu_custom_call.1} parent=11 // pred_region
          %606 = vsyncadd [#allocation10], 0
          %s607 = sshll.u32 %s12, 4
          %s608 = int_to_ptr.hbm [resolvable:$true] %s607
          %s609 = sshll.u32 [#allocation9], 4
          %s610 = int_to_ptr.vmem [resolvable:$true] %s609
          %615 = dma.hbm_to_vmem [thread:$0]  %s608, 1024, %s610, [#allocation10], 64, 64, 4
        $region56: #{tpu_custom_call.1} parent=11 // pred_fallthru
          _
        // Predicated region
        $region57: #{tpu_custom_call.1} parent=11 // pred_check
          %p616 = pneg %p341
        $region58: #{tpu_custom_call.1} parent=11 // pred_check_branch
          %618 = sbr.rel (%p616) target = $region60
        $region59: #{tpu_custom_call.1} parent=11 // pred_region
          _
        $region60: #{tpu_custom_call.1} parent=11 // pred_fallthru
          _
        // Predicated region
        $region61: #{tpu_custom_call.1} parent=11 // pred_check
          %p619 = pneg %p362
        $region62: #{tpu_custom_call.1} parent=11 // pred_check_branch
          %621 = sbr.rel (%p619) target = $region64
        $region63: #{tpu_custom_call.1} parent=11 // pred_region
          _
        $region64: #{tpu_custom_call.1} parent=11 // pred_fallthru
          _
        // Predicated region
        $region65: #{tpu_custom_call.1} parent=11 // pred_check
          %p622 = pneg %p383
        $region66: #{tpu_custom_call.1} parent=11 // pred_check_branch
          %624 = sbr.rel (%p622) target = $region68
        $region67: #{tpu_custom_call.1} parent=11 // pred_region
          _
        $region68: #{tpu_custom_call.1} parent=11 // pred_fallthru
          _
        // Predicated region
        $region69: #{tpu_custom_call.1} parent=11 // pred_check
          %p625 = pneg %p404
        $region70: #{tpu_custom_call.1} parent=11 // pred_check_branch
          %627 = sbr.rel (%p625) target = $region72
        $region71: #{tpu_custom_call.1} parent=11 // pred_region
          %629 = vsyncadd [#allocation10], 0
          %s630 = sshll.u32 %s16, 4
          %s631 = int_to_ptr.hbm [resolvable:$true] %s630
          %s632 = sshll.u32 [#allocation11], 4
          %s633 = int_to_ptr.vmem [resolvable:$true] %s632
          %638 = dma.hbm_to_vmem [thread:$0]  %s631, 4096, %s633, [#allocation10], 256, 256, 16
        $region72: #{tpu_custom_call.1} parent=11 // pred_fallthru
          _
        // Predicated region
        $region73: #{tpu_custom_call.1} parent=11 // pred_check
          %p639 = pneg %p425
        $region74: #{tpu_custom_call.1} parent=11 // pred_check_branch
          %641 = sbr.rel (%p639) target = $region76
        $region75: #{tpu_custom_call.1} parent=11 // pred_region
          _
        $region76: #{tpu_custom_call.1} parent=11 // pred_fallthru
          _
        // Predicated region
        $region77: #{tpu_custom_call.1} parent=11 // pred_check
          %p642 = pneg %p446
        $region78: #{tpu_custom_call.1} parent=11 // pred_check_branch
          %644 = sbr.rel (%p642) target = $region80
        $region79: #{tpu_custom_call.1} parent=11 // pred_region
          %646 = vsyncadd [#allocation13], 0
          %s647 = sshll.u32 %s18, 4
          %s648 = int_to_ptr.hbm [resolvable:$true] %s647
          %s649 = sshll.u32 [#allocation12], 4
          %s650 = int_to_ptr.vmem [resolvable:$true] %s649
          %655 = dma.hbm_to_vmem [thread:$0]  %s648, 4096, %s650, [#allocation13], 64, 64, 4
        $region80: #{tpu_custom_call.1} parent=11 // pred_fallthru
          _
        // Predicated region
        $region81: #{tpu_custom_call.1} parent=11 // pred_check
          %p656 = pneg %p467
        $region82: #{tpu_custom_call.1} parent=11 // pred_check_branch
          %658 = sbr.rel (%p656) target = $region84
        $region83: #{tpu_custom_call.1} parent=11 // pred_region
          _
        $region84: #{tpu_custom_call.1} parent=11 // pred_fallthru
          _
        // Predicated region
        $region85: #{tpu_custom_call.1} parent=11 // pred_check
          %p659 = pneg %p488
        $region86: #{tpu_custom_call.1} parent=11 // pred_check_branch
          %661 = sbr.rel (%p659) target = $region88
        $region87: #{tpu_custom_call.1} parent=11 // pred_region
          _
        $region88: #{tpu_custom_call.1} parent=11 // pred_fallthru
          _
        // Predicated region
        $region89: #{tpu_custom_call.1} parent=11 // pred_check
          %p662 = pneg %p509
        $region90: #{tpu_custom_call.1} parent=11 // pred_check_branch
          %664 = sbr.rel (%p662) target = $region92
        $region91: #{tpu_custom_call.1} parent=11 // pred_region
          _
        $region92: #{tpu_custom_call.1} parent=11 // pred_fallthru
          _
      $region12: #{tpu_custom_call.1} parent=5 // pred_fallthru
        _
      %p665 = scmp.lt.s32.totalorder %s37, 2
      // Predicated region
      $region93: #{tpu_custom_call.1} parent=5 // pred_check
        %p666 = pneg %p665
      $region94: #{tpu_custom_call.1} parent=5 // pred_check_branch
        %668 = sbr.rel (%p666) target = $region96
      $region95: #{tpu_custom_call.1} parent=5 // pred_region
        // Predicated region
        $region97: #{tpu_custom_call.1} parent=95 // pred_check
          %p669 = pneg %p57
        $region98: #{tpu_custom_call.1} parent=95 // pred_check_branch
          %671 = sbr.rel (%p669) target = $region100
        $region99: #{tpu_custom_call.1} parent=95 // pred_region
          %s672 = sand.u32 %s47, 1
          %s673 = scalar_lea.sflag [#allocation4], %s672
          %s674 = sand.u32 %s47, 1
          %s675 = smul.addr %s674, 8
          %s676 = scalar_lea.vmem [#allocation3], %s675
          %678 = vsyncadd %s673, 0
          %s679 = smul.addr %s37, 8
          %s680 = scalar_lea.hbm %s0, %s679
          %s682 = sshll.u32 %s680, 4
          %s683 = int_to_ptr.hbm [resolvable:$true] %s682
          %s684 = sshll.u32 %s676, 4
          %s685 = int_to_ptr.vmem [resolvable:$true] %s684
          %687 = dma.hbm_to_vmem [thread:$0]  %s683, 128, %s685, %s673
        $region100: #{tpu_custom_call.1} parent=95 // pred_fallthru
          _
        // Predicated region
        $region101: #{tpu_custom_call.1} parent=95 // pred_check
          %p688 = pneg %p83
        $region102: #{tpu_custom_call.1} parent=95 // pred_check_branch
          %690 = sbr.rel (%p688) target = $region104
        $region103: #{tpu_custom_call.1} parent=95 // pred_region
          %p691 = scmp.lt.s32.totalorder %s37, 1
          %s692 = scalar_select %p691, %s37, 1
          %s693 = smul.addr %s692, 2
          %s694 = smul.addr %s693, 8
          %s695 = scalar_lea.vmem %s1, %s694
        $region104: #{tpu_custom_call.1} parent=95 // pred_fallthru
          _
      $region96: #{tpu_custom_call.1} parent=5 // pred_fallthru
        _
      %p696 = scmp.le.s32.totalorder 1, %s37
      %p697 = scmp.lt.s32.totalorder %s37, 3
      %p698 = pnand %p696, %p697
      %p699 = pneg %p698
      // Predicated region
      $region105: #{tpu_custom_call.1} parent=5 // pred_check
        _
      $region106: #{tpu_custom_call.1} parent=5 // pred_check_branch
        %701 = sbr.rel (%p698) target = $region108
      $region107: #{tpu_custom_call.1} parent=5 // pred_region
        %s702 = ssub.s32 %s37, 1
        %s703 = sand.u32 %s50, 1
        %s704 = scalar_lea.sflag [#allocation4], %s703
        %s705 = sand.u32 %s50, 1
        %s706 = smul.addr %s705, 8
        %s707 = scalar_lea.vmem [#allocation3], %s706
        // Predicated region
        $region109: #{tpu_custom_call.1} parent=107 // pred_check
          %p708 = pneg %p63
        $region110: #{tpu_custom_call.1} parent=107 // pred_check_branch
          %710 = sbr.rel (%p708) target = $region112
        $region111: #{tpu_custom_call.1} parent=107 // pred_region
          %712 = dma.done %s704, 128
        $region112: #{tpu_custom_call.1} parent=107 // pred_fallthru
          _
        // Predicated region
        $region113: #{tpu_custom_call.1} parent=107 // pred_check
          %p713 = pneg %p236
        $region114: #{tpu_custom_call.1} parent=107 // pred_check_branch
          %715 = sbr.rel (%p713) target = $region116
        $region115: #{tpu_custom_call.1} parent=107 // pred_region
          %717 = dma.done [#allocation7], 1024
        $region116: #{tpu_custom_call.1} parent=107 // pred_fallthru
          _
        // Predicated region
        $region117: #{tpu_custom_call.1} parent=107 // pred_check
          %p718 = pneg %p278
        $region118: #{tpu_custom_call.1} parent=107 // pred_check_branch
          %720 = sbr.rel (%p718) target = $region120
        $region119: #{tpu_custom_call.1} parent=107 // pred_region
          %722 = dma.done [#allocation7], 2048
        $region120: #{tpu_custom_call.1} parent=107 // pred_fallthru
          _
        // Predicated region
        $region121: #{tpu_custom_call.1} parent=107 // pred_check
          %p723 = pneg %p320
        $region122: #{tpu_custom_call.1} parent=107 // pred_check_branch
          %725 = sbr.rel (%p723) target = $region124
        $region123: #{tpu_custom_call.1} parent=107 // pred_region
          %727 = dma.done [#allocation10], 1024
        $region124: #{tpu_custom_call.1} parent=107 // pred_fallthru
          _
        // Predicated region
        $region125: #{tpu_custom_call.1} parent=107 // pred_check
          %p728 = pneg %p404
        $region126: #{tpu_custom_call.1} parent=107 // pred_check_branch
          %730 = sbr.rel (%p728) target = $region128
        $region127: #{tpu_custom_call.1} parent=107 // pred_region
          %732 = dma.done [#allocation10], 4096
        $region128: #{tpu_custom_call.1} parent=107 // pred_fallthru
          _
        // Predicated region
        $region129: #{tpu_custom_call.1} parent=107 // pred_check
          %p733 = pneg %p446
        $region130: #{tpu_custom_call.1} parent=107 // pred_check_branch
          %735 = sbr.rel (%p733) target = $region132
        $region131: #{tpu_custom_call.1} parent=107 // pred_region
          %737 = dma.done [#allocation13], 4096
        $region132: #{tpu_custom_call.1} parent=107 // pred_fallthru
          _
        %s738 = sand.u32 %s50, 1
        %s739 = scalar_lea.sflag [#allocation4], %s738
        %s740 = sand.u32 %s50, 1
        %s741 = smul.addr %s740, 8
        %s742 = scalar_lea.vmem [#allocation3], %s741
        %p743 = pneg %p63
        %p744 = pneg %p60
        %p745 = scmp.lt.s32.totalorder %s42, 1
        %s746 = scalar_select %p745, %s42, 1
        %s747 = smul.addr %s746, 2
        %s748 = smul.addr %s747, 8
        %s749 = scalar_lea.vmem %s1, %s748
        %p750 = pneg %p89
        %p751 = pneg %p86
        %p752 = pneg %p110
        %p753 = pneg %p107
        %p754 = pneg %p131
        %p755 = pneg %p128
        %p756 = pneg %p152
        %p757 = pneg %p149
        %p758 = pneg %p173
        %p759 = pneg %p170
        %p760 = pneg %p194
        %p761 = pneg %p191
        %p762 = pneg %p215
        %p763 = pneg %p212
        %p764 = pneg %p236
        %p765 = pneg %p233
        %p766 = pneg %p257
        %p767 = pneg %p254
        %p768 = pneg %p278
        %p769 = pneg %p275
        %p770 = pneg %p299
        %p771 = pneg %p296
        %p772 = pneg %p320
        %p773 = pneg %p317
        %p774 = pneg %p341
        %p775 = pneg %p338
        %p776 = pneg %p362
        %p777 = pneg %p359
        %p778 = pneg %p383
        %p779 = pneg %p380
        %p780 = pneg %p404
        %p781 = pneg %p401
        %p782 = pneg %p425
        %p783 = pneg %p422
        %p784 = pneg %p446
        %p785 = pneg %p443
        %p786 = pneg %p467
        %p787 = pneg %p464
        %p788 = pneg %p488
        %p789 = pneg %p485
        %p790 = pneg %p509
        %p791 = pneg %p506
        %p792 = pneg %p535
        %p793 = pneg %p532
        %s794 = sand.u32 %s522, 1
        %s795 = scalar_lea.sflag [#allocation5], %s794
        %s796 = sand.u32 %s522, 1
        %s797 = smul.addr %s796, 8
        %s798 = scalar_lea.vmem [#allocation14], %s797
        %p799 = scmp.lt.s32.totalorder %s42, 1
        %s800 = scalar_select %p799, %s42, 1
        %s801 = smul.addr %s800, 2
        %s802 = smul.addr %s801, 8
        %s803 = scalar_lea.vmem %s1, %s802
        %v805 = vld [vmem:[%s707] sm:$0xff]
        %v806 = vld [vmem:[%s803] sm:$0xff]
        %v807 = vld [vmem:[%s803 + $0x8] sm:$0xff]
        %v808 = vld [vmem:[%s2] sm:$0xf]
        %v809 = vld [vmem:[%s2 + $0x4] sm:$0xf]
        %v810 = vpack.c.bf16 %v805, %v805
        %v811 = vld [vmem:[%s3] sm:$0xff]
        %v812 = vld [vmem:[%s3 + $0x8] sm:$0xff]
        %814 = vset.pattern.permute.xlu0 0
        %815 = vperm.xlu0 %814, %v811
        %v816 = vpop.permute.xlu0 %815
        %819 = vset.pattern.permute.xlu0 0
        %820 = vperm.xlu0 %819, %v812
        %v821 = vpop.permute.xlu0 %820
        %v825 = vunpack.c.l.b16 %v808
        %v826 = vunpack.c.l.b16 %v809
        %v827 = vpack.c.b16 %v826, %v825
        %vm828 = vcmask 64512
        %v830 = vsel %vm828, %v827, 0
        %vm832 = vcmask 1043456
        %v834 = vsel %vm832, %v810, 0
        %836 = vmatpush.bf16.msra.mxu0 0
        %837 = vmatpush.bf16.msra.mxu0 0
        %838 = vmatpush.bf16.msra.mxu0 0
        %839 = vmatpush.bf16.msra.mxu0 0
        %840 = vmatpush.bf16.msra.mxu0 0
        %841 = vmatpush.bf16.msra.mxu0 0
        %842 = vmatpush.bf16.msra.mxu0 0
        %843 = vmatpush.bf16.msra.mxu0 %v834
        %844 = vmatmul.bf16.gmra.mxu0 %v830
        %v845 = vpop.f32.mrf.mxu0
        %v846 = vadd.f32 %v816, %v845
        %v847 = vpop.f32.mrf.mxu0
        %v848 = vadd.f32 %v821, %v847
        %849 = vdwg.mxu0
        %v850 = vmax.f32 %v846, 0.0
        %v851 = vmax.f32 %v848, 0.0
        %v852 = vld [vmem:[%s4] sm:$0xf]
        %v853 = vpack.c.bf16 %v851, %v850
        %v854 = vld [vmem:[%s5] sm:$0xff]
        %856 = vset.pattern.permute.xlu0 0
        %857 = vperm.xlu0 %856, %v854
        %v858 = vpop.permute.xlu0 %857
        %vm860 = vcmask 130048
        %v862 = vsel %vm860, %v852, 0
        %864 = vmatpush.bf16.msra.mxu0 0
        %865 = vmatpush.bf16.msra.mxu0 0
        %866 = vmatpush.bf16.msra.mxu0 0
        %867 = vmatpush.bf16.msra.mxu0 0
        %868 = vmatpush.bf16.msra.mxu0 0
        %869 = vmatpush.bf16.msra.mxu0 0
        %870 = vmatpush.bf16.msra.mxu0 0
        %871 = vmatpush.bf16.msra.mxu0 %v853
        %872 = vmatmul.bf16.gmra.mxu0 %v862
        %v873 = vpop.f32.mrf.mxu0
        %v874 = vadd.f32 %v858, %v873
        %v875 = vpop.f32.mrf.mxu0
        %876 = vdwg.mxu0
        %v877 = vadd.f32 %v874, %v805
        %v878 = vld [vmem:[%s6] sm:$0x1]
        %v879 = vld [vmem:[%s7] sm:$0x1]
        %880 = vadd.xlane.f32.xlu0 %v877
        %v881 = vpop.xlane.xlu0 %880
        %v882 = vrcp.pop 128.0
        %v883 = vmul.f32 128.0, %v882
        %v884 = vsub.f32 1.0, %v883
        %v885 = vmul.f32 %v882, %v884
        %v886 = vadd.f32 %v882, %v885
        %vm887 = vweird.f32 %v882
        %v888 = vsel %vm887, %v882, %v886
        %v889 = vmul.f32 %v881, %v888
        %v890 = vsub.f32 %v877, %v889
        %v891 = vmul.f32 %v890, %v890
        %892 = vadd.xlane.f32.xlu0 %v891
        %v893 = vpop.xlane.xlu0 %892
        %v894 = vmul.f32 %v893, %v888
        %v895 = vadd.f32 %v894, 1e-05
        %v896 = vrsqrt.pop %v895
        %v897 = vmul.f32 %v896, %v895
        %v898 = vmul.f32 %v897, %v896
        %v899 = vmul.f32 0.5, %v898
        %v900 = vsub.f32 1.5, %v899
        %v901 = vmul.f32 %v896, %v900
        %vm902 = vweird.f32 %v895
        %vm903 = vweird.f32 %v896
        %vm904 = vmor %vm902, %vm903
        %v905 = vsel %vm904, %v896, %v901
        %v906 = vmul.f32 %v890, %v905
        %v908 = vperm.slane %v878, 0
        %v910 = vmul.f32 %v906, %v908
        %v912 = vperm.slane %v879, 0
        %v914 = vadd.f32 %v910, %v912
        %v915 = vpack.c.bf16 %v807, %v806
        %v916 = vpack.c.bf16 %v914, %v914
        %v917 = vld [vmem:[#allocation6] sm:$0xf]
        %v918 = vld [vmem:[#allocation6 + $0x4] sm:$0xf]
        %v919 = vld [vmem:[#allocation6 + $0x8] sm:$0xf]
        %v920 = vld [vmem:[#allocation6 + $0xc] sm:$0xf]
        %v921 = vld [vmem:[#allocation6 + $0x10] sm:$0xf]
        %v922 = vld [vmem:[#allocation6 + $0x14] sm:$0xf]
        %v923 = vld [vmem:[#allocation6 + $0x18] sm:$0xf]
        %v924 = vld [vmem:[#allocation6 + $0x1c] sm:$0xf]
        %v925 = vld [vmem:[#allocation6 + $0x20] sm:$0xf]
        %v926 = vld [vmem:[#allocation6 + $0x24] sm:$0xf]
        %v927 = vld [vmem:[#allocation6 + $0x28] sm:$0xf]
        %v928 = vld [vmem:[#allocation6 + $0x2c] sm:$0xf]
        %v929 = vld [vmem:[#allocation6 + $0x30] sm:$0xf]
        %v930 = vld [vmem:[#allocation6 + $0x34] sm:$0xf]
        %v931 = vld [vmem:[#allocation6 + $0x38] sm:$0xf]
        %v932 = vld [vmem:[#allocation6 + $0x3c] sm:$0xf]
        %v933 = vld [vmem:[%s9] sm:$0x1]
        %v935 = vperm.slane %v933, 0
        %v953 = vunpack.c.l.b16 %v917
        %v954 = vunpack.c.l.b16 %v918
        %v955 = vunpack.c.l.b16 %v919
        %v956 = vunpack.c.l.b16 %v920
        %v957 = vunpack.c.l.b16 %v921
        %v958 = vunpack.c.l.b16 %v922
        %v959 = vunpack.c.l.b16 %v923
        %v960 = vunpack.c.l.b16 %v924
        %v961 = vunpack.c.l.b16 %v925
        %v962 = vunpack.c.l.b16 %v926
        %v963 = vunpack.c.l.b16 %v927
        %v964 = vunpack.c.l.b16 %v928
        %v965 = vunpack.c.l.b16 %v929
        %v966 = vunpack.c.l.b16 %v930
        %v967 = vunpack.c.l.b16 %v931
        %v968 = vunpack.c.l.b16 %v932
        %v969 = vpack.c.b16 %v954, %v953
        %v970 = vpack.c.b16 %v956, %v955
        %v971 = vpack.c.b16 %v958, %v957
        %v972 = vpack.c.b16 %v960, %v959
        %v973 = vpack.c.b16 %v962, %v961
        %v974 = vpack.c.b16 %v964, %v963
        %v975 = vpack.c.b16 %v966, %v965
        %v976 = vpack.c.b16 %v968, %v967
        %985 = vmatpush.bf16.msra.mxu0 %v976
        %986 = vmatpush.bf16.msra.mxu0 %v975
        %987 = vmatpush.bf16.msra.mxu0 %v974
        %988 = vmatpush.bf16.msra.mxu0 %v973
        %989 = vmatpush.bf16.msra.mxu0 %v972
        %990 = vmatpush.bf16.msra.mxu0 %v971
        %991 = vmatpush.bf16.msra.mxu0 %v970
        %992 = vmatpush.bf16.msra.mxu0 %v969
        %993 = vmatmul.bf16.gmra.mxu0 %v916
        %v994 = vpop.f32.mrf.mxu0
        %v995 = vadd.f32 %v935, %v994
        %v996 = vpop.f32.mrf.mxu0
        %997 = vdwg.mxu0
        %v998 = vld [vmem:[#allocation8] sm:$0xff]
        %v999 = vld [vmem:[#allocation8 + $0x8] sm:$0xff]
        %v1000 = vld [vmem:[#allocation8 + $0x10] sm:$0xff]
        %v1001 = vld [vmem:[#allocation8 + $0x18] sm:$0xff]
        %v1002 = vld [vmem:[#allocation8 + $0x20] sm:$0xff]
        %v1003 = vld [vmem:[#allocation8 + $0x28] sm:$0xff]
        %v1004 = vld [vmem:[#allocation8 + $0x30] sm:$0xff]
        %v1005 = vld [vmem:[#allocation8 + $0x38] sm:$0xff]
        %v1006 = vld [vmem:[#allocation8 + $0x40] sm:$0xff]
        %v1007 = vld [vmem:[#allocation8 + $0x48] sm:$0xff]
        %v1008 = vld [vmem:[#allocation8 + $0x50] sm:$0xff]
        %v1009 = vld [vmem:[#allocation8 + $0x58] sm:$0xff]
        %v1010 = vld [vmem:[#allocation8 + $0x60] sm:$0xff]
        %v1011 = vld [vmem:[#allocation8 + $0x68] sm:$0xff]
        %v1012 = vld [vmem:[#allocation8 + $0x70] sm:$0xff]
        %v1013 = vld [vmem:[#allocation8 + $0x78] sm:$0xff]
        %v1014 = vld [vmem:[%s11] sm:$0x3]
        %v1016 = vperm.slane %v1014, 0
        %v1017 = vperm.slane %v1014, 1
        %v1036 = vunpack.c.l.b16 %v998
        %v1037 = vunpack.c.h.b16 %v998
        %v1038 = vunpack.c.l.b16 %v999
        %v1039 = vunpack.c.h.b16 %v999
        %v1040 = vunpack.c.l.b16 %v1000
        %v1041 = vunpack.c.h.b16 %v1000
        %v1042 = vunpack.c.l.b16 %v1001
        %v1043 = vunpack.c.h.b16 %v1001
        %v1044 = vunpack.c.l.b16 %v1002
        %v1045 = vunpack.c.h.b16 %v1002
        %v1046 = vunpack.c.l.b16 %v1003
        %v1047 = vunpack.c.h.b16 %v1003
        %v1048 = vunpack.c.l.b16 %v1004
        %v1049 = vunpack.c.h.b16 %v1004
        %v1050 = vunpack.c.l.b16 %v1005
        %v1051 = vunpack.c.h.b16 %v1005
        %v1052 = vunpack.c.l.b16 %v1006
        %v1053 = vunpack.c.h.b16 %v1006
        %v1054 = vunpack.c.l.b16 %v1007
        %v1055 = vunpack.c.h.b16 %v1007
        %v1056 = vunpack.c.l.b16 %v1008
        %v1057 = vunpack.c.h.b16 %v1008
        %v1058 = vunpack.c.l.b16 %v1009
        %v1059 = vunpack.c.h.b16 %v1009
        %v1060 = vunpack.c.l.b16 %v1010
        %v1061 = vunpack.c.h.b16 %v1010
        %v1062 = vunpack.c.l.b16 %v1011
        %v1063 = vunpack.c.h.b16 %v1011
        %v1064 = vunpack.c.l.b16 %v1012
        %v1065 = vunpack.c.h.b16 %v1012
        %v1066 = vunpack.c.l.b16 %v1013
        %v1067 = vunpack.c.h.b16 %v1013
        %v1068 = vpack.c.b16 %v1038, %v1036
        %v1069 = vpack.c.b16 %v1039, %v1037
        %v1070 = vpack.c.b16 %v1042, %v1040
        %v1071 = vpack.c.b16 %v1043, %v1041
        %v1072 = vpack.c.b16 %v1046, %v1044
        %v1073 = vpack.c.b16 %v1047, %v1045
        %v1074 = vpack.c.b16 %v1050, %v1048
        %v1075 = vpack.c.b16 %v1051, %v1049
        %v1076 = vpack.c.b16 %v1054, %v1052
        %v1077 = vpack.c.b16 %v1055, %v1053
        %v1078 = vpack.c.b16 %v1058, %v1056
        %v1079 = vpack.c.b16 %v1059, %v1057
        %v1080 = vpack.c.b16 %v1062, %v1060
        %v1081 = vpack.c.b16 %v1063, %v1061
        %v1082 = vpack.c.b16 %v1066, %v1064
        %v1083 = vpack.c.b16 %v1067, %v1065
        %1100 = vmatpush.bf16.msra.mxu0 %v1082
        %1101 = vmatpush.bf16.msra.mxu0 %v1080
        %1102 = vmatpush.bf16.msra.mxu0 %v1078
        %1103 = vmatpush.bf16.msra.mxu0 %v1076
        %1104 = vmatpush.bf16.msra.mxu0 %v1074
        %1105 = vmatpush.bf16.msra.mxu0 %v1072
        %1106 = vmatpush.bf16.msra.mxu0 %v1070
        %1107 = vmatpush.bf16.msra.mxu0 %v1068
        %1108 = vmatmul.bf16.gmra.mxu0 %v915
        %v1109 = vpop.f32.mrf.mxu0
        %v1110 = vadd.f32 %v1016, %v1109
        %v1111 = vpop.f32.mrf.mxu0
        %v1112 = vadd.f32 %v1016, %v1111
        %1113 = vdwg.mxu0
        %1114 = vmatpush.bf16.msra.mxu0 %v1083
        %1115 = vmatpush.bf16.msra.mxu0 %v1081
        %1116 = vmatpush.bf16.msra.mxu0 %v1079
        %1117 = vmatpush.bf16.msra.mxu0 %v1077
        %1118 = vmatpush.bf16.msra.mxu0 %v1075
        %1119 = vmatpush.bf16.msra.mxu0 %v1073
        %1120 = vmatpush.bf16.msra.mxu0 %v1071
        %1121 = vmatpush.bf16.msra.mxu0 %v1069
        %1122 = vmatmul.bf16.gmra.mxu0 %v915
        %v1123 = vpop.f32.mrf.mxu0
        %v1124 = vadd.f32 %v1017, %v1123
        %v1125 = vpop.f32.mrf.mxu0
        %v1126 = vadd.f32 %v1017, %v1125
        %1127 = vdwg.mxu0
        %v1128 = vpack.c.bf16 %v1110, %v1110
        %v1129 = vpack.c.bf16 %v1112, %v1112
        %v1130 = vpack.c.bf16 %v1124, %v1124
        %v1131 = vpack.c.bf16 %v1126, %v1126
        %v1132 = vpack.c.bf16 %v995, %v995
        %v1135 = vunpack.c.l.b16 %v1128
        %v1136 = vunpack.c.l.b16 %v1129
        %v1137 = vpack.c.b16 %v1136, %v1135
        %vm1138 = vcmask 261120
        %v1140 = vsel %vm1138, %v1132, 0
        %v1143 = vsel %vm1138, %v1137, 0
        %1145 = vmatpush.bf16.xpose.msra.mxu0 0
        %1146 = vmatpush.bf16.xpose.msra.mxu0 0
        %1147 = vmatpush.bf16.xpose.msra.mxu0 0
        %1148 = vmatpush.bf16.xpose.msra.mxu0 0
        %1149 = vmatpush.bf16.xpose.msra.mxu0 0
        %1150 = vmatpush.bf16.xpose.msra.mxu0 0
        %1151 = vmatpush.bf16.xpose.msra.mxu0 0
        %1152 = vmatpush.bf16.xpose.msra.mxu0 %v1143
        %1153 = vmatmul.bf16.gmra.mxu0 %v1140
        %v1154 = vpop.f32.mrf.mxu0
        %v1155 = vadd.f32 0.0, %v1154
        %v1156 = vpop.f32.mrf.mxu0
        %1157 = vdwg.mxu0
        %v1158 = vsel %vm860, %v1155, -inf
        %1159 = vmax.xlane.f32.xlu0 %v1158
        %v1160 = vpop.xlane.xlu0 %1159
        %v1161 = vsub.f32 %v1155, %v1160
        %v1162 = vmul.f32 %v1161, 1.442695
        %v1163 = vpow.pop %v1162
        %v1164 = vsel %vm860, %v1163, 0.0
        %1165 = vadd.xlane.f32.xlu0 %v1164
        %v1166 = vpop.xlane.xlu0 %1165
        %v1167 = vrcp.pop %v1166
        %v1168 = vmul.f32 %v1163, %v1167
        %v1169 = vpack.c.bf16 %v1168, %v1168
        %v1172 = vunpack.c.l.b16 %v1130
        %v1173 = vunpack.c.l.b16 %v1131
        %v1174 = vpack.c.b16 %v1173, %v1172
        %v1177 = vsel %vm860, %v1169, 0
        %1179 = vmatpush.bf16.msra.mxu0 0
        %1180 = vmatpush.bf16.msra.mxu0 0
        %1181 = vmatpush.bf16.msra.mxu0 0
        %1182 = vmatpush.bf16.msra.mxu0 0
        %1183 = vmatpush.bf16.msra.mxu0 0
        %1184 = vmatpush.bf16.msra.mxu0 0
        %1185 = vmatpush.bf16.msra.mxu0 0
        %1186 = vmatpush.bf16.msra.mxu0 %v1174
        %1187 = vmatmul.bf16.gmra.mxu0 %v1177
        %v1188 = vpop.f32.mrf.mxu0
        %v1189 = vadd.f32 0.0, %v1188
        %v1190 = vpop.f32.mrf.mxu0
        %1191 = vdwg.mxu0
        %v1192 = vpack.c.bf16 %v1189, %v1189
        %vm1193 = vcmask 257024
        %1194 = vst.msk [vmem:[#allocation2] sm:$0xf] %vm1193, %v1192
        %1196 = vrot.lane.b32.xlu0 %v1132, 96
        %v1197 = vpop.permute.xlu0 %1196
        %1198 = vrot.lane.b32.xlu0 %v1137, 96
        %v1199 = vpop.permute.xlu0 %1198
        %v1201 = vsel %vm1138, %v1197, 0
        %v1204 = vsel %vm1138, %v1199, 0
        %1206 = vmatpush.bf16.xpose.msra.mxu0 0
        %1207 = vmatpush.bf16.xpose.msra.mxu0 0
        %1208 = vmatpush.bf16.xpose.msra.mxu0 0
        %1209 = vmatpush.bf16.xpose.msra.mxu0 0
        %1210 = vmatpush.bf16.xpose.msra.mxu0 0
        %1211 = vmatpush.bf16.xpose.msra.mxu0 0
        %1212 = vmatpush.bf16.xpose.msra.mxu0 0
        %1213 = vmatpush.bf16.xpose.msra.mxu0 %v1204
        %1214 = vmatmul.bf16.gmra.mxu0 %v1201
        %v1215 = vpop.f32.mrf.mxu0
        %v1216 = vadd.f32 0.0, %v1215
        %v1217 = vpop.f32.mrf.mxu0
        %1218 = vdwg.mxu0
        %v1219 = vsel %vm860, %v1216, -inf
        %1220 = vmax.xlane.f32.xlu0 %v1219
        %v1221 = vpop.xlane.xlu0 %1220
        %v1222 = vsub.f32 %v1216, %v1221
        %v1223 = vmul.f32 %v1222, 1.442695
        %v1224 = vpow.pop %v1223
        %v1225 = vsel %vm860, %v1224, 0.0
        %1226 = vadd.xlane.f32.xlu0 %v1225
        %v1227 = vpop.xlane.xlu0 %1226
        %v1228 = vrcp.pop %v1227
        %v1229 = vmul.f32 %v1224, %v1228
        %v1230 = vpack.c.bf16 %v1229, %v1229
        %1231 = vrot.lane.b32.xlu0 %v1174, 96
        %v1232 = vpop.permute.xlu0 %1231
        %v1235 = vsel %vm860, %v1230, 0
        %1237 = vmatpush.bf16.msra.mxu0 0
        %1238 = vmatpush.bf16.msra.mxu0 0
        %1239 = vmatpush.bf16.msra.mxu0 0
        %1240 = vmatpush.bf16.msra.mxu0 0
        %1241 = vmatpush.bf16.msra.mxu0 0
        %1242 = vmatpush.bf16.msra.mxu0 0
        %1243 = vmatpush.bf16.msra.mxu0 0
        %1244 = vmatpush.bf16.msra.mxu0 %v1232
        %1245 = vmatmul.bf16.gmra.mxu0 %v1235
        %v1246 = vpop.f32.mrf.mxu0
        %v1247 = vadd.f32 0.0, %v1246
        %v1248 = vpop.f32.mrf.mxu0
        %1249 = vdwg.mxu0
        %v1250 = vpack.c.bf16 %v1247, %v1247
        %1252 = vrot.lane.b32.xlu0 %v1250, 32
        %v1253 = vpop.permute.xlu0 %1252
        %vm1255 = vcmask 519424
        %1256 = vst.msk [vmem:[#allocation2] sm:$0xf] %vm1255, %v1253
        %1257 = vrot.lane.b32.xlu0 %v1132, 64
        %v1258 = vpop.permute.xlu0 %1257
        %1259 = vrot.lane.b32.xlu0 %v1137, 64
        %v1260 = vpop.permute.xlu0 %1259
        %v1262 = vsel %vm1138, %v1258, 0
        %v1265 = vsel %vm1138, %v1260, 0
        %1267 = vmatpush.bf16.xpose.msra.mxu0 0
        %1268 = vmatpush.bf16.xpose.msra.mxu0 0
        %1269 = vmatpush.bf16.xpose.msra.mxu0 0
        %1270 = vmatpush.bf16.xpose.msra.mxu0 0
        %1271 = vmatpush.bf16.xpose.msra.mxu0 0
        %1272 = vmatpush.bf16.xpose.msra.mxu0 0
        %1273 = vmatpush.bf16.xpose.msra.mxu0 0
        %1274 = vmatpush.bf16.xpose.msra.mxu0 %v1265
        %1275 = vmatmul.bf16.gmra.mxu0 %v1262
        %v1276 = vpop.f32.mrf.mxu0
        %v1277 = vadd.f32 0.0, %v1276
        %v1278 = vpop.f32.mrf.mxu0
        %1279 = vdwg.mxu0
        %v1280 = vsel %vm860, %v1277, -inf
        %1281 = vmax.xlane.f32.xlu0 %v1280
        %v1282 = vpop.xlane.xlu0 %1281
        %v1283 = vsub.f32 %v1277, %v1282
        %v1284 = vmul.f32 %v1283, 1.442695
        %v1285 = vpow.pop %v1284
        %v1286 = vsel %vm860, %v1285, 0.0
        %1287 = vadd.xlane.f32.xlu0 %v1286
        %v1288 = vpop.xlane.xlu0 %1287
        %v1289 = vrcp.pop %v1288
        %v1290 = vmul.f32 %v1285, %v1289
        %v1291 = vpack.c.bf16 %v1290, %v1290
        %1292 = vrot.lane.b32.xlu0 %v1174, 64
        %v1293 = vpop.permute.xlu0 %1292
        %v1296 = vsel %vm860, %v1291, 0
        %1298 = vmatpush.bf16.msra.mxu0 0
        %1299 = vmatpush.bf16.msra.mxu0 0
        %1300 = vmatpush.bf16.msra.mxu0 0
        %1301 = vmatpush.bf16.msra.mxu0 0
        %1302 = vmatpush.bf16.msra.mxu0 0
        %1303 = vmatpush.bf16.msra.mxu0 0
        %1304 = vmatpush.bf16.msra.mxu0 0
        %1305 = vmatpush.bf16.msra.mxu0 %v1293
        %1306 = vmatmul.bf16.gmra.mxu0 %v1296
        %v1307 = vpop.f32.mrf.mxu0
        %v1308 = vadd.f32 0.0, %v1307
        %v1309 = vpop.f32.mrf.mxu0
        %1310 = vdwg.mxu0
        %v1311 = vpack.c.bf16 %v1308, %v1308
        %1313 = vrot.lane.b32.xlu0 %v1311, 64
        %v1314 = vpop.permute.xlu0 %1313
        %vm1316 = vcmask 781824
        %1317 = vst.msk [vmem:[#allocation2] sm:$0xf] %vm1316, %v1314
        %1318 = vrot.lane.b32.xlu0 %v1132, 32
        %v1319 = vpop.permute.xlu0 %1318
        %1320 = vrot.lane.b32.xlu0 %v1137, 32
        %v1321 = vpop.permute.xlu0 %1320
        %v1323 = vsel %vm1138, %v1319, 0
        %v1326 = vsel %vm1138, %v1321, 0
        %1328 = vmatpush.bf16.xpose.msra.mxu0 0
        %1329 = vmatpush.bf16.xpose.msra.mxu0 0
        %1330 = vmatpush.bf16.xpose.msra.mxu0 0
        %1331 = vmatpush.bf16.xpose.msra.mxu0 0
        %1332 = vmatpush.bf16.xpose.msra.mxu0 0
        %1333 = vmatpush.bf16.xpose.msra.mxu0 0
        %1334 = vmatpush.bf16.xpose.msra.mxu0 0
        %1335 = vmatpush.bf16.xpose.msra.mxu0 %v1326
        %1336 = vmatmul.bf16.gmra.mxu0 %v1323
        %v1337 = vpop.f32.mrf.mxu0
        %v1338 = vadd.f32 0.0, %v1337
        %v1339 = vpop.f32.mrf.mxu0
        %1340 = vdwg.mxu0
        %v1341 = vsel %vm860, %v1338, -inf
        %1342 = vmax.xlane.f32.xlu0 %v1341
        %v1343 = vpop.xlane.xlu0 %1342
        %v1344 = vsub.f32 %v1338, %v1343
        %v1345 = vmul.f32 %v1344, 1.442695
        %v1346 = vpow.pop %v1345
        %v1347 = vsel %vm860, %v1346, 0.0
        %1348 = vadd.xlane.f32.xlu0 %v1347
        %v1349 = vpop.xlane.xlu0 %1348
        %v1350 = vrcp.pop %v1349
        %v1351 = vmul.f32 %v1346, %v1350
        %v1352 = vpack.c.bf16 %v1351, %v1351
        %1353 = vrot.lane.b32.xlu0 %v1174, 32
        %v1354 = vpop.permute.xlu0 %1353
        %v1357 = vsel %vm860, %v1352, 0
        %1359 = vmatpush.bf16.msra.mxu0 0
        %1360 = vmatpush.bf16.msra.mxu0 0
        %1361 = vmatpush.bf16.msra.mxu0 0
        %1362 = vmatpush.bf16.msra.mxu0 0
        %1363 = vmatpush.bf16.msra.mxu0 0
        %1364 = vmatpush.bf16.msra.mxu0 0
        %1365 = vmatpush.bf16.msra.mxu0 0
        %1366 = vmatpush.bf16.msra.mxu0 %v1354
        %1367 = vmatmul.bf16.gmra.mxu0 %v1357
        %v1368 = vpop.f32.mrf.mxu0
        %v1369 = vadd.f32 0.0, %v1368
        %v1370 = vpop.f32.mrf.mxu0
        %1371 = vdwg.mxu0
        %v1372 = vpack.c.bf16 %v1369, %v1369
        %1374 = vrot.lane.b32.xlu0 %v1372, 96
        %v1375 = vpop.permute.xlu0 %1374
        %vm1377 = vcmask 1044224
        %1378 = vst.msk [vmem:[#allocation2] sm:$0xf] %vm1377, %v1375
        %v1379 = vld [vmem:[#allocation2] sm:$0xf]
        %v1380 = vld [vmem:[#allocation9] sm:$0xf]
        %v1381 = vld [vmem:[#allocation9 + $0x4] sm:$0xf]
        %v1382 = vld [vmem:[#allocation9 + $0x8] sm:$0xf]
        %v1383 = vld [vmem:[#allocation9 + $0xc] sm:$0xf]
        %v1384 = vld [vmem:[#allocation9 + $0x10] sm:$0xf]
        %v1385 = vld [vmem:[#allocation9 + $0x14] sm:$0xf]
        %v1386 = vld [vmem:[#allocation9 + $0x18] sm:$0xf]
        %v1387 = vld [vmem:[#allocation9 + $0x1c] sm:$0xf]
        %v1388 = vld [vmem:[#allocation9 + $0x20] sm:$0xf]
        %v1389 = vld [vmem:[#allocation9 + $0x24] sm:$0xf]
        %v1390 = vld [vmem:[#allocation9 + $0x28] sm:$0xf]
        %v1391 = vld [vmem:[#allocation9 + $0x2c] sm:$0xf]
        %v1392 = vld [vmem:[#allocation9 + $0x30] sm:$0xf]
        %v1393 = vld [vmem:[#allocation9 + $0x34] sm:$0xf]
        %v1394 = vld [vmem:[#allocation9 + $0x38] sm:$0xf]
        %v1395 = vld [vmem:[#allocation9 + $0x3c] sm:$0xf]
        %v1396 = vld [vmem:[%s13] sm:$0x1]
        %v1398 = vperm.slane %v1396, 0
        %v1416 = vunpack.c.l.b16 %v1380
        %v1417 = vunpack.c.l.b16 %v1381
        %v1418 = vunpack.c.l.b16 %v1382
        %v1419 = vunpack.c.l.b16 %v1383
        %v1420 = vunpack.c.l.b16 %v1384
        %v1421 = vunpack.c.l.b16 %v1385
        %v1422 = vunpack.c.l.b16 %v1386
        %v1423 = vunpack.c.l.b16 %v1387
        %v1424 = vunpack.c.l.b16 %v1388
        %v1425 = vunpack.c.l.b16 %v1389
        %v1426 = vunpack.c.l.b16 %v1390
        %v1427 = vunpack.c.l.b16 %v1391
        %v1428 = vunpack.c.l.b16 %v1392
        %v1429 = vunpack.c.l.b16 %v1393
        %v1430 = vunpack.c.l.b16 %v1394
        %v1431 = vunpack.c.l.b16 %v1395
        %v1432 = vpack.c.b16 %v1417, %v1416
        %v1433 = vpack.c.b16 %v1419, %v1418
        %v1434 = vpack.c.b16 %v1421, %v1420
        %v1435 = vpack.c.b16 %v1423, %v1422
        %v1436 = vpack.c.b16 %v1425, %v1424
        %v1437 = vpack.c.b16 %v1427, %v1426
        %v1438 = vpack.c.b16 %v1429, %v1428
        %v1439 = vpack.c.b16 %v1431, %v1430
        %1448 = vmatpush.bf16.msra.mxu0 %v1439
        %1449 = vmatpush.bf16.msra.mxu0 %v1438
        %1450 = vmatpush.bf16.msra.mxu0 %v1437
        %1451 = vmatpush.bf16.msra.mxu0 %v1436
        %1452 = vmatpush.bf16.msra.mxu0 %v1435
        %1453 = vmatpush.bf16.msra.mxu0 %v1434
        %1454 = vmatpush.bf16.msra.mxu0 %v1433
        %1455 = vmatpush.bf16.msra.mxu0 %v1432
        %1456 = vmatmul.bf16.gmra.mxu0 %v1379
        %v1457 = vpop.f32.mrf.mxu0
        %v1458 = vadd.f32 %v1398, %v1457
        %v1459 = vpop.f32.mrf.mxu0
        %1460 = vdwg.mxu0
        %v1461 = vadd.f32 %v914, %v1458
        %v1462 = vld [vmem:[%s14] sm:$0x1]
        %v1463 = vld [vmem:[%s15] sm:$0x1]
        %1464 = vadd.xlane.f32.xlu0 %v1461
        %v1465 = vpop.xlane.xlu0 %1464
        %v1466 = vmul.f32 %v1465, %v888
        %v1467 = vsub.f32 %v1461, %v1466
        %v1468 = vmul.f32 %v1467, %v1467
        %1469 = vadd.xlane.f32.xlu0 %v1468
        %v1470 = vpop.xlane.xlu0 %1469
        %v1471 = vmul.f32 %v1470, %v888
        %v1472 = vadd.f32 %v1471, 1e-05
        %v1473 = vrsqrt.pop %v1472
        %v1474 = vmul.f32 %v1473, %v1472
        %v1475 = vmul.f32 %v1474, %v1473
        %v1476 = vmul.f32 0.5, %v1475
        %v1477 = vsub.f32 1.5, %v1476
        %v1478 = vmul.f32 %v1473, %v1477
        %vm1479 = vweird.f32 %v1472
        %vm1480 = vweird.f32 %v1473
        %vm1481 = vmor %vm1479, %vm1480
        %v1482 = vsel %vm1481, %v1473, %v1478
        %v1483 = vmul.f32 %v1467, %v1482
        %v1485 = vperm.slane %v1462, 0
        %v1487 = vmul.f32 %v1483, %v1485
        %v1489 = vperm.slane %v1463, 0
        %v1491 = vadd.f32 %v1487, %v1489
        %v1492 = vpack.c.bf16 %v1491, %v1491
        %v1493 = vld [vmem:[#allocation11] sm:$0xff]
        %v1494 = vld [vmem:[#allocation11 + $0x8] sm:$0xff]
        %v1495 = vld [vmem:[#allocation11 + $0x10] sm:$0xff]
        %v1496 = vld [vmem:[#allocation11 + $0x18] sm:$0xff]
        %v1497 = vld [vmem:[#allocation11 + $0x20] sm:$0xff]
        %v1498 = vld [vmem:[#allocation11 + $0x28] sm:$0xff]
        %v1499 = vld [vmem:[#allocation11 + $0x30] sm:$0xff]
        %v1500 = vld [vmem:[#allocation11 + $0x38] sm:$0xff]
        %v1501 = vld [vmem:[#allocation11 + $0x40] sm:$0xff]
        %v1502 = vld [vmem:[#allocation11 + $0x48] sm:$0xff]
        %v1503 = vld [vmem:[#allocation11 + $0x50] sm:$0xff]
        %v1504 = vld [vmem:[#allocation11 + $0x58] sm:$0xff]
        %v1505 = vld [vmem:[#allocation11 + $0x60] sm:$0xff]
        %v1506 = vld [vmem:[#allocation11 + $0x68] sm:$0xff]
        %v1507 = vld [vmem:[#allocation11 + $0x70] sm:$0xff]
        %v1508 = vld [vmem:[#allocation11 + $0x78] sm:$0xff]
        %v1509 = vld [vmem:[#allocation11 + $0x80] sm:$0xff]
        %v1510 = vld [vmem:[#allocation11 + $0x88] sm:$0xff]
        %v1511 = vld [vmem:[#allocation11 + $0x90] sm:$0xff]
        %v1512 = vld [vmem:[#allocation11 + $0x98] sm:$0xff]
        %v1513 = vld [vmem:[#allocation11 + $0xa0] sm:$0xff]
        %v1514 = vld [vmem:[#allocation11 + $0xa8] sm:$0xff]
        %v1515 = vld [vmem:[#allocation11 + $0xb0] sm:$0xff]
        %v1516 = vld [vmem:[#allocation11 + $0xb8] sm:$0xff]
        %v1517 = vld [vmem:[#allocation11 + $0xc0] sm:$0xff]
        %v1518 = vld [vmem:[#allocation11 + $0xc8] sm:$0xff]
        %v1519 = vld [vmem:[#allocation11 + $0xd0] sm:$0xff]
        %v1520 = vld [vmem:[#allocation11 + $0xd8] sm:$0xff]
        %v1521 = vld [vmem:[#allocation11 + $0xe0] sm:$0xff]
        %v1522 = vld [vmem:[#allocation11 + $0xe8] sm:$0xff]
        %v1523 = vld [vmem:[#allocation11 + $0xf0] sm:$0xff]
        %v1524 = vld [vmem:[#allocation11 + $0xf8] sm:$0xff]
        %v1525 = vld [vmem:[%s17] sm:$0xf]
        %v1527 = vperm.slane %v1525, 0
        %v1528 = vperm.slane %v1525, 1
        %v1529 = vperm.slane %v1525, 2
        %v1530 = vperm.slane %v1525, 3
        %v1567 = vunpack.c.l.b16 %v1493
        %v1568 = vunpack.c.h.b16 %v1493
        %v1569 = vunpack.c.l.b16 %v1494
        %v1570 = vunpack.c.h.b16 %v1494
        %v1571 = vunpack.c.l.b16 %v1495
        %v1572 = vunpack.c.h.b16 %v1495
        %v1573 = vunpack.c.l.b16 %v1496
        %v1574 = vunpack.c.h.b16 %v1496
        %v1575 = vunpack.c.l.b16 %v1497
        %v1576 = vunpack.c.h.b16 %v1497
        %v1577 = vunpack.c.l.b16 %v1498
        %v1578 = vunpack.c.h.b16 %v1498
        %v1579 = vunpack.c.l.b16 %v1499
        %v1580 = vunpack.c.h.b16 %v1499
        %v1581 = vunpack.c.l.b16 %v1500
        %v1582 = vunpack.c.h.b16 %v1500
        %v1583 = vunpack.c.l.b16 %v1501
        %v1584 = vunpack.c.h.b16 %v1501
        %v1585 = vunpack.c.l.b16 %v1502
        %v1586 = vunpack.c.h.b16 %v1502
        %v1587 = vunpack.c.l.b16 %v1503
        %v1588 = vunpack.c.h.b16 %v1503
        %v1589 = vunpack.c.l.b16 %v1504
        %v1590 = vunpack.c.h.b16 %v1504
        %v1591 = vunpack.c.l.b16 %v1505
        %v1592 = vunpack.c.h.b16 %v1505
        %v1593 = vunpack.c.l.b16 %v1506
        %v1594 = vunpack.c.h.b16 %v1506
        %v1595 = vunpack.c.l.b16 %v1507
        %v1596 = vunpack.c.h.b16 %v1507
        %v1597 = vunpack.c.l.b16 %v1508
        %v1598 = vunpack.c.h.b16 %v1508
        %v1599 = vunpack.c.l.b16 %v1509
        %v1600 = vunpack.c.h.b16 %v1509
        %v1601 = vunpack.c.l.b16 %v1510
        %v1602 = vunpack.c.h.b16 %v1510
        %v1603 = vunpack.c.l.b16 %v1511
        %v1604 = vunpack.c.h.b16 %v1511
        %v1605 = vunpack.c.l.b16 %v1512
        %v1606 = vunpack.c.h.b16 %v1512
        %v1607 = vunpack.c.l.b16 %v1513
        %v1608 = vunpack.c.h.b16 %v1513
        %v1609 = vunpack.c.l.b16 %v1514
        %v1610 = vunpack.c.h.b16 %v1514
        %v1611 = vunpack.c.l.b16 %v1515
        %v1612 = vunpack.c.h.b16 %v1515
        %v1613 = vunpack.c.l.b16 %v1516
        %v1614 = vunpack.c.h.b16 %v1516
        %v1615 = vunpack.c.l.b16 %v1517
        %v1616 = vunpack.c.h.b16 %v1517
        %v1617 = vunpack.c.l.b16 %v1518
        %v1618 = vunpack.c.h.b16 %v1518
        %v1619 = vunpack.c.l.b16 %v1519
        %v1620 = vunpack.c.h.b16 %v1519
        %v1621 = vunpack.c.l.b16 %v1520
        %v1622 = vunpack.c.h.b16 %v1520
        %v1623 = vunpack.c.l.b16 %v1521
        %v1624 = vunpack.c.h.b16 %v1521
        %v1625 = vunpack.c.l.b16 %v1522
        %v1626 = vunpack.c.h.b16 %v1522
        %v1627 = vunpack.c.l.b16 %v1523
        %v1628 = vunpack.c.h.b16 %v1523
        %v1629 = vunpack.c.l.b16 %v1524
        %v1630 = vunpack.c.h.b16 %v1524
        %v1631 = vpack.c.b16 %v1571, %v1567
        %v1632 = vpack.c.b16 %v1572, %v1568
        %v1633 = vpack.c.b16 %v1573, %v1569
        %v1634 = vpack.c.b16 %v1574, %v1570
        %v1635 = vpack.c.b16 %v1579, %v1575
        %v1636 = vpack.c.b16 %v1580, %v1576
        %v1637 = vpack.c.b16 %v1581, %v1577
        %v1638 = vpack.c.b16 %v1582, %v1578
        %v1639 = vpack.c.b16 %v1587, %v1583
        %v1640 = vpack.c.b16 %v1588, %v1584
        %v1641 = vpack.c.b16 %v1589, %v1585
        %v1642 = vpack.c.b16 %v1590, %v1586
        %v1643 = vpack.c.b16 %v1595, %v1591
        %v1644 = vpack.c.b16 %v1596, %v1592
        %v1645 = vpack.c.b16 %v1597, %v1593
        %v1646 = vpack.c.b16 %v1598, %v1594
        %v1647 = vpack.c.b16 %v1603, %v1599
        %v1648 = vpack.c.b16 %v1604, %v1600
        %v1649 = vpack.c.b16 %v1605, %v1601
        %v1650 = vpack.c.b16 %v1606, %v1602
        %v1651 = vpack.c.b16 %v1611, %v1607
        %v1652 = vpack.c.b16 %v1612, %v1608
        %v1653 = vpack.c.b16 %v1613, %v1609
        %v1654 = vpack.c.b16 %v1614, %v1610
        %v1655 = vpack.c.b16 %v1619, %v1615
        %v1656 = vpack.c.b16 %v1620, %v1616
        %v1657 = vpack.c.b16 %v1621, %v1617
        %v1658 = vpack.c.b16 %v1622, %v1618
        %v1659 = vpack.c.b16 %v1627, %v1623
        %v1660 = vpack.c.b16 %v1628, %v1624
        %v1661 = vpack.c.b16 %v1629, %v1625
        %v1662 = vpack.c.b16 %v1630, %v1626
        %1695 = vmatpush.bf16.msra.mxu0 %v1659
        %1696 = vmatpush.bf16.msra.mxu0 %v1655
        %1697 = vmatpush.bf16.msra.mxu0 %v1651
        %1698 = vmatpush.bf16.msra.mxu0 %v1647
        %1699 = vmatpush.bf16.msra.mxu0 %v1643
        %1700 = vmatpush.bf16.msra.mxu0 %v1639
        %1701 = vmatpush.bf16.msra.mxu0 %v1635
        %1702 = vmatpush.bf16.msra.mxu0 %v1631
        %1703 = vmatmul.bf16.gmra.mxu0 %v1492
        %v1704 = vpop.f32.mrf.mxu0
        %v1705 = vadd.f32 %v1527, %v1704
        %v1706 = vpop.f32.mrf.mxu0
        %1707 = vdwg.mxu0
        %1708 = vmatpush.bf16.msra.mxu0 %v1660
        %1709 = vmatpush.bf16.msra.mxu0 %v1656
        %1710 = vmatpush.bf16.msra.mxu0 %v1652
        %1711 = vmatpush.bf16.msra.mxu0 %v1648
        %1712 = vmatpush.bf16.msra.mxu0 %v1644
        %1713 = vmatpush.bf16.msra.mxu0 %v1640
        %1714 = vmatpush.bf16.msra.mxu0 %v1636
        %1715 = vmatpush.bf16.msra.mxu0 %v1632
        %1716 = vmatmul.bf16.gmra.mxu0 %v1492
        %v1717 = vpop.f32.mrf.mxu0
        %v1718 = vadd.f32 %v1528, %v1717
        %v1719 = vpop.f32.mrf.mxu0
        %1720 = vdwg.mxu0
        %1721 = vmatpush.bf16.msra.mxu0 %v1661
        %1722 = vmatpush.bf16.msra.mxu0 %v1657
        %1723 = vmatpush.bf16.msra.mxu0 %v1653
        %1724 = vmatpush.bf16.msra.mxu0 %v1649
        %1725 = vmatpush.bf16.msra.mxu0 %v1645
        %1726 = vmatpush.bf16.msra.mxu0 %v1641
        %1727 = vmatpush.bf16.msra.mxu0 %v1637
        %1728 = vmatpush.bf16.msra.mxu0 %v1633
        %1729 = vmatmul.bf16.gmra.mxu0 %v1492
        %v1730 = vpop.f32.mrf.mxu0
        %v1731 = vadd.f32 %v1529, %v1730
        %v1732 = vpop.f32.mrf.mxu0
        %1733 = vdwg.mxu0
        %1734 = vmatpush.bf16.msra.mxu0 %v1662
        %1735 = vmatpush.bf16.msra.mxu0 %v1658
        %1736 = vmatpush.bf16.msra.mxu0 %v1654
        %1737 = vmatpush.bf16.msra.mxu0 %v1650
        %1738 = vmatpush.bf16.msra.mxu0 %v1646
        %1739 = vmatpush.bf16.msra.mxu0 %v1642
        %1740 = vmatpush.bf16.msra.mxu0 %v1638
        %1741 = vmatpush.bf16.msra.mxu0 %v1634
        %1742 = vmatmul.bf16.gmra.mxu0 %v1492
        %v1743 = vpop.f32.mrf.mxu0
        %v1744 = vadd.f32 %v1530, %v1743
        %v1745 = vpop.f32.mrf.mxu0
        %1746 = vdwg.mxu0
        %v1747 = vmax.f32 %v1705, 0.0
        %v1748 = vmax.f32 %v1718, 0.0
        %v1749 = vmax.f32 %v1731, 0.0
        %v1750 = vmax.f32 %v1744, 0.0
        %v1751 = vpack.c.bf16 %v1747, %v1747
        %v1752 = vpack.c.bf16 %v1748, %v1748
        %v1753 = vpack.c.bf16 %v1749, %v1749
        %v1754 = vpack.c.bf16 %v1750, %v1750
        %v1755 = vld [vmem:[#allocation12] sm:$0xf]
        %v1756 = vld [vmem:[#allocation12 + $0x4] sm:$0xf]
        %v1757 = vld [vmem:[#allocation12 + $0x8] sm:$0xf]
        %v1758 = vld [vmem:[#allocation12 + $0xc] sm:$0xf]
        %v1759 = vld [vmem:[#allocation12 + $0x10] sm:$0xf]
        %v1760 = vld [vmem:[#allocation12 + $0x14] sm:$0xf]
        %v1761 = vld [vmem:[#allocation12 + $0x18] sm:$0xf]
        %v1762 = vld [vmem:[#allocation12 + $0x1c] sm:$0xf]
        %v1763 = vld [vmem:[#allocation12 + $0x20] sm:$0xf]
        %v1764 = vld [vmem:[#allocation12 + $0x24] sm:$0xf]
        %v1765 = vld [vmem:[#allocation12 + $0x28] sm:$0xf]
        %v1766 = vld [vmem:[#allocation12 + $0x2c] sm:$0xf]
        %v1767 = vld [vmem:[#allocation12 + $0x30] sm:$0xf]
        %v1768 = vld [vmem:[#allocation12 + $0x34] sm:$0xf]
        %v1769 = vld [vmem:[#allocation12 + $0x38] sm:$0xf]
        %v1770 = vld [vmem:[#allocation12 + $0x3c] sm:$0xf]
        %v1771 = vld [vmem:[#allocation12 + $0x40] sm:$0xf]
        %v1772 = vld [vmem:[#allocation12 + $0x44] sm:$0xf]
        %v1773 = vld [vmem:[#allocation12 + $0x48] sm:$0xf]
        %v1774 = vld [vmem:[#allocation12 + $0x4c] sm:$0xf]
        %v1775 = vld [vmem:[#allocation12 + $0x50] sm:$0xf]
        %v1776 = vld [vmem:[#allocation12 + $0x54] sm:$0xf]
        %v1777 = vld [vmem:[#allocation12 + $0x58] sm:$0xf]
        %v1778 = vld [vmem:[#allocation12 + $0x5c] sm:$0xf]
        %v1779 = vld [vmem:[#allocation12 + $0x60] sm:$0xf]
        %v1780 = vld [vmem:[#allocation12 + $0x64] sm:$0xf]
        %v1781 = vld [vmem:[#allocation12 + $0x68] sm:$0xf]
        %v1782 = vld [vmem:[#allocation12 + $0x6c] sm:$0xf]
        %v1783 = vld [vmem:[#allocation12 + $0x70] sm:$0xf]
        %v1784 = vld [vmem:[#allocation12 + $0x74] sm:$0xf]
        %v1785 = vld [vmem:[#allocation12 + $0x78] sm:$0xf]
        %v1786 = vld [vmem:[#allocation12 + $0x7c] sm:$0xf]
        %v1787 = vld [vmem:[#allocation12 + $0x80] sm:$0xf]
        %v1788 = vld [vmem:[#allocation12 + $0x84] sm:$0xf]
        %v1789 = vld [vmem:[#allocation12 + $0x88] sm:$0xf]
        %v1790 = vld [vmem:[#allocation12 + $0x8c] sm:$0xf]
        %v1791 = vld [vmem:[#allocation12 + $0x90] sm:$0xf]
        %v1792 = vld [vmem:[#allocation12 + $0x94] sm:$0xf]
        %v1793 = vld [vmem:[#allocation12 + $0x98] sm:$0xf]
        %v1794 = vld [vmem:[#allocation12 + $0x9c] sm:$0xf]
        %v1795 = vld [vmem:[#allocation12 + $0xa0] sm:$0xf]
        %v1796 = vld [vmem:[#allocation12 + $0xa4] sm:$0xf]
        %v1797 = vld [vmem:[#allocation12 + $0xa8] sm:$0xf]
        %v1798 = vld [vmem:[#allocation12 + $0xac] sm:$0xf]
        %v1799 = vld [vmem:[#allocation12 + $0xb0] sm:$0xf]
        %v1800 = vld [vmem:[#allocation12 + $0xb4] sm:$0xf]
        %v1801 = vld [vmem:[#allocation12 + $0xb8] sm:$0xf]
        %v1802 = vld [vmem:[#allocation12 + $0xbc] sm:$0xf]
        %v1803 = vld [vmem:[#allocation12 + $0xc0] sm:$0xf]
        %v1804 = vld [vmem:[#allocation12 + $0xc4] sm:$0xf]
        %v1805 = vld [vmem:[#allocation12 + $0xc8] sm:$0xf]
        %v1806 = vld [vmem:[#allocation12 + $0xcc] sm:$0xf]
        %v1807 = vld [vmem:[#allocation12 + $0xd0] sm:$0xf]
        %v1808 = vld [vmem:[#allocation12 + $0xd4] sm:$0xf]
        %v1809 = vld [vmem:[#allocation12 + $0xd8] sm:$0xf]
        %v1810 = vld [vmem:[#allocation12 + $0xdc] sm:$0xf]
        %v1811 = vld [vmem:[#allocation12 + $0xe0] sm:$0xf]
        %v1812 = vld [vmem:[#allocation12 + $0xe4] sm:$0xf]
        %v1813 = vld [vmem:[#allocation12 + $0xe8] sm:$0xf]
        %v1814 = vld [vmem:[#allocation12 + $0xec] sm:$0xf]
        %v1815 = vld [vmem:[#allocation12 + $0xf0] sm:$0xf]
        %v1816 = vld [vmem:[#allocation12 + $0xf4] sm:$0xf]
        %v1817 = vld [vmem:[#allocation12 + $0xf8] sm:$0xf]
        %v1818 = vld [vmem:[#allocation12 + $0xfc] sm:$0xf]
        %v1819 = vld [vmem:[%s19] sm:$0x1]
        %v1821 = vperm.slane %v1819, 0
        %v1887 = vunpack.c.l.b16 %v1755
        %v1888 = vunpack.c.l.b16 %v1756
        %v1889 = vunpack.c.l.b16 %v1757
        %v1890 = vunpack.c.l.b16 %v1758
        %v1891 = vunpack.c.l.b16 %v1759
        %v1892 = vunpack.c.l.b16 %v1760
        %v1893 = vunpack.c.l.b16 %v1761
        %v1894 = vunpack.c.l.b16 %v1762
        %v1895 = vunpack.c.l.b16 %v1763
        %v1896 = vunpack.c.l.b16 %v1764
        %v1897 = vunpack.c.l.b16 %v1765
        %v1898 = vunpack.c.l.b16 %v1766
        %v1899 = vunpack.c.l.b16 %v1767
        %v1900 = vunpack.c.l.b16 %v1768
        %v1901 = vunpack.c.l.b16 %v1769
        %v1902 = vunpack.c.l.b16 %v1770
        %v1903 = vunpack.c.l.b16 %v1771
        %v1904 = vunpack.c.l.b16 %v1772
        %v1905 = vunpack.c.l.b16 %v1773
        %v1906 = vunpack.c.l.b16 %v1774
        %v1907 = vunpack.c.l.b16 %v1775
        %v1908 = vunpack.c.l.b16 %v1776
        %v1909 = vunpack.c.l.b16 %v1777
        %v1910 = vunpack.c.l.b16 %v1778
        %v1911 = vunpack.c.l.b16 %v1779
        %v1912 = vunpack.c.l.b16 %v1780
        %v1913 = vunpack.c.l.b16 %v1781
        %v1914 = vunpack.c.l.b16 %v1782
        %v1915 = vunpack.c.l.b16 %v1783
        %v1916 = vunpack.c.l.b16 %v1784
        %v1917 = vunpack.c.l.b16 %v1785
        %v1918 = vunpack.c.l.b16 %v1786
        %v1919 = vunpack.c.l.b16 %v1787
        %v1920 = vunpack.c.l.b16 %v1788
        %v1921 = vunpack.c.l.b16 %v1789
        %v1922 = vunpack.c.l.b16 %v1790
        %v1923 = vunpack.c.l.b16 %v1791
        %v1924 = vunpack.c.l.b16 %v1792
        %v1925 = vunpack.c.l.b16 %v1793
        %v1926 = vunpack.c.l.b16 %v1794
        %v1927 = vunpack.c.l.b16 %v1795
        %v1928 = vunpack.c.l.b16 %v1796
        %v1929 = vunpack.c.l.b16 %v1797
        %v1930 = vunpack.c.l.b16 %v1798
        %v1931 = vunpack.c.l.b16 %v1799
        %v1932 = vunpack.c.l.b16 %v1800
        %v1933 = vunpack.c.l.b16 %v1801
        %v1934 = vunpack.c.l.b16 %v1802
        %v1935 = vunpack.c.l.b16 %v1803
        %v1936 = vunpack.c.l.b16 %v1804
        %v1937 = vunpack.c.l.b16 %v1805
        %v1938 = vunpack.c.l.b16 %v1806
        %v1939 = vunpack.c.l.b16 %v1807
        %v1940 = vunpack.c.l.b16 %v1808
        %v1941 = vunpack.c.l.b16 %v1809
        %v1942 = vunpack.c.l.b16 %v1810
        %v1943 = vunpack.c.l.b16 %v1811
        %v1944 = vunpack.c.l.b16 %v1812
        %v1945 = vunpack.c.l.b16 %v1813
        %v1946 = vunpack.c.l.b16 %v1814
        %v1947 = vunpack.c.l.b16 %v1815
        %v1948 = vunpack.c.l.b16 %v1816
        %v1949 = vunpack.c.l.b16 %v1817
        %v1950 = vunpack.c.l.b16 %v1818
        %v1951 = vpack.c.b16 %v1888, %v1887
        %v1952 = vpack.c.b16 %v1890, %v1889
        %v1953 = vpack.c.b16 %v1892, %v1891
        %v1954 = vpack.c.b16 %v1894, %v1893
        %v1955 = vpack.c.b16 %v1896, %v1895
        %v1956 = vpack.c.b16 %v1898, %v1897
        %v1957 = vpack.c.b16 %v1900, %v1899
        %v1958 = vpack.c.b16 %v1902, %v1901
        %v1959 = vpack.c.b16 %v1904, %v1903
        %v1960 = vpack.c.b16 %v1906, %v1905
        %v1961 = vpack.c.b16 %v1908, %v1907
        %v1962 = vpack.c.b16 %v1910, %v1909
        %v1963 = vpack.c.b16 %v1912, %v1911
        %v1964 = vpack.c.b16 %v1914, %v1913
        %v1965 = vpack.c.b16 %v1916, %v1915
        %v1966 = vpack.c.b16 %v1918, %v1917
        %v1967 = vpack.c.b16 %v1920, %v1919
        %v1968 = vpack.c.b16 %v1922, %v1921
        %v1969 = vpack.c.b16 %v1924, %v1923
        %v1970 = vpack.c.b16 %v1926, %v1925
        %v1971 = vpack.c.b16 %v1928, %v1927
        %v1972 = vpack.c.b16 %v1930, %v1929
        %v1973 = vpack.c.b16 %v1932, %v1931
        %v1974 = vpack.c.b16 %v1934, %v1933
        %v1975 = vpack.c.b16 %v1936, %v1935
        %v1976 = vpack.c.b16 %v1938, %v1937
        %v1977 = vpack.c.b16 %v1940, %v1939
        %v1978 = vpack.c.b16 %v1942, %v1941
        %v1979 = vpack.c.b16 %v1944, %v1943
        %v1980 = vpack.c.b16 %v1946, %v1945
        %v1981 = vpack.c.b16 %v1948, %v1947
        %v1982 = vpack.c.b16 %v1950, %v1949
        %2015 = vmatpush.bf16.msra.mxu0 %v1958
        %2016 = vmatpush.bf16.msra.mxu0 %v1957
        %2017 = vmatpush.bf16.msra.mxu0 %v1956
        %2018 = vmatpush.bf16.msra.mxu0 %v1955
        %2019 = vmatpush.bf16.msra.mxu0 %v1954
        %2020 = vmatpush.bf16.msra.mxu0 %v1953
        %2021 = vmatpush.bf16.msra.mxu0 %v1952
        %2022 = vmatpush.bf16.msra.mxu0 %v1951
        %2023 = vmatmul.bf16.gmra.mxu0 %v1751
        %v2024 = vpop.f32.mrf.mxu0
        %v2025 = vadd.f32 %v1821, %v2024
        %v2026 = vpop.f32.mrf.mxu0
        %2027 = vdwg.mxu0
        %2028 = vmatpush.bf16.msra.mxu0 %v1966
        %2029 = vmatpush.bf16.msra.mxu0 %v1965
        %2030 = vmatpush.bf16.msra.mxu0 %v1964
        %2031 = vmatpush.bf16.msra.mxu0 %v1963
        %2032 = vmatpush.bf16.msra.mxu0 %v1962
        %2033 = vmatpush.bf16.msra.mxu0 %v1961
        %2034 = vmatpush.bf16.msra.mxu0 %v1960
        %2035 = vmatpush.bf16.msra.mxu0 %v1959
        %2036 = vmatmul.bf16.gmra.mxu0 %v1752
        %v2037 = vpop.f32.mrf.mxu0
        %v2038 = vadd.f32 %v2025, %v2037
        %v2039 = vpop.f32.mrf.mxu0
        %2040 = vdwg.mxu0
        %2041 = vmatpush.bf16.msra.mxu0 %v1974
        %2042 = vmatpush.bf16.msra.mxu0 %v1973
        %2043 = vmatpush.bf16.msra.mxu0 %v1972
        %2044 = vmatpush.bf16.msra.mxu0 %v1971
        %2045 = vmatpush.bf16.msra.mxu0 %v1970
        %2046 = vmatpush.bf16.msra.mxu0 %v1969
        %2047 = vmatpush.bf16.msra.mxu0 %v1968
        %2048 = vmatpush.bf16.msra.mxu0 %v1967
        %2049 = vmatmul.bf16.gmra.mxu0 %v1753
        %v2050 = vpop.f32.mrf.mxu0
        %v2051 = vadd.f32 %v2038, %v2050
        %v2052 = vpop.f32.mrf.mxu0
        %2053 = vdwg.mxu0
        %2054 = vmatpush.bf16.msra.mxu0 %v1982
        %2055 = vmatpush.bf16.msra.mxu0 %v1981
        %2056 = vmatpush.bf16.msra.mxu0 %v1980
        %2057 = vmatpush.bf16.msra.mxu0 %v1979
        %2058 = vmatpush.bf16.msra.mxu0 %v1978
        %2059 = vmatpush.bf16.msra.mxu0 %v1977
        %2060 = vmatpush.bf16.msra.mxu0 %v1976
        %2061 = vmatpush.bf16.msra.mxu0 %v1975
        %2062 = vmatmul.bf16.gmra.mxu0 %v1754
        %v2063 = vpop.f32.mrf.mxu0
        %v2064 = vadd.f32 %v2051, %v2063
        %v2065 = vpop.f32.mrf.mxu0
        %2066 = vdwg.mxu0
        %v2067 = vadd.f32 %v2064, %v1491
        %v2068 = vld [vmem:[%s20] sm:$0x1]
        %v2069 = vld [vmem:[%s21] sm:$0x1]
        %2070 = vadd.xlane.f32.xlu0 %v2067
        %v2071 = vpop.xlane.xlu0 %2070
        %v2072 = vmul.f32 %v2071, %v888
        %v2073 = vsub.f32 %v2067, %v2072
        %v2074 = vmul.f32 %v2073, %v2073
        %2075 = vadd.xlane.f32.xlu0 %v2074
        %v2076 = vpop.xlane.xlu0 %2075
        %v2077 = vmul.f32 %v2076, %v888
        %v2078 = vadd.f32 %v2077, 1e-05
        %v2079 = vrsqrt.pop %v2078
        %v2080 = vmul.f32 %v2079, %v2078
        %v2081 = vmul.f32 %v2080, %v2079
        %v2082 = vmul.f32 0.5, %v2081
        %v2083 = vsub.f32 1.5, %v2082
        %v2084 = vmul.f32 %v2079, %v2083
        %vm2085 = vweird.f32 %v2078
        %vm2086 = vweird.f32 %v2079
        %vm2087 = vmor %vm2085, %vm2086
        %v2088 = vsel %vm2087, %v2079, %v2084
        %v2089 = vmul.f32 %v2073, %v2088
        %v2091 = vperm.slane %v2068, 0
        %v2093 = vmul.f32 %v2089, %v2091
        %v2095 = vperm.slane %v2069, 0
        %v2097 = vadd.f32 %v2093, %v2095
        %2098 = vst [vmem:[%s798] sm:$0xff] %v2097
        %s2099 = sand.u32 %s522, 1
        %s2100 = scalar_lea.sflag [#allocation5], %s2099
        %s2101 = sand.u32 %s522, 1
        %s2102 = smul.addr %s2101, 8
        %s2103 = scalar_lea.vmem [#allocation14], %s2102
        // Predicated region
        $region133: #{tpu_custom_call.1} parent=107 // pred_check
          %p2104 = pneg %p532
        $region134: #{tpu_custom_call.1} parent=107 // pred_check_branch
          %2106 = sbr.rel (%p2104) target = $region136
        $region135: #{tpu_custom_call.1} parent=107 // pred_region
          %2108 = vsyncadd %s2100, 0
          %s2109 = smul.addr %s42, 8
          %s2110 = scalar_lea.hbm %s22, %s2109
          %s2112 = sshll.u32 %s2103, 4
          %s2113 = int_to_ptr.vmem [resolvable:$true] %s2112
          %s2114 = sshll.u32 %s2110, 4
          %s2115 = int_to_ptr.hbm [resolvable:$true] %s2114
          %2117 = dma.vmem_to_hbm [thread:$0]  %s2113, 128, %s2115, %s2100
        $region136: #{tpu_custom_call.1} parent=107 // pred_fallthru
          _
      $region108: #{tpu_custom_call.1} parent=5 // pred_fallthru
        _
      %p2118 = scmp.le.s32.totalorder 2, %s37
      // Predicated region
      $region137: #{tpu_custom_call.1} parent=5 // pred_check
        %p2119 = pneg %p2118
      $region138: #{tpu_custom_call.1} parent=5 // pred_check_branch
        %2121 = sbr.rel (%p2119) target = $region140
      $region139: #{tpu_custom_call.1} parent=5 // pred_region
        %s2122 = ssub.s32 %s37, 2
        // Predicated region
        $region141: #{tpu_custom_call.1} parent=139 // pred_check
          %p2123 = pneg %p538
        $region142: #{tpu_custom_call.1} parent=139 // pred_check_branch
          %2125 = sbr.rel (%p2123) target = $region144
        $region143: #{tpu_custom_call.1} parent=139 // pred_region
          %s2126 = sand.u32 %s523, 1
          %s2127 = scalar_lea.sflag [#allocation5], %s2126
          %s2128 = sand.u32 %s523, 1
          %s2129 = smul.addr %s2128, 8
          %s2130 = scalar_lea.vmem [#allocation14], %s2129
          %2132 = dma.done %s2127, 128
        $region144: #{tpu_custom_call.1} parent=139 // pred_fallthru
          _
      $region140: #{tpu_custom_call.1} parent=5 // pred_fallthru
        _
    $region6: #{tpu_custom_call.1} parent=1 // loop_footer
      %s41 = sadd.s32 1, %s37
    $region7: #{tpu_custom_call.1} parent=1 // loop_footer_branch
      %36 = sbr.rel target = $region3
    $region8: #{tpu_custom_call.1} parent=1 // loop_exit
      _
    %2133 = vsyncpa [#allocation4], 1
    %s2134 = scalar_lea.sflag [#allocation4], 1
    %2135 = vsyncpa %s2134, 1
    %2136 = vsyncpa [#allocation7], 1
    %2137 = vsyncpa [#allocation10], 1
    %2138 = vsyncpa [#allocation13], 1
    %2139 = vsyncpa [#allocation5], 1
    %s2140 = scalar_lea.sflag [#allocation5], 1
    %2141 = vsyncpa %s2140, 1

// kernel: tpu_custom_call.1
$region0: #{tpu_custom_call.1}
  #allocation0 [shape = 'u32[]', space=smem, size = 0x4, offset = 0x4, fixed_abs, tag = 'smem constant byte address 0x4 - core index']
  #allocation1 [shape = 'u32[72,128]{1,0:T(1,128)}', space=vmem, size = 0x9000, scoped, tag = 'internal scratch']
  #allocation2 [shape = 'bf16[8,128]{1,0:T(8,128)(2,1)}', space=vmem, size = 0x800, scoped, tag = 'scratch operand']
  %s0 = inlined_call_operand.hbm [shape: f32[2,8,128], index: 0, kind: input, shape index: {}]
  %s1 = inlined_call_operand.vmem [shape: f32[2,16,128], index: 1, kind: input, shape index: {}]
  %s2 = inlined_call_operand.vmem [shape: bf16[16,8], index: 2, kind: input, shape index: {}]
  %s3 = inlined_call_operand.vmem [shape: f32[16,1], index: 3, kind: input, shape index: {}]
  %s4 = inlined_call_operand.vmem [shape: bf16[8,16], index: 4, kind: input, shape index: {}]
  %s5 = inlined_call_operand.vmem [shape: f32[8,1], index: 5, kind: input, shape index: {}]
  %s6 = inlined_call_operand.vmem [shape: f32[1,128], index: 6, kind: input, shape index: {}]
  %s7 = inlined_call_operand.vmem [shape: f32[1,128], index: 7, kind: input, shape index: {}]
  %s8 = inlined_call_operand.hbm [shape: bf16[128,128], index: 8, kind: input, shape index: {}]
  %s9 = inlined_call_operand.vmem [shape: f32[1,128], index: 9, kind: input, shape index: {}]
  %s10 = inlined_call_operand.hbm [shape: bf16[128,256], index: 10, kind: input, shape index: {}]
  %s11 = inlined_call_operand.vmem [shape: f32[1,256], index: 11, kind: input, shape index: {}]
  %s12 = inlined_call_operand.hbm [shape: bf16[128,128], index: 12, kind: input, shape index: {}]
  %s13 = inlined_call_operand.vmem [shape: f32[1,128], index: 13, kind: input, shape index: {}]
  %s14 = inlined_call_operand.vmem [shape: f32[1,128], index: 14, kind: input, shape index: {}]
  %s15 = inlined_call_operand.vmem [shape: f32[1,128], index: 15, kind: input, shape index: {}]
  %s16 = inlined_call_operand.hbm [shape: bf16[128,512], index: 16, kind: input, shape index: {}]
  %s17 = inlined_call_operand.vmem [shape: f32[1,512], index: 17, kind: input, shape index: {}]
  %s18 = inlined_call_operand.hbm [shape: bf16[512,128], index: 18, kind: input, shape index: {}]
  %s19 = inlined_call_operand.vmem [shape: f32[1,128], index: 19, kind: input, shape index: {}]
  %s20 = inlined_call_operand.vmem [shape: f32[1,128], index: 20, kind: input, shape index: {}]
  %s21 = inlined_call_operand.vmem [shape: f32[1,128], index: 21, kind: input, shape index: {}]
  %s22 = inlined_call_operand.hbm [shape: f32[2,8,128], index: 22, kind: output, shape index: {}]
  %s23 = sld [smem:[#allocation0]]
  $region145: #{tpu_custom_call.1} parent=0
    _
  %s25 = ssub.s32 1, %s23
  %s26 = scalar_select 0, %s25, %s23
  $region1: #{tpu_custom_call.1} parent=0
    #allocation3 [shape = 'u8[8192]{0}', space=vmem, size = 0x2000, scoped, tag = 'input window, operand 0']
    #allocation4 [shape = 's32[2]{0}', space=sflag, size = 0x8, scoped, tag = 'scoped memory for tpu_custom_call.1']
    #allocation5 [shape = 's32[2]{0}', space=sflag, size = 0x8, scoped, tag = 'scoped memory for tpu_custom_call.1']
    #allocation6 [shape = 'u8[32768]{0}', space=vmem, size = 0x8000, scoped, tag = 'input window, operand 8, single buffered']
    #allocation7 [shape = 's32[1]{0}', space=sflag, size = 0x4, scoped, tag = 'scoped memory for tpu_custom_call.1']
    #allocation8 [shape = 'u8[65536]{0}', space=vmem, size = 0x10000, scoped, tag = 'input window, operand 10, single buffered']
    #allocation9 [shape = 'u8[32768]{0}', space=vmem, size = 0x8000, scoped, tag = 'input window, operand 12, single buffered']
    #allocation10 [shape = 's32[1]{0}', space=sflag, size = 0x4, scoped, tag = 'scoped memory for tpu_custom_call.1']
    #allocation11 [shape = 'u8[131072]{0}', space=vmem, size = 0x20000, scoped, tag = 'input window, operand 16, single buffered']
    #allocation12 [shape = 'u8[131072]{0}', space=vmem, size = 0x20000, scoped, tag = 'input window, operand 18, single buffered']
    #allocation13 [shape = 's32[1]{0}', space=sflag, size = 0x4, scoped, tag = 'scoped memory for tpu_custom_call.1']
    #allocation14 [shape = 'u8[8192]{0}', space=vmem, size = 0x2000, scoped, tag = 'output window, operand 0']
    %27 = vsyncpa [#allocation4], 0
    %s28 = scalar_lea.sflag [#allocation4], 1
    %29 = vsyncpa %s28, 0
    %30 = vsyncpa [#allocation7], 0
    %31 = vsyncpa [#allocation10], 0
    %32 = vsyncpa [#allocation13], 0
    %33 = vsyncpa [#allocation5], 0
    %s34 = scalar_lea.sflag [#allocation5], 1
    %35 = vsyncpa %s34, 0
    loop: start=0, step=1, limit=4
    $region2: #{tpu_custom_call.1} parent=1 // loop_pre_header
      _
    $region3: #{tpu_custom_call.1} parent=1 // loop_header
      %s37 = sphi 0, %s41
      %p38 = scmp.ge.s32.totalorder %s37, 4
      %s47 = sphi 0, %s49
      %s50 = sphi 0, %s47
      %s51 = sphi 0, %s50
      %s67 = sphi 0, %s51
      %s73 = sphi 0, %s75
      %s76 = sphi 0, %s73
      %s77 = sphi 0, %s76
      %s93 = sphi 0, %s77
      %s97 = sphi 0, %s97
      %s99 = sphi 0, %s97
      %s100 = sphi 0, %s99
      %s114 = sphi 0, %s100
      %s118 = sphi 0, %s118
      %s120 = sphi 0, %s118
      %s121 = sphi 0, %s120
      %s135 = sphi 0, %s121
      %s139 = sphi 0, %s139
      %s141 = sphi 0, %s139
      %s142 = sphi 0, %s141
      %s156 = sphi 0, %s142
      %s160 = sphi 0, %s160
      %s162 = sphi 0, %s160
      %s163 = sphi 0, %s162
      %s177 = sphi 0, %s163
      %s181 = sphi 0, %s181
      %s183 = sphi 0, %s181
      %s184 = sphi 0, %s183
      %s198 = sphi 0, %s184
      %s202 = sphi 0, %s202
      %s204 = sphi 0, %s202
      %s205 = sphi 0, %s204
      %s219 = sphi 0, %s205
      %s223 = sphi 0, %s223
      %s225 = sphi 0, %s223
      %s226 = sphi 0, %s225
      %s240 = sphi 0, %s226
      %s244 = sphi 0, %s244
      %s246 = sphi 0, %s244
      %s247 = sphi 0, %s246
      %s261 = sphi 0, %s247
      %s265 = sphi 0, %s265
      %s267 = sphi 0, %s265
      %s268 = sphi 0, %s267
      %s282 = sphi 0, %s268
      %s286 = sphi 0, %s286
      %s288 = sphi 0, %s286
      %s289 = sphi 0, %s288
      %s303 = sphi 0, %s289
      %s307 = sphi 0, %s307
      %s309 = sphi 0, %s307
      %s310 = sphi 0, %s309
      %s324 = sphi 0, %s310
      %s328 = sphi 0, %s328
      %s330 = sphi 0, %s328
      %s331 = sphi 0, %s330
      %s345 = sphi 0, %s331
      %s349 = sphi 0, %s349
      %s351 = sphi 0, %s349
      %s352 = sphi 0, %s351
      %s366 = sphi 0, %s352
      %s370 = sphi 0, %s370
      %s372 = sphi 0, %s370
      %s373 = sphi 0, %s372
      %s387 = sphi 0, %s373
      %s391 = sphi 0, %s391
      %s393 = sphi 0, %s391
      %s394 = sphi 0, %s393
      %s408 = sphi 0, %s394
      %s412 = sphi 0, %s412
      %s414 = sphi 0, %s412
      %s415 = sphi 0, %s414
      %s429 = sphi 0, %s415
      %s433 = sphi 0, %s433
      %s435 = sphi 0, %s433
      %s436 = sphi 0, %s435
      %s450 = sphi 0, %s436
      %s454 = sphi 0, %s454
      %s456 = sphi 0, %s454
      %s457 = sphi 0, %s456
      %s471 = sphi 0, %s457
      %s475 = sphi 0, %s475
      %s477 = sphi 0, %s475
      %s478 = sphi 0, %s477
      %s492 = sphi 0, %s478
      %s496 = sphi 0, %s496
      %s498 = sphi 0, %s496
      %s499 = sphi 0, %s498
      %s513 = sphi 0, %s499
      %s519 = sphi 0, %s521
      %s522 = sphi 0, %s519
      %s523 = sphi 0, %s522
      %s539 = sphi 0, %s523
    $region4: #{tpu_custom_call.1} parent=1 // loop_header_branch
      %40 = sbr.rel (%p38) target = $region8
    $region5: #{tpu_custom_call.1} parent=1 // loop_body
      %s42 = ssub.s32 %s37, 1
      %s43 = ssub.s32 %s37, 2
      %s44 = sadd.s32 %s37, 1
      %s45 = ssub.s32 %s37, %s44
      %p46 = scmp.eq.s32.totalorder %s45, 0
      %s48 = sadd.s32 %s47, 1
      %s49 = scalar_select %p46, %s47, %s48
      %p52 = pneg %p46
      %p53 = scmp.eq.s32.totalorder %s37, 1
      %p54 = por %p52, %p53
      %p55 = scmp.ne.s32.totalorder %s47, %s50
      %p56 = scmp.eq.s32.totalorder %s37, 0
      %p57 = por %p55, %p56
      %p58 = scmp.ne.s32.totalorder %s47, %s50
      %p59 = scmp.eq.s32.totalorder %s42, 1
      %p60 = por %p58, %p59
      %p61 = scmp.ne.s32.totalorder %s50, %s51
      %p62 = scmp.eq.s32.totalorder %s42, 0
      %p63 = por %p61, %p62
      %p64 = scmp.ne.s32.totalorder %s50, %s51
      %p65 = scmp.eq.s32.totalorder %s43, 1
      %p66 = por %p64, %p65
      %p68 = scmp.ne.s32.totalorder %s51, %s67
      %p69 = scmp.eq.s32.totalorder %s43, 0
      %p70 = por %p68, %p69
      %s71 = ssub.s32 %s37, %s44
      %p72 = scmp.eq.s32.totalorder %s71, 0
      %s74 = sadd.s32 %s73, 1
      %s75 = scalar_select %p72, %s73, %s74
      %p78 = pneg %p72
      %p79 = scmp.eq.s32.totalorder %s37, 1
      %p80 = por %p78, %p79
      %p81 = scmp.ne.s32.totalorder %s73, %s76
      %p82 = scmp.eq.s32.totalorder %s37, 0
      %p83 = por %p81, %p82
      %p84 = scmp.ne.s32.totalorder %s73, %s76
      %p85 = scmp.eq.s32.totalorder %s42, 1
      %p86 = por %p84, %p85
      %p87 = scmp.ne.s32.totalorder %s76, %s77
      %p88 = scmp.eq.s32.totalorder %s42, 0
      %p89 = por %p87, %p88
      %p90 = scmp.ne.s32.totalorder %s76, %s77
      %p91 = scmp.eq.s32.totalorder %s43, 1
      %p92 = por %p90, %p91
      %p94 = scmp.ne.s32.totalorder %s77, %s93
      %p95 = scmp.eq.s32.totalorder %s43, 0
      %p96 = por %p94, %p95
      %s98 = sadd.s32 %s97, 1
      %p101 = scmp.eq.s32.totalorder %s37, 1
      %p102 = scmp.ne.s32.totalorder %s97, %s99
      %p103 = scmp.eq.s32.totalorder %s37, 0
      %p104 = por %p102, %p103
      %p105 = scmp.ne.s32.totalorder %s97, %s99
      %p106 = scmp.eq.s32.totalorder %s42, 1
      %p107 = por %p105, %p106
      %p108 = scmp.ne.s32.totalorder %s99, %s100
      %p109 = scmp.eq.s32.totalorder %s42, 0
      %p110 = por %p108, %p109
      %p111 = scmp.ne.s32.totalorder %s99, %s100
      %p112 = scmp.eq.s32.totalorder %s43, 1
      %p113 = por %p111, %p112
      %p115 = scmp.ne.s32.totalorder %s100, %s114
      %p116 = scmp.eq.s32.totalorder %s43, 0
      %p117 = por %p115, %p116
      %s119 = sadd.s32 %s118, 1
      %p122 = scmp.eq.s32.totalorder %s37, 1
      %p123 = scmp.ne.s32.totalorder %s118, %s120
      %p124 = scmp.eq.s32.totalorder %s37, 0
      %p125 = por %p123, %p124
      %p126 = scmp.ne.s32.totalorder %s118, %s120
      %p127 = scmp.eq.s32.totalorder %s42, 1
      %p128 = por %p126, %p127
      %p129 = scmp.ne.s32.totalorder %s120, %s121
      %p130 = scmp.eq.s32.totalorder %s42, 0
      %p131 = por %p129, %p130
      %p132 = scmp.ne.s32.totalorder %s120, %s121
      %p133 = scmp.eq.s32.totalorder %s43, 1
      %p134 = por %p132, %p133
      %p136 = scmp.ne.s32.totalorder %s121, %s135
      %p137 = scmp.eq.s32.totalorder %s43, 0
      %p138 = por %p136, %p137
      %s140 = sadd.s32 %s139, 1
      %p143 = scmp.eq.s32.totalorder %s37, 1
      %p144 = scmp.ne.s32.totalorder %s139, %s141
      %p145 = scmp.eq.s32.totalorder %s37, 0
      %p146 = por %p144, %p145
      %p147 = scmp.ne.s32.totalorder %s139, %s141
      %p148 = scmp.eq.s32.totalorder %s42, 1
      %p149 = por %p147, %p148
      %p150 = scmp.ne.s32.totalorder %s141, %s142
      %p151 = scmp.eq.s32.totalorder %s42, 0
      %p152 = por %p150, %p151
      %p153 = scmp.ne.s32.totalorder %s141, %s142
      %p154 = scmp.eq.s32.totalorder %s43, 1
      %p155 = por %p153, %p154
      %p157 = scmp.ne.s32.totalorder %s142, %s156
      %p158 = scmp.eq.s32.totalorder %s43, 0
      %p159 = por %p157, %p158
      %s161 = sadd.s32 %s160, 1
      %p164 = scmp.eq.s32.totalorder %s37, 1
      %p165 = scmp.ne.s32.totalorder %s160, %s162
      %p166 = scmp.eq.s32.totalorder %s37, 0
      %p167 = por %p165, %p166
      %p168 = scmp.ne.s32.totalorder %s160, %s162
      %p169 = scmp.eq.s32.totalorder %s42, 1
      %p170 = por %p168, %p169
      %p171 = scmp.ne.s32.totalorder %s162, %s163
      %p172 = scmp.eq.s32.totalorder %s42, 0
      %p173 = por %p171, %p172
      %p174 = scmp.ne.s32.totalorder %s162, %s163
      %p175 = scmp.eq.s32.totalorder %s43, 1
      %p176 = por %p174, %p175
      %p178 = scmp.ne.s32.totalorder %s163, %s177
      %p179 = scmp.eq.s32.totalorder %s43, 0
      %p180 = por %p178, %p179
      %s182 = sadd.s32 %s181, 1
      %p185 = scmp.eq.s32.totalorder %s37, 1
      %p186 = scmp.ne.s32.totalorder %s181, %s183
      %p187 = scmp.eq.s32.totalorder %s37, 0
      %p188 = por %p186, %p187
      %p189 = scmp.ne.s32.totalorder %s181, %s183
      %p190 = scmp.eq.s32.totalorder %s42, 1
      %p191 = por %p189, %p190
      %p192 = scmp.ne.s32.totalorder %s183, %s184
      %p193 = scmp.eq.s32.totalorder %s42, 0
      %p194 = por %p192, %p193
      %p195 = scmp.ne.s32.totalorder %s183, %s184
      %p196 = scmp.eq.s32.totalorder %s43, 1
      %p197 = por %p195, %p196
      %p199 = scmp.ne.s32.totalorder %s184, %s198
      %p200 = scmp.eq.s32.totalorder %s43, 0
      %p201 = por %p199, %p200
      %s203 = sadd.s32 %s202, 1
      %p206 = scmp.eq.s32.totalorder %s37, 1
      %p207 = scmp.ne.s32.totalorder %s202, %s204
      %p208 = scmp.eq.s32.totalorder %s37, 0
      %p209 = por %p207, %p208
      %p210 = scmp.ne.s32.totalorder %s202, %s204
      %p211 = scmp.eq.s32.totalorder %s42, 1
      %p212 = por %p210, %p211
      %p213 = scmp.ne.s32.totalorder %s204, %s205
      %p214 = scmp.eq.s32.totalorder %s42, 0
      %p215 = por %p213, %p214
      %p216 = scmp.ne.s32.totalorder %s204, %s205
      %p217 = scmp.eq.s32.totalorder %s43, 1
      %p218 = por %p216, %p217
      %p220 = scmp.ne.s32.totalorder %s205, %s219
      %p221 = scmp.eq.s32.totalorder %s43, 0
      %p222 = por %p220, %p221
      %s224 = sadd.s32 %s223, 1
      %p227 = scmp.eq.s32.totalorder %s37, 1
      %p228 = scmp.ne.s32.totalorder %s223, %s225
      %p229 = scmp.eq.s32.totalorder %s37, 0
      %p230 = por %p228, %p229
      %p231 = scmp.ne.s32.totalorder %s223, %s225
      %p232 = scmp.eq.s32.totalorder %s42, 1
      %p233 = por %p231, %p232
      %p234 = scmp.ne.s32.totalorder %s225, %s226
      %p235 = scmp.eq.s32.totalorder %s42, 0
      %p236 = por %p234, %p235
      %p237 = scmp.ne.s32.totalorder %s225, %s226
      %p238 = scmp.eq.s32.totalorder %s43, 1
      %p239 = por %p237, %p238
      %p241 = scmp.ne.s32.totalorder %s226, %s240
      %p242 = scmp.eq.s32.totalorder %s43, 0
      %p243 = por %p241, %p242
      %s245 = sadd.s32 %s244, 1
      %p248 = scmp.eq.s32.totalorder %s37, 1
      %p249 = scmp.ne.s32.totalorder %s244, %s246
      %p250 = scmp.eq.s32.totalorder %s37, 0
      %p251 = por %p249, %p250
      %p252 = scmp.ne.s32.totalorder %s244, %s246
      %p253 = scmp.eq.s32.totalorder %s42, 1
      %p254 = por %p252, %p253
      %p255 = scmp.ne.s32.totalorder %s246, %s247
      %p256 = scmp.eq.s32.totalorder %s42, 0
      %p257 = por %p255, %p256
      %p258 = scmp.ne.s32.totalorder %s246, %s247
      %p259 = scmp.eq.s32.totalorder %s43, 1
      %p260 = por %p258, %p259
      %p262 = scmp.ne.s32.totalorder %s247, %s261
      %p263 = scmp.eq.s32.totalorder %s43, 0
      %p264 = por %p262, %p263
      %s266 = sadd.s32 %s265, 1
      %p269 = scmp.eq.s32.totalorder %s37, 1
      %p270 = scmp.ne.s32.totalorder %s265, %s267
      %p271 = scmp.eq.s32.totalorder %s37, 0
      %p272 = por %p270, %p271
      %p273 = scmp.ne.s32.totalorder %s265, %s267
      %p274 = scmp.eq.s32.totalorder %s42, 1
      %p275 = por %p273, %p274
      %p276 = scmp.ne.s32.totalorder %s267, %s268
      %p277 = scmp.eq.s32.totalorder %s42, 0
      %p278 = por %p276, %p277
      %p279 = scmp.ne.s32.totalorder %s267, %s268
      %p280 = scmp.eq.s32.totalorder %s43, 1
      %p281 = por %p279, %p280
      %p283 = scmp.ne.s32.totalorder %s268, %s282
      %p284 = scmp.eq.s32.totalorder %s43, 0
      %p285 = por %p283, %p284
      %s287 = sadd.s32 %s286, 1
      %p290 = scmp.eq.s32.totalorder %s37, 1
      %p291 = scmp.ne.s32.totalorder %s286, %s288
      %p292 = scmp.eq.s32.totalorder %s37, 0
      %p293 = por %p291, %p292
      %p294 = scmp.ne.s32.totalorder %s286, %s288
      %p295 = scmp.eq.s32.totalorder %s42, 1
      %p296 = por %p294, %p295
      %p297 = scmp.ne.s32.totalorder %s288, %s289
      %p298 = scmp.eq.s32.totalorder %s42, 0
      %p299 = por %p297, %p298
      %p300 = scmp.ne.s32.totalorder %s288, %s289
      %p301 = scmp.eq.s32.totalorder %s43, 1
      %p302 = por %p300, %p301
      %p304 = scmp.ne.s32.totalorder %s289, %s303
      %p305 = scmp.eq.s32.totalorder %s43, 0
      %p306 = por %p304, %p305
      %s308 = sadd.s32 %s307, 1
      %p311 = scmp.eq.s32.totalorder %s37, 1
      %p312 = scmp.ne.s32.totalorder %s307, %s309
      %p313 = scmp.eq.s32.totalorder %s37, 0
      %p314 = por %p312, %p313
      %p315 = scmp.ne.s32.totalorder %s307, %s309
      %p316 = scmp.eq.s32.totalorder %s42, 1
      %p317 = por %p315, %p316
      %p318 = scmp.ne.s32.totalorder %s309, %s310
      %p319 = scmp.eq.s32.totalorder %s42, 0
      %p320 = por %p318, %p319
      %p321 = scmp.ne.s32.totalorder %s309, %s310
      %p322 = scmp.eq.s32.totalorder %s43, 1
      %p323 = por %p321, %p322
      %p325 = scmp.ne.s32.totalorder %s310, %s324
      %p326 = scmp.eq.s32.totalorder %s43, 0
      %p327 = por %p325, %p326
      %s329 = sadd.s32 %s328, 1
      %p332 = scmp.eq.s32.totalorder %s37, 1
      %p333 = scmp.ne.s32.totalorder %s328, %s330
      %p334 = scmp.eq.s32.totalorder %s37, 0
      %p335 = por %p333, %p334
      %p336 = scmp.ne.s32.totalorder %s328, %s330
      %p337 = scmp.eq.s32.totalorder %s42, 1
      %p338 = por %p336, %p337
      %p339 = scmp.ne.s32.totalorder %s330, %s331
      %p340 = scmp.eq.s32.totalorder %s42, 0
      %p341 = por %p339, %p340
      %p342 = scmp.ne.s32.totalorder %s330, %s331
      %p343 = scmp.eq.s32.totalorder %s43, 1
      %p344 = por %p342, %p343
      %p346 = scmp.ne.s32.totalorder %s331, %s345
      %p347 = scmp.eq.s32.totalorder %s43, 0
      %p348 = por %p346, %p347
      %s350 = sadd.s32 %s349, 1
      %p353 = scmp.eq.s32.totalorder %s37, 1
      %p354 = scmp.ne.s32.totalorder %s349, %s351
      %p355 = scmp.eq.s32.totalorder %s37, 0
      %p356 = por %p354, %p355
      %p357 = scmp.ne.s32.totalorder %s349, %s351
      %p358 = scmp.eq.s32.totalorder %s42, 1
      %p359 = por %p357, %p358
      %p360 = scmp.ne.s32.totalorder %s351, %s352
      %p361 = scmp.eq.s32.totalorder %s42, 0
      %p362 = por %p360, %p361
      %p363 = scmp.ne.s32.totalorder %s351, %s352
      %p364 = scmp.eq.s32.totalorder %s43, 1
      %p365 = por %p363, %p364
      %p367 = scmp.ne.s32.totalorder %s352, %s366
      %p368 = scmp.eq.s32.totalorder %s43, 0
      %p369 = por %p367, %p368
      %s371 = sadd.s32 %s370, 1
      %p374 = scmp.eq.s32.totalorder %s37, 1
      %p375 = scmp.ne.s32.totalorder %s370, %s372
      %p376 = scmp.eq.s32.totalorder %s37, 0
      %p377 = por %p375, %p376
      %p378 = scmp.ne.s32.totalorder %s370, %s372
      %p379 = scmp.eq.s32.totalorder %s42, 1
      %p380 = por %p378, %p379
      %p381 = scmp.ne.s32.totalorder %s372, %s373
      %p382 = scmp.eq.s32.totalorder %s42, 0
      %p383 = por %p381, %p382
      %p384 = scmp.ne.s32.totalorder %s372, %s373
      %p385 = scmp.eq.s32.totalorder %s43, 1
      %p386 = por %p384, %p385
      %p388 = scmp.ne.s32.totalorder %s373, %s387
      %p389 = scmp.eq.s32.totalorder %s43, 0
      %p390 = por %p388, %p389
      %s392 = sadd.s32 %s391, 1
      %p395 = scmp.eq.s32.totalorder %s37, 1
      %p396 = scmp.ne.s32.totalorder %s391, %s393
      %p397 = scmp.eq.s32.totalorder %s37, 0
      %p398 = por %p396, %p397
      %p399 = scmp.ne.s32.totalorder %s391, %s393
      %p400 = scmp.eq.s32.totalorder %s42, 1
      %p401 = por %p399, %p400
      %p402 = scmp.ne.s32.totalorder %s393, %s394
      %p403 = scmp.eq.s32.totalorder %s42, 0
      %p404 = por %p402, %p403
      %p405 = scmp.ne.s32.totalorder %s393, %s394
      %p406 = scmp.eq.s32.totalorder %s43, 1
      %p407 = por %p405, %p406
      %p409 = scmp.ne.s32.totalorder %s394, %s408
      %p410 = scmp.eq.s32.totalorder %s43, 0
      %p411 = por %p409, %p410
      %s413 = sadd.s32 %s412, 1
      %p416 = scmp.eq.s32.totalorder %s37, 1
      %p417 = scmp.ne.s32.totalorder %s412, %s414
      %p418 = scmp.eq.s32.totalorder %s37, 0
      %p419 = por %p417, %p418
      %p420 = scmp.ne.s32.totalorder %s412, %s414
      %p421 = scmp.eq.s32.totalorder %s42, 1
      %p422 = por %p420, %p421
      %p423 = scmp.ne.s32.totalorder %s414, %s415
      %p424 = scmp.eq.s32.totalorder %s42, 0
      %p425 = por %p423, %p424
      %p426 = scmp.ne.s32.totalorder %s414, %s415
      %p427 = scmp.eq.s32.totalorder %s43, 1
      %p428 = por %p426, %p427
      %p430 = scmp.ne.s32.totalorder %s415, %s429
      %p431 = scmp.eq.s32.totalorder %s43, 0
      %p432 = por %p430, %p431
      %s434 = sadd.s32 %s433, 1
      %p437 = scmp.eq.s32.totalorder %s37, 1
      %p438 = scmp.ne.s32.totalorder %s433, %s435
      %p439 = scmp.eq.s32.totalorder %s37, 0
      %p440 = por %p438, %p439
      %p441 = scmp.ne.s32.totalorder %s433, %s435
      %p442 = scmp.eq.s32.totalorder %s42, 1
      %p443 = por %p441, %p442
      %p444 = scmp.ne.s32.totalorder %s435, %s436
      %p445 = scmp.eq.s32.totalorder %s42, 0
      %p446 = por %p444, %p445
      %p447 = scmp.ne.s32.totalorder %s435, %s436
      %p448 = scmp.eq.s32.totalorder %s43, 1
      %p449 = por %p447, %p448
      %p451 = scmp.ne.s32.totalorder %s436, %s450
      %p452 = scmp.eq.s32.totalorder %s43, 0
      %p453 = por %p451, %p452
      %s455 = sadd.s32 %s454, 1
      %p458 = scmp.eq.s32.totalorder %s37, 1
      %p459 = scmp.ne.s32.totalorder %s454, %s456
      %p460 = scmp.eq.s32.totalorder %s37, 0
      %p461 = por %p459, %p460
      %p462 = scmp.ne.s32.totalorder %s454, %s456
      %p463 = scmp.eq.s32.totalorder %s42, 1
      %p464 = por %p462, %p463
      %p465 = scmp.ne.s32.totalorder %s456, %s457
      %p466 = scmp.eq.s32.totalorder %s42, 0
      %p467 = por %p465, %p466
      %p468 = scmp.ne.s32.totalorder %s456, %s457
      %p469 = scmp.eq.s32.totalorder %s43, 1
      %p470 = por %p468, %p469
      %p472 = scmp.ne.s32.totalorder %s457, %s471
      %p473 = scmp.eq.s32.totalorder %s43, 0
      %p474 = por %p472, %p473
      %s476 = sadd.s32 %s475, 1
      %p479 = scmp.eq.s32.totalorder %s37, 1
      %p480 = scmp.ne.s32.totalorder %s475, %s477
      %p481 = scmp.eq.s32.totalorder %s37, 0
      %p482 = por %p480, %p481
      %p483 = scmp.ne.s32.totalorder %s475, %s477
      %p484 = scmp.eq.s32.totalorder %s42, 1
      %p485 = por %p483, %p484
      %p486 = scmp.ne.s32.totalorder %s477, %s478
      %p487 = scmp.eq.s32.totalorder %s42, 0
      %p488 = por %p486, %p487
      %p489 = scmp.ne.s32.totalorder %s477, %s478
      %p490 = scmp.eq.s32.totalorder %s43, 1
      %p491 = por %p489, %p490
      %p493 = scmp.ne.s32.totalorder %s478, %s492
      %p494 = scmp.eq.s32.totalorder %s43, 0
      %p495 = por %p493, %p494
      %s497 = sadd.s32 %s496, 1
      %p500 = scmp.eq.s32.totalorder %s37, 1
      %p501 = scmp.ne.s32.totalorder %s496, %s498
      %p502 = scmp.eq.s32.totalorder %s37, 0
      %p503 = por %p501, %p502
      %p504 = scmp.ne.s32.totalorder %s496, %s498
      %p505 = scmp.eq.s32.totalorder %s42, 1
      %p506 = por %p504, %p505
      %p507 = scmp.ne.s32.totalorder %s498, %s499
      %p508 = scmp.eq.s32.totalorder %s42, 0
      %p509 = por %p507, %p508
      %p510 = scmp.ne.s32.totalorder %s498, %s499
      %p511 = scmp.eq.s32.totalorder %s43, 1
      %p512 = por %p510, %p511
      %p514 = scmp.ne.s32.totalorder %s499, %s513
      %p515 = scmp.eq.s32.totalorder %s43, 0
      %p516 = por %p514, %p515
      %s517 = ssub.s32 %s37, %s44
      %p518 = scmp.eq.s32.totalorder %s517, 0
      %s520 = sadd.s32 %s519, 1
      %s521 = scalar_select %p518, %s519, %s520
      %p524 = pneg %p518
      %p525 = scmp.eq.s32.totalorder %s37, 1
      %p526 = por %p524, %p525
      %p527 = scmp.ne.s32.totalorder %s519, %s522
      %p528 = scmp.eq.s32.totalorder %s37, 0
      %p529 = por %p527, %p528
      %p530 = scmp.ne.s32.totalorder %s519, %s522
      %p531 = scmp.eq.s32.totalorder %s42, 1
      %p532 = por %p530, %p531
      %p533 = scmp.ne.s32.totalorder %s522, %s523
      %p534 = scmp.eq.s32.totalorder %s42, 0
      %p535 = por %p533, %p534
      %p536 = scmp.ne.s32.totalorder %s522, %s523
      %p537 = scmp.eq.s32.totalorder %s43, 1
      %p538 = por %p536, %p537
      %p540 = scmp.ne.s32.totalorder %s523, %s539
      %p541 = scmp.eq.s32.totalorder %s43, 0
      %p542 = por %p540, %p541
      %p543 = scmp.le.s32.totalorder 1, %s37
      %p544 = scmp.lt.s32.totalorder %s37, 3
      %p545 = pnand %p543, %p544
      %p546 = pneg %p545
      // Predicated region
      $region9: #{tpu_custom_call.1} parent=5 // pred_check
        _
      $region10: #{tpu_custom_call.1} parent=5 // pred_check_branch
        %548 = sbr.rel (%p545) target = $region12
      $region11: #{tpu_custom_call.1} parent=5 // pred_region
        %s549 = ssub.s32 %s37, 1
        // Predicated region
        $region13: #{tpu_custom_call.1} parent=11 // pred_check
          %p550 = pneg %p110
        $region14: #{tpu_custom_call.1} parent=11 // pred_check_branch
          %552 = sbr.rel (%p550) target = $region16
        $region15: #{tpu_custom_call.1} parent=11 // pred_region
          _
        $region16: #{tpu_custom_call.1} parent=11 // pred_fallthru
          _
        // Predicated region
        $region17: #{tpu_custom_call.1} parent=11 // pred_check
          %p553 = pneg %p131
        $region18: #{tpu_custom_call.1} parent=11 // pred_check_branch
          %555 = sbr.rel (%p553) target = $region20
        $region19: #{tpu_custom_call.1} parent=11 // pred_region
          _
        $region20: #{tpu_custom_call.1} parent=11 // pred_fallthru
          _
        // Predicated region
        $region21: #{tpu_custom_call.1} parent=11 // pred_check
          %p556 = pneg %p152
        $region22: #{tpu_custom_call.1} parent=11 // pred_check_branch
          %558 = sbr.rel (%p556) target = $region24
        $region23: #{tpu_custom_call.1} parent=11 // pred_region
          _
        $region24: #{tpu_custom_call.1} parent=11 // pred_fallthru
          _
        // Predicated region
        $region25: #{tpu_custom_call.1} parent=11 // pred_check
          %p559 = pneg %p173
        $region26: #{tpu_custom_call.1} parent=11 // pred_check_branch
          %561 = sbr.rel (%p559) target = $region28
        $region27: #{tpu_custom_call.1} parent=11 // pred_region
          _
        $region28: #{tpu_custom_call.1} parent=11 // pred_fallthru
          _
        // Predicated region
        $region29: #{tpu_custom_call.1} parent=11 // pred_check
          %p562 = pneg %p194
        $region30: #{tpu_custom_call.1} parent=11 // pred_check_branch
          %564 = sbr.rel (%p562) target = $region32
        $region31: #{tpu_custom_call.1} parent=11 // pred_region
          _
        $region32: #{tpu_custom_call.1} parent=11 // pred_fallthru
          _
        // Predicated region
        $region33: #{tpu_custom_call.1} parent=11 // pred_check
          %p565 = pneg %p215
        $region34: #{tpu_custom_call.1} parent=11 // pred_check_branch
          %567 = sbr.rel (%p565) target = $region36
        $region35: #{tpu_custom_call.1} parent=11 // pred_region
          _
        $region36: #{tpu_custom_call.1} parent=11 // pred_fallthru
          _
        // Predicated region
        $region37: #{tpu_custom_call.1} parent=11 // pred_check
          %p568 = pneg %p236
        $region38: #{tpu_custom_call.1} parent=11 // pred_check_branch
          %570 = sbr.rel (%p568) target = $region40
        $region39: #{tpu_custom_call.1} parent=11 // pred_region
          %572 = vsyncadd [#allocation7], 0
          %s573 = sshll.u32 %s8, 4
          %s574 = int_to_ptr.hbm [resolvable:$true] %s573
          %s575 = sshll.u32 [#allocation6], 4
          %s576 = int_to_ptr.vmem [resolvable:$true] %s575
          %581 = dma.hbm_to_vmem [thread:$0]  %s574, 1024, %s576, [#allocation7], 64, 64, 4
        $region40: #{tpu_custom_call.1} parent=11 // pred_fallthru
          _
        // Predicated region
        $region41: #{tpu_custom_call.1} parent=11 // pred_check
          %p582 = pneg %p257
        $region42: #{tpu_custom_call.1} parent=11 // pred_check_branch
          %584 = sbr.rel (%p582) target = $region44
        $region43: #{tpu_custom_call.1} parent=11 // pred_region
          _
        $region44: #{tpu_custom_call.1} parent=11 // pred_fallthru
          _
        // Predicated region
        $region45: #{tpu_custom_call.1} parent=11 // pred_check
          %p585 = pneg %p278
        $region46: #{tpu_custom_call.1} parent=11 // pred_check_branch
          %587 = sbr.rel (%p585) target = $region48
        $region47: #{tpu_custom_call.1} parent=11 // pred_region
          %589 = vsyncadd [#allocation7], 0
          %s590 = sshll.u32 %s10, 4
          %s591 = int_to_ptr.hbm [resolvable:$true] %s590
          %s592 = sshll.u32 [#allocation8], 4
          %s593 = int_to_ptr.vmem [resolvable:$true] %s592
          %598 = dma.hbm_to_vmem [thread:$0]  %s591, 2048, %s593, [#allocation7], 128, 128, 8
        $region48: #{tpu_custom_call.1} parent=11 // pred_fallthru
          _
        // Predicated region
        $region49: #{tpu_custom_call.1} parent=11 // pred_check
          %p599 = pneg %p299
        $region50: #{tpu_custom_call.1} parent=11 // pred_check_branch
          %601 = sbr.rel (%p599) target = $region52
        $region51: #{tpu_custom_call.1} parent=11 // pred_region
          _
        $region52: #{tpu_custom_call.1} parent=11 // pred_fallthru
          _
        // Predicated region
        $region53: #{tpu_custom_call.1} parent=11 // pred_check
          %p602 = pneg %p320
        $region54: #{tpu_custom_call.1} parent=11 // pred_check_branch
          %604 = sbr.rel (%p602) target = $region56
        $region55: #{tpu_custom_call.1} parent=11 // pred_region
          %606 = vsyncadd [#allocation10], 0
          %s607 = sshll.u32 %s12, 4
          %s608 = int_to_ptr.hbm [resolvable:$true] %s607
          %s609 = sshll.u32 [#allocation9], 4
          %s610 = int_to_ptr.vmem [resolvable:$true] %s609
          %615 = dma.hbm_to_vmem [thread:$0]  %s608, 1024, %s610, [#allocation10], 64, 64, 4
        $region56: #{tpu_custom_call.1} parent=11 // pred_fallthru
          _
        // Predicated region
        $region57: #{tpu_custom_call.1} parent=11 // pred_check
          %p616 = pneg %p341
        $region58: #{tpu_custom_call.1} parent=11 // pred_check_branch
          %618 = sbr.rel (%p616) target = $region60
        $region59: #{tpu_custom_call.1} parent=11 // pred_region
          _
        $region60: #{tpu_custom_call.1} parent=11 // pred_fallthru
          _
        // Predicated region
        $region61: #{tpu_custom_call.1} parent=11 // pred_check
          %p619 = pneg %p362
        $region62: #{tpu_custom_call.1} parent=11 // pred_check_branch
          %621 = sbr.rel (%p619) target = $region64
        $region63: #{tpu_custom_call.1} parent=11 // pred_region
          _
        $region64: #{tpu_custom_call.1} parent=11 // pred_fallthru
          _
        // Predicated region
        $region65: #{tpu_custom_call.1} parent=11 // pred_check
          %p622 = pneg %p383
        $region66: #{tpu_custom_call.1} parent=11 // pred_check_branch
          %624 = sbr.rel (%p622) target = $region68
        $region67: #{tpu_custom_call.1} parent=11 // pred_region
          _
        $region68: #{tpu_custom_call.1} parent=11 // pred_fallthru
          _
        // Predicated region
        $region69: #{tpu_custom_call.1} parent=11 // pred_check
          %p625 = pneg %p404
        $region70: #{tpu_custom_call.1} parent=11 // pred_check_branch
          %627 = sbr.rel (%p625) target = $region72
        $region71: #{tpu_custom_call.1} parent=11 // pred_region
          %629 = vsyncadd [#allocation10], 0
          %s630 = sshll.u32 %s16, 4
          %s631 = int_to_ptr.hbm [resolvable:$true] %s630
          %s632 = sshll.u32 [#allocation11], 4
          %s633 = int_to_ptr.vmem [resolvable:$true] %s632
          %638 = dma.hbm_to_vmem [thread:$0]  %s631, 4096, %s633, [#allocation10], 256, 256, 16
        $region72: #{tpu_custom_call.1} parent=11 // pred_fallthru
          _
        // Predicated region
        $region73: #{tpu_custom_call.1} parent=11 // pred_check
          %p639 = pneg %p425
        $region74: #{tpu_custom_call.1} parent=11 // pred_check_branch
          %641 = sbr.rel (%p639) target = $region76
        $region75: #{tpu_custom_call.1} parent=11 // pred_region
          _
        $region76: #{tpu_custom_call.1} parent=11 // pred_fallthru
          _
        // Predicated region
        $region77: #{tpu_custom_call.1} parent=11 // pred_check
          %p642 = pneg %p446
        $region78: #{tpu_custom_call.1} parent=11 // pred_check_branch
          %644 = sbr.rel (%p642) target = $region80
        $region79: #{tpu_custom_call.1} parent=11 // pred_region
          %646 = vsyncadd [#allocation13], 0
          %s647 = sshll.u32 %s18, 4
          %s648 = int_to_ptr.hbm [resolvable:$true] %s647
          %s649 = sshll.u32 [#allocation12], 4
          %s650 = int_to_ptr.vmem [resolvable:$true] %s649
          %655 = dma.hbm_to_vmem [thread:$0]  %s648, 4096, %s650, [#allocation13], 64, 64, 4
        $region80: #{tpu_custom_call.1} parent=11 // pred_fallthru
          _
        // Predicated region
        $region81: #{tpu_custom_call.1} parent=11 // pred_check
          %p656 = pneg %p467
        $region82: #{tpu_custom_call.1} parent=11 // pred_check_branch
          %658 = sbr.rel (%p656) target = $region84
        $region83: #{tpu_custom_call.1} parent=11 // pred_region
          _
        $region84: #{tpu_custom_call.1} parent=11 // pred_fallthru
          _
        // Predicated region
        $region85: #{tpu_custom_call.1} parent=11 // pred_check
          %p659 = pneg %p488
        $region86: #{tpu_custom_call.1} parent=11 // pred_check_branch
          %661 = sbr.rel (%p659) target = $region88
        $region87: #{tpu_custom_call.1} parent=11 // pred_region
          _
        $region88: #{tpu_custom_call.1} parent=11 // pred_fallthru
          _
        // Predicated region
        $region89: #{tpu_custom_call.1} parent=11 // pred_check
          %p662 = pneg %p509
        $region90: #{tpu_custom_call.1} parent=11 // pred_check_branch
          %664 = sbr.rel (%p662) target = $region92
        $region91: #{tpu_custom_call.1} parent=11 // pred_region
          _
        $region92: #{tpu_custom_call.1} parent=11 // pred_fallthru
          _
      $region12: #{tpu_custom_call.1} parent=5 // pred_fallthru
        _
      %p665 = scmp.lt.s32.totalorder %s37, 2
      // Predicated region
      $region93: #{tpu_custom_call.1} parent=5 // pred_check
        %p666 = pneg %p665
      $region94: #{tpu_custom_call.1} parent=5 // pred_check_branch
        %668 = sbr.rel (%p666) target = $region96
      $region95: #{tpu_custom_call.1} parent=5 // pred_region
        // Predicated region
        $region97: #{tpu_custom_call.1} parent=95 // pred_check
          %p669 = pneg %p57
        $region98: #{tpu_custom_call.1} parent=95 // pred_check_branch
          %671 = sbr.rel (%p669) target = $region100
        $region99: #{tpu_custom_call.1} parent=95 // pred_region
          %s672 = sand.u32 %s47, 1
          %s673 = scalar_lea.sflag [#allocation4], %s672
          %s674 = sand.u32 %s47, 1
          %s675 = smul.addr %s674, 8
          %s676 = scalar_lea.vmem [#allocation3], %s675
          %678 = vsyncadd %s673, 0
          %s679 = smul.addr %s37, 8
          %s680 = scalar_lea.hbm %s0, %s679
          %s682 = sshll.u32 %s680, 4
          %s683 = int_to_ptr.hbm [resolvable:$true] %s682
          %s684 = sshll.u32 %s676, 4
          %s685 = int_to_ptr.vmem [resolvable:$true] %s684
          %687 = dma.hbm_to_vmem [thread:$0]  %s683, 128, %s685, %s673
        $region100: #{tpu_custom_call.1} parent=95 // pred_fallthru
          _
        // Predicated region
        $region101: #{tpu_custom_call.1} parent=95 // pred_check
          %p688 = pneg %p83
        $region102: #{tpu_custom_call.1} parent=95 // pred_check_branch
          %690 = sbr.rel (%p688) target = $region104
        $region103: #{tpu_custom_call.1} parent=95 // pred_region
          %p691 = scmp.lt.s32.totalorder %s37, 1
          %s692 = scalar_select %p691, %s37, 1
          %s693 = smul.addr %s692, 2
          %s694 = smul.addr %s693, 8
          %s695 = scalar_lea.vmem %s1, %s694
        $region104: #{tpu_custom_call.1} parent=95 // pred_fallthru
          _
      $region96: #{tpu_custom_call.1} parent=5 // pred_fallthru
        _
      %p696 = scmp.le.s32.totalorder 1, %s37
      %p697 = scmp.lt.s32.totalorder %s37, 3
      %p698 = pnand %p696, %p697
      %p699 = pneg %p698
      // Predicated region
      $region105: #{tpu_custom_call.1} parent=5 // pred_check
        _
      $region106: #{tpu_custom_call.1} parent=5 // pred_check_branch
        %701 = sbr.rel (%p698) target = $region108
      $region107: #{tpu_custom_call.1} parent=5 // pred_region
        %s702 = ssub.s32 %s37, 1
        %s703 = sand.u32 %s50, 1
        %s704 = scalar_lea.sflag [#allocation4], %s703
        %s705 = sand.u32 %s50, 1
        %s706 = smul.addr %s705, 8
        %s707 = scalar_lea.vmem [#allocation3], %s706
        // Predicated region
        $region109: #{tpu_custom_call.1} parent=107 // pred_check
          %p708 = pneg %p63
        $region110: #{tpu_custom_call.1} parent=107 // pred_check_branch
          %710 = sbr.rel (%p708) target = $region112
        $region111: #{tpu_custom_call.1} parent=107 // pred_region
          %712 = dma.done %s704, 128
        $region112: #{tpu_custom_call.1} parent=107 // pred_fallthru
          _
        // Predicated region
        $region113: #{tpu_custom_call.1} parent=107 // pred_check
          %p713 = pneg %p236
        $region114: #{tpu_custom_call.1} parent=107 // pred_check_branch
          %715 = sbr.rel (%p713) target = $region116
        $region115: #{tpu_custom_call.1} parent=107 // pred_region
          %717 = dma.done [#allocation7], 1024
        $region116: #{tpu_custom_call.1} parent=107 // pred_fallthru
          _
        // Predicated region
        $region117: #{tpu_custom_call.1} parent=107 // pred_check
          %p718 = pneg %p278
        $region118: #{tpu_custom_call.1} parent=107 // pred_check_branch
          %720 = sbr.rel (%p718) target = $region120
        $region119: #{tpu_custom_call.1} parent=107 // pred_region
          %722 = dma.done [#allocation7], 2048
        $region120: #{tpu_custom_call.1} parent=107 // pred_fallthru
          _
        // Predicated region
        $region121: #{tpu_custom_call.1} parent=107 // pred_check
          %p723 = pneg %p320
        $region122: #{tpu_custom_call.1} parent=107 // pred_check_branch
          %725 = sbr.rel (%p723) target = $region124
        $region123: #{tpu_custom_call.1} parent=107 // pred_region
          %727 = dma.done [#allocation10], 1024
        $region124: #{tpu_custom_call.1} parent=107 // pred_fallthru
          _
        // Predicated region
        $region125: #{tpu_custom_call.1} parent=107 // pred_check
          %p728 = pneg %p404
        $region126: #{tpu_custom_call.1} parent=107 // pred_check_branch
          %730 = sbr.rel (%p728) target = $region128
        $region127: #{tpu_custom_call.1} parent=107 // pred_region
          %732 = dma.done [#allocation10], 4096
        $region128: #{tpu_custom_call.1} parent=107 // pred_fallthru
          _
        // Predicated region
        $region129: #{tpu_custom_call.1} parent=107 // pred_check
          %p733 = pneg %p446
        $region130: #{tpu_custom_call.1} parent=107 // pred_check_branch
          %735 = sbr.rel (%p733) target = $region132
        $region131: #{tpu_custom_call.1} parent=107 // pred_region
          %737 = dma.done [#allocation13], 4096
        $region132: #{tpu_custom_call.1} parent=107 // pred_fallthru
          _
        %s738 = sand.u32 %s50, 1
        %s739 = scalar_lea.sflag [#allocation4], %s738
        %s740 = sand.u32 %s50, 1
        %s741 = smul.addr %s740, 8
        %s742 = scalar_lea.vmem [#allocation3], %s741
        %p743 = pneg %p63
        %p744 = pneg %p60
        %p745 = scmp.lt.s32.totalorder %s42, 1
        %s746 = scalar_select %p745, %s42, 1
        %s747 = smul.addr %s746, 2
        %s748 = smul.addr %s747, 8
        %s749 = scalar_lea.vmem %s1, %s748
        %p750 = pneg %p89
        %p751 = pneg %p86
        %p752 = pneg %p110
        %p753 = pneg %p107
        %p754 = pneg %p131
        %p755 = pneg %p128
        %p756 = pneg %p152
        %p757 = pneg %p149
        %p758 = pneg %p173
        %p759 = pneg %p170
        %p760 = pneg %p194
        %p761 = pneg %p191
        %p762 = pneg %p215
        %p763 = pneg %p212
        %p764 = pneg %p236
        %p765 = pneg %p233
        %p766 = pneg %p257
        %p767 = pneg %p254
        %p768 = pneg %p278
        %p769 = pneg %p275
        %p770 = pneg %p299
        %p771 = pneg %p296
        %p772 = pneg %p320
        %p773 = pneg %p317
        %p774 = pneg %p341
        %p775 = pneg %p338
        %p776 = pneg %p362
        %p777 = pneg %p359
        %p778 = pneg %p383
        %p779 = pneg %p380
        %p780 = pneg %p404
        %p781 = pneg %p401
        %p782 = pneg %p425
        %p783 = pneg %p422
        %p784 = pneg %p446
        %p785 = pneg %p443
        %p786 = pneg %p467
        %p787 = pneg %p464
        %p788 = pneg %p488
        %p789 = pneg %p485
        %p790 = pneg %p509
        %p791 = pneg %p506
        %p792 = pneg %p535
        %p793 = pneg %p532
        %s794 = sand.u32 %s522, 1
        %s795 = scalar_lea.sflag [#allocation5], %s794
        %s796 = sand.u32 %s522, 1
        %s797 = smul.addr %s796, 8
        %s798 = scalar_lea.vmem [#allocation14], %s797
        %p799 = scmp.lt.s32.totalorder %s42, 1
        %s800 = scalar_select %p799, %s42, 1
        %s801 = smul.addr %s800, 2
        %s802 = smul.addr %s801, 8
        %s803 = scalar_lea.vmem %s1, %s802
        %v805 = vld [vmem:[%s707] sm:$0xff]
        %v806 = vld [vmem:[%s803] sm:$0xff]
        %v807 = vld [vmem:[%s803 + $0x8] sm:$0xff]
        %v808 = vld [vmem:[%s2] sm:$0xf]
        %v809 = vld [vmem:[%s2 + $0x4] sm:$0xf]
        %v810 = vpack.c.bf16 %v805, %v805
        %v811 = vld [vmem:[%s3] sm:$0xff]
        %v812 = vld [vmem:[%s3 + $0x8] sm:$0xff]
        %814 = vset.pattern.permute.xlu0 0
        %815 = vperm.xlu0 %814, %v811
        %v816 = vpop.permute.xlu0 %815
        %819 = vset.pattern.permute.xlu0 0
        %820 = vperm.xlu0 %819, %v812
        %v821 = vpop.permute.xlu0 %820
        %v825 = vunpack.c.l.b16 %v808
        %v826 = vunpack.c.l.b16 %v809
        %v827 = vpack.c.b16 %v826, %v825
        %vm828 = vcmask 64512
        %v830 = vsel %vm828, %v827, 0
        %vm832 = vcmask 1043456
        %v834 = vsel %vm832, %v810, 0
        %836 = vmatpush.bf16.msra.mxu0 0
        %837 = vmatpush.bf16.msra.mxu0 0
        %838 = vmatpush.bf16.msra.mxu0 0
        %839 = vmatpush.bf16.msra.mxu0 0
        %840 = vmatpush.bf16.msra.mxu0 0
        %841 = vmatpush.bf16.msra.mxu0 0
        %842 = vmatpush.bf16.msra.mxu0 0
        %843 = vmatpush.bf16.msra.mxu0 %v834
        %844 = vmatmul.bf16.gmra.mxu0 %v830
        %v845 = vpop.f32.mrf.mxu0
        %v846 = vadd.f32 %v816, %v845
        %v847 = vpop.f32.mrf.mxu0
        %v848 = vadd.f32 %v821, %v847
        %849 = vdwg.mxu0
        %v850 = vmax.f32 %v846, 0.0
        %v851 = vmax.f32 %v848, 0.0
        %v852 = vld [vmem:[%s4] sm:$0xf]
        %v853 = vpack.c.bf16 %v851, %v850
        %v854 = vld [vmem:[%s5] sm:$0xff]
        %856 = vset.pattern.permute.xlu0 0
        %857 = vperm.xlu0 %856, %v854
        %v858 = vpop.permute.xlu0 %857
        %vm860 = vcmask 130048
        %v862 = vsel %vm860, %v852, 0
        %864 = vmatpush.bf16.msra.mxu0 0
        %865 = vmatpush.bf16.msra.mxu0 0
        %866 = vmatpush.bf16.msra.mxu0 0
        %867 = vmatpush.bf16.msra.mxu0 0
        %868 = vmatpush.bf16.msra.mxu0 0
        %869 = vmatpush.bf16.msra.mxu0 0
        %870 = vmatpush.bf16.msra.mxu0 0
        %871 = vmatpush.bf16.msra.mxu0 %v853
        %872 = vmatmul.bf16.gmra.mxu0 %v862
        %v873 = vpop.f32.mrf.mxu0
        %v874 = vadd.f32 %v858, %v873
        %v875 = vpop.f32.mrf.mxu0
        %876 = vdwg.mxu0
        %v877 = vadd.f32 %v874, %v805
        %v878 = vld [vmem:[%s6] sm:$0x1]
        %v879 = vld [vmem:[%s7] sm:$0x1]
        %880 = vadd.xlane.f32.xlu0 %v877
        %v881 = vpop.xlane.xlu0 %880
        %v882 = vrcp.pop 128.0
        %v883 = vmul.f32 128.0, %v882
        %v884 = vsub.f32 1.0, %v883
        %v885 = vmul.f32 %v882, %v884
        %v886 = vadd.f32 %v882, %v885
        %vm887 = vweird.f32 %v882
        %v888 = vsel %vm887, %v882, %v886
        %v889 = vmul.f32 %v881, %v888
        %v890 = vsub.f32 %v877, %v889
        %v891 = vmul.f32 %v890, %v890
        %892 = vadd.xlane.f32.xlu0 %v891
        %v893 = vpop.xlane.xlu0 %892
        %v894 = vmul.f32 %v893, %v888
        %v895 = vadd.f32 %v894, 1e-05
        %v896 = vrsqrt.pop %v895
        %v897 = vmul.f32 %v896, %v895
        %v898 = vmul.f32 %v897, %v896
        %v899 = vmul.f32 0.5, %v898
        %v900 = vsub.f32 1.5, %v899
        %v901 = vmul.f32 %v896, %v900
        %vm902 = vweird.f32 %v895
        %vm903 = vweird.f32 %v896
        %vm904 = vmor %vm902, %vm903
        %v905 = vsel %vm904, %v896, %v901
        %v906 = vmul.f32 %v890, %v905
        %v908 = vperm.slane %v878, 0
        %v910 = vmul.f32 %v906, %v908
        %v912 = vperm.slane %v879, 0
        %v914 = vadd.f32 %v910, %v912
        %v915 = vpack.c.bf16 %v807, %v806
        %v916 = vpack.c.bf16 %v914, %v914
        %v917 = vld [vmem:[#allocation6] sm:$0xf]
        %v918 = vld [vmem:[#allocation6 + $0x4] sm:$0xf]
        %v919 = vld [vmem:[#allocation6 + $0x8] sm:$0xf]
        %v920 = vld [vmem:[#allocation6 + $0xc] sm:$0xf]
        %v921 = vld [vmem:[#allocation6 + $0x10] sm:$0xf]
        %v922 = vld [vmem:[#allocation6 + $0x14] sm:$0xf]
        %v923 = vld [vmem:[#allocation6 + $0x18] sm:$0xf]
        %v924 = vld [vmem:[#allocation6 + $0x1c] sm:$0xf]
        %v925 = vld [vmem:[#allocation6 + $0x20] sm:$0xf]
        %v926 = vld [vmem:[#allocation6 + $0x24] sm:$0xf]
        %v927 = vld [vmem:[#allocation6 + $0x28] sm:$0xf]
        %v928 = vld [vmem:[#allocation6 + $0x2c] sm:$0xf]
        %v929 = vld [vmem:[#allocation6 + $0x30] sm:$0xf]
        %v930 = vld [vmem:[#allocation6 + $0x34] sm:$0xf]
        %v931 = vld [vmem:[#allocation6 + $0x38] sm:$0xf]
        %v932 = vld [vmem:[#allocation6 + $0x3c] sm:$0xf]
        %v933 = vld [vmem:[%s9] sm:$0x1]
        %v935 = vperm.slane %v933, 0
        %v953 = vunpack.c.l.b16 %v917
        %v954 = vunpack.c.l.b16 %v918
        %v955 = vunpack.c.l.b16 %v919
        %v956 = vunpack.c.l.b16 %v920
        %v957 = vunpack.c.l.b16 %v921
        %v958 = vunpack.c.l.b16 %v922
        %v959 = vunpack.c.l.b16 %v923
        %v960 = vunpack.c.l.b16 %v924
        %v961 = vunpack.c.l.b16 %v925
        %v962 = vunpack.c.l.b16 %v926
        %v963 = vunpack.c.l.b16 %v927
        %v964 = vunpack.c.l.b16 %v928
        %v965 = vunpack.c.l.b16 %v929
        %v966 = vunpack.c.l.b16 %v930
        %v967 = vunpack.c.l.b16 %v931
        %v968 = vunpack.c.l.b16 %v932
        %v969 = vpack.c.b16 %v954, %v953
        %v970 = vpack.c.b16 %v956, %v955
        %v971 = vpack.c.b16 %v958, %v957
        %v972 = vpack.c.b16 %v960, %v959
        %v973 = vpack.c.b16 %v962, %v961
        %v974 = vpack.c.b16 %v964, %v963
        %v975 = vpack.c.b16 %v966, %v965
        %v976 = vpack.c.b16 %v968, %v967
        %985 = vmatpush.bf16.msra.mxu0 %v976
        %986 = vmatpush.bf16.msra.mxu0 %v975
        %987 = vmatpush.bf16.msra.mxu0 %v974
        %988 = vmatpush.bf16.msra.mxu0 %v973
        %989 = vmatpush.bf16.msra.mxu0 %v972
        %990 = vmatpush.bf16.msra.mxu0 %v971
        %991 = vmatpush.bf16.msra.mxu0 %v970
        %992 = vmatpush.bf16.msra.mxu0 %v969
        %993 = vmatmul.bf16.gmra.mxu0 %v916
        %v994 = vpop.f32.mrf.mxu0
        %v995 = vadd.f32 %v935, %v994
        %v996 = vpop.f32.mrf.mxu0
        %997 = vdwg.mxu0
        %v998 = vld [vmem:[#allocation8] sm:$0xff]
        %v999 = vld [vmem:[#allocation8 + $0x8] sm:$0xff]
        %v1000 = vld [vmem:[#allocation8 + $0x10] sm:$0xff]
        %v1001 = vld [vmem:[#allocation8 + $0x18] sm:$0xff]
        %v1002 = vld [vmem:[#allocation8 + $0x20] sm:$0xff]
        %v1003 = vld [vmem:[#allocation8 + $0x28] sm:$0xff]
        %v1004 = vld [vmem:[#allocation8 + $0x30] sm:$0xff]
        %v1005 = vld [vmem:[#allocation8 + $0x38] sm:$0xff]
        %v1006 = vld [vmem:[#allocation8 + $0x40] sm:$0xff]
        %v1007 = vld [vmem:[#allocation8 + $0x48] sm:$0xff]
        %v1008 = vld [vmem:[#allocation8 + $0x50] sm:$0xff]
        %v1009 = vld [vmem:[#allocation8 + $0x58] sm:$0xff]
        %v1010 = vld [vmem:[#allocation8 + $0x60] sm:$0xff]
        %v1011 = vld [vmem:[#allocation8 + $0x68] sm:$0xff]
        %v1012 = vld [vmem:[#allocation8 + $0x70] sm:$0xff]
        %v1013 = vld [vmem:[#allocation8 + $0x78] sm:$0xff]
        %v1014 = vld [vmem:[%s11] sm:$0x3]
        %v1016 = vperm.slane %v1014, 0
        %v1017 = vperm.slane %v1014, 1
        %v1036 = vunpack.c.l.b16 %v998
        %v1037 = vunpack.c.h.b16 %v998
        %v1038 = vunpack.c.l.b16 %v999
        %v1039 = vunpack.c.h.b16 %v999
        %v1040 = vunpack.c.l.b16 %v1000
        %v1041 = vunpack.c.h.b16 %v1000
        %v1042 = vunpack.c.l.b16 %v1001
        %v1043 = vunpack.c.h.b16 %v1001
        %v1044 = vunpack.c.l.b16 %v1002
        %v1045 = vunpack.c.h.b16 %v1002
        %v1046 = vunpack.c.l.b16 %v1003
        %v1047 = vunpack.c.h.b16 %v1003
        %v1048 = vunpack.c.l.b16 %v1004
        %v1049 = vunpack.c.h.b16 %v1004
        %v1050 = vunpack.c.l.b16 %v1005
        %v1051 = vunpack.c.h.b16 %v1005
        %v1052 = vunpack.c.l.b16 %v1006
        %v1053 = vunpack.c.h.b16 %v1006
        %v1054 = vunpack.c.l.b16 %v1007
        %v1055 = vunpack.c.h.b16 %v1007
        %v1056 = vunpack.c.l.b16 %v1008
        %v1057 = vunpack.c.h.b16 %v1008
        %v1058 = vunpack.c.l.b16 %v1009
        %v1059 = vunpack.c.h.b16 %v1009
        %v1060 = vunpack.c.l.b16 %v1010
        %v1061 = vunpack.c.h.b16 %v1010
        %v1062 = vunpack.c.l.b16 %v1011
        %v1063 = vunpack.c.h.b16 %v1011
        %v1064 = vunpack.c.l.b16 %v1012
        %v1065 = vunpack.c.h.b16 %v1012
        %v1066 = vunpack.c.l.b16 %v1013
        %v1067 = vunpack.c.h.b16 %v1013
        %v1068 = vpack.c.b16 %v1038, %v1036
        %v1069 = vpack.c.b16 %v1039, %v1037
        %v1070 = vpack.c.b16 %v1042, %v1040
        %v1071 = vpack.c.b16 %v1043, %v1041
        %v1072 = vpack.c.b16 %v1046, %v1044
        %v1073 = vpack.c.b16 %v1047, %v1045
        %v1074 = vpack.c.b16 %v1050, %v1048
        %v1075 = vpack.c.b16 %v1051, %v1049
        %v1076 = vpack.c.b16 %v1054, %v1052
        %v1077 = vpack.c.b16 %v1055, %v1053
        %v1078 = vpack.c.b16 %v1058, %v1056
        %v1079 = vpack.c.b16 %v1059, %v1057
        %v1080 = vpack.c.b16 %v1062, %v1060
        %v1081 = vpack.c.b16 %v1063, %v1061
        %v1082 = vpack.c.b16 %v1066, %v1064
        %v1083 = vpack.c.b16 %v1067, %v1065
        %1100 = vmatpush.bf16.msra.mxu0 %v1082
        %1101 = vmatpush.bf16.msra.mxu0 %v1080
        %1102 = vmatpush.bf16.msra.mxu0 %v1078
        %1103 = vmatpush.bf16.msra.mxu0 %v1076
        %1104 = vmatpush.bf16.msra.mxu0 %v1074
        %1105 = vmatpush.bf16.msra.mxu0 %v1072
        %1106 = vmatpush.bf16.msra.mxu0 %v1070
        %1107 = vmatpush.bf16.msra.mxu0 %v1068
        %1108 = vmatmul.bf16.gmra.mxu0 %v915
        %v1109 = vpop.f32.mrf.mxu0
        %v1110 = vadd.f32 %v1016, %v1109
        %v1111 = vpop.f32.mrf.mxu0
        %v1112 = vadd.f32 %v1016, %v1111
        %1113 = vdwg.mxu0
        %1114 = vmatpush.bf16.msra.mxu0 %v1083
        %1115 = vmatpush.bf16.msra.mxu0 %v1081
        %1116 = vmatpush.bf16.msra.mxu0 %v1079
        %1117 = vmatpush.bf16.msra.mxu0 %v1077
        %1118 = vmatpush.bf16.msra.mxu0 %v1075
        %1119 = vmatpush.bf16.msra.mxu0 %v1073
        %1120 = vmatpush.bf16.msra.mxu0 %v1071
        %1121 = vmatpush.bf16.msra.mxu0 %v1069
        %1122 = vmatmul.bf16.gmra.mxu0 %v915
        %v1123 = vpop.f32.mrf.mxu0
        %v1124 = vadd.f32 %v1017, %v1123
        %v1125 = vpop.f32.mrf.mxu0
        %v1126 = vadd.f32 %v1017, %v1125
        %1127 = vdwg.mxu0
        %v1128 = vpack.c.bf16 %v1110, %v1110
        %v1129 = vpack.c.bf16 %v1112, %v1112
        %v1130 = vpack.c.bf16 %v1124, %v1124
        %v1131 = vpack.c.bf16 %v1126, %v1126
        %v1132 = vpack.c.bf16 %v995, %v995
        %v1135 = vunpack.c.l.b16 %v1128
        %v1136 = vunpack.c.l.b16 %v1129
        %v1137 = vpack.c.b16 %v1136, %v1135
        %vm1138 = vcmask 261120
        %v1140 = vsel %vm1138, %v1132, 0
        %v1143 = vsel %vm1138, %v1137, 0
        %1145 = vmatpush.bf16.xpose.msra.mxu0 0
        %1146 = vmatpush.bf16.xpose.msra.mxu0 0
        %1147 = vmatpush.bf16.xpose.msra.mxu0 0
        %1148 = vmatpush.bf16.xpose.msra.mxu0 0
        %1149 = vmatpush.bf16.xpose.msra.mxu0 0
        %1150 = vmatpush.bf16.xpose.msra.mxu0 0
        %1151 = vmatpush.bf16.xpose.msra.mxu0 0
        %1152 = vmatpush.bf16.xpose.msra.mxu0 %v1143
        %1153 = vmatmul.bf16.gmra.mxu0 %v1140
        %v1154 = vpop.f32.mrf.mxu0
        %v1155 = vadd.f32 0.0, %v1154
        %v1156 = vpop.f32.mrf.mxu0
        %1157 = vdwg.mxu0
        %v1158 = vsel %vm860, %v1155, -inf
        %1159 = vmax.xlane.f32.xlu0 %v1158
        %v1160 = vpop.xlane.xlu0 %1159
        %v1161 = vsub.f32 %v1155, %v1160
        %v1162 = vmul.f32 %v1161, 1.442695
        %v1163 = vpow.pop %v1162
        %v1164 = vsel %vm860, %v1163, 0.0
        %1165 = vadd.xlane.f32.xlu0 %v1164
        %v1166 = vpop.xlane.xlu0 %1165
        %v1167 = vrcp.pop %v1166
        %v1168 = vmul.f32 %v1163, %v1167
        %v1169 = vpack.c.bf16 %v1168, %v1168
        %v1172 = vunpack.c.l.b16 %v1130
        %v1173 = vunpack.c.l.b16 %v1131
        %v1174 = vpack.c.b16 %v1173, %v1172
        %v1177 = vsel %vm860, %v1169, 0
        %1179 = vmatpush.bf16.msra.mxu0 0
        %1180 = vmatpush.bf16.msra.mxu0 0
        %1181 = vmatpush.bf16.msra.mxu0 0
        %1182 = vmatpush.bf16.msra.mxu0 0
        %1183 = vmatpush.bf16.msra.mxu0 0
        %1184 = vmatpush.bf16.msra.mxu0 0
        %1185 = vmatpush.bf16.msra.mxu0 0
        %1186 = vmatpush.bf16.msra.mxu0 %v1174
        %1187 = vmatmul.bf16.gmra.mxu0 %v1177
        %v1188 = vpop.f32.mrf.mxu0
        %v1189 = vadd.f32 0.0, %v1188
        %v1190 = vpop.f32.mrf.mxu0
        %1191 = vdwg.mxu0
        %v1192 = vpack.c.bf16 %v1189, %v1189
        %vm1193 = vcmask 257024
        %1194 = vst.msk [vmem:[#allocation2] sm:$0xf] %vm1193, %v1192
        %1196 = vrot.lane.b32.xlu0 %v1132, 96
        %v1197 = vpop.permute.xlu0 %1196
        %1198 = vrot.lane.b32.xlu0 %v1137, 96
        %v1199 = vpop.permute.xlu0 %1198
        %v1201 = vsel %vm1138, %v1197, 0
        %v1204 = vsel %vm1138, %v1199, 0
        %1206 = vmatpush.bf16.xpose.msra.mxu0 0
        %1207 = vmatpush.bf16.xpose.msra.mxu0 0
        %1208 = vmatpush.bf16.xpose.msra.mxu0 0
        %1209 = vmatpush.bf16.xpose.msra.mxu0 0
        %1210 = vmatpush.bf16.xpose.msra.mxu0 0
        %1211 = vmatpush.bf16.xpose.msra.mxu0 0
        %1212 = vmatpush.bf16.xpose.msra.mxu0 0
        %1213 = vmatpush.bf16.xpose.msra.mxu0 %v1204
        %1214 = vmatmul.bf16.gmra.mxu0 %v1201
        %v1215 = vpop.f32.mrf.mxu0
        %v1216 = vadd.f32 0.0, %v1215
        %v1217 = vpop.f32.mrf.mxu0
        %1218 = vdwg.mxu0
        %v1219 = vsel %vm860, %v1216, -inf
        %1220 = vmax.xlane.f32.xlu0 %v1219
        %v1221 = vpop.xlane.xlu0 %1220
        %v1222 = vsub.f32 %v1216, %v1221
        %v1223 = vmul.f32 %v1222, 1.442695
        %v1224 = vpow.pop %v1223
        %v1225 = vsel %vm860, %v1224, 0.0
        %1226 = vadd.xlane.f32.xlu0 %v1225
        %v1227 = vpop.xlane.xlu0 %1226
        %v1228 = vrcp.pop %v1227
        %v1229 = vmul.f32 %v1224, %v1228
        %v1230 = vpack.c.bf16 %v1229, %v1229
        %1231 = vrot.lane.b32.xlu0 %v1174, 96
        %v1232 = vpop.permute.xlu0 %1231
        %v1235 = vsel %vm860, %v1230, 0
        %1237 = vmatpush.bf16.msra.mxu0 0
        %1238 = vmatpush.bf16.msra.mxu0 0
        %1239 = vmatpush.bf16.msra.mxu0 0
        %1240 = vmatpush.bf16.msra.mxu0 0
        %1241 = vmatpush.bf16.msra.mxu0 0
        %1242 = vmatpush.bf16.msra.mxu0 0
        %1243 = vmatpush.bf16.msra.mxu0 0
        %1244 = vmatpush.bf16.msra.mxu0 %v1232
        %1245 = vmatmul.bf16.gmra.mxu0 %v1235
        %v1246 = vpop.f32.mrf.mxu0
        %v1247 = vadd.f32 0.0, %v1246
        %v1248 = vpop.f32.mrf.mxu0
        %1249 = vdwg.mxu0
        %v1250 = vpack.c.bf16 %v1247, %v1247
        %1252 = vrot.lane.b32.xlu0 %v1250, 32
        %v1253 = vpop.permute.xlu0 %1252
        %vm1255 = vcmask 519424
        %1256 = vst.msk [vmem:[#allocation2] sm:$0xf] %vm1255, %v1253
        %1257 = vrot.lane.b32.xlu0 %v1132, 64
        %v1258 = vpop.permute.xlu0 %1257
        %1259 = vrot.lane.b32.xlu0 %v1137, 64
        %v1260 = vpop.permute.xlu0 %1259
        %v1262 = vsel %vm1138, %v1258, 0
        %v1265 = vsel %vm1138, %v1260, 0
        %1267 = vmatpush.bf16.xpose.msra.mxu0 0
        %1268 = vmatpush.bf16.xpose.msra.mxu0 0
        %1269 = vmatpush.bf16.xpose.msra.mxu0 0
        %1270 = vmatpush.bf16.xpose.msra.mxu0 0
        %1271 = vmatpush.bf16.xpose.msra.mxu0 0
        %1272 = vmatpush.bf16.xpose.msra.mxu0 0
        %1273 = vmatpush.bf16.xpose.msra.mxu0 0
        %1274 = vmatpush.bf16.xpose.msra.mxu0 %v1265
        %1275 = vmatmul.bf16.gmra.mxu0 %v1262
        %v1276 = vpop.f32.mrf.mxu0
        %v1277 = vadd.f32 0.0, %v1276
        %v1278 = vpop.f32.mrf.mxu0
        %1279 = vdwg.mxu0
        %v1280 = vsel %vm860, %v1277, -inf
        %1281 = vmax.xlane.f32.xlu0 %v1280
        %v1282 = vpop.xlane.xlu0 %1281
        %v1283 = vsub.f32 %v1277, %v1282
        %v1284 = vmul.f32 %v1283, 1.442695
        %v1285 = vpow.pop %v1284
        %v1286 = vsel %vm860, %v1285, 0.0
        %1287 = vadd.xlane.f32.xlu0 %v1286
        %v1288 = vpop.xlane.xlu0 %1287
        %v1289 = vrcp.pop %v1288
        %v1290 = vmul.f32 %v1285, %v1289
        %v1291 = vpack.c.bf16 %v1290, %v1290
        %1292 = vrot.lane.b32.xlu0 %v1174, 64
        %v1293 = vpop.permute.xlu0 %1292
        %v1296 = vsel %vm860, %v1291, 0
        %1298 = vmatpush.bf16.msra.mxu0 0
        %1299 = vmatpush.bf16.msra.mxu0 0
        %1300 = vmatpush.bf16.msra.mxu0 0
        %1301 = vmatpush.bf16.msra.mxu0 0
        %1302 = vmatpush.bf16.msra.mxu0 0
        %1303 = vmatpush.bf16.msra.mxu0 0
        %1304 = vmatpush.bf16.msra.mxu0 0
        %1305 = vmatpush.bf16.msra.mxu0 %v1293
        %1306 = vmatmul.bf16.gmra.mxu0 %v1296
        %v1307 = vpop.f32.mrf.mxu0
        %v1308 = vadd.f32 0.0, %v1307
        %v1309 = vpop.f32.mrf.mxu0
        %1310 = vdwg.mxu0
        %v1311 = vpack.c.bf16 %v1308, %v1308
        %1313 = vrot.lane.b32.xlu0 %v1311, 64
        %v1314 = vpop.permute.xlu0 %1313
        %vm1316 = vcmask 781824
        %1317 = vst.msk [vmem:[#allocation2] sm:$0xf] %vm1316, %v1314
        %1318 = vrot.lane.b32.xlu0 %v1132, 32
        %v1319 = vpop.permute.xlu0 %1318
        %1320 = vrot.lane.b32.xlu0 %v1137, 32
        %v1321 = vpop.permute.xlu0 %1320
        %v1323 = vsel %vm1138, %v1319, 0
        %v1326 = vsel %vm1138, %v1321, 0
        %1328 = vmatpush.bf16.xpose.msra.mxu0 0
        %1329 = vmatpush.bf16.xpose.msra.mxu0 0
        %1330 = vmatpush.bf16.xpose.msra.mxu0 0
        %1331 = vmatpush.bf16.xpose.msra.mxu0 0
        %1332 = vmatpush.bf16.xpose.msra.mxu0 0
        %1333 = vmatpush.bf16.xpose.msra.mxu0 0
        %1334 = vmatpush.bf16.xpose.msra.mxu0 0
        %1335 = vmatpush.bf16.xpose.msra.mxu0 %v1326
        %1336 = vmatmul.bf16.gmra.mxu0 %v1323
        %v1337 = vpop.f32.mrf.mxu0
        %v1338 = vadd.f32 0.0, %v1337
        %v1339 = vpop.f32.mrf.mxu0
        %1340 = vdwg.mxu0
        %v1341 = vsel %vm860, %v1338, -inf
        %1342 = vmax.xlane.f32.xlu0 %v1341
        %v1343 = vpop.xlane.xlu0 %1342
        %v1344 = vsub.f32 %v1338, %v1343
        %v1345 = vmul.f32 %v1344, 1.442695
        %v1346 = vpow.pop %v1345
        %v1347 = vsel %vm860, %v1346, 0.0
        %1348 = vadd.xlane.f32.xlu0 %v1347
        %v1349 = vpop.xlane.xlu0 %1348
        %v1350 = vrcp.pop %v1349
        %v1351 = vmul.f32 %v1346, %v1350
        %v1352 = vpack.c.bf16 %v1351, %v1351
        %1353 = vrot.lane.b32.xlu0 %v1174, 32
        %v1354 = vpop.permute.xlu0 %1353
        %v1357 = vsel %vm860, %v1352, 0
        %1359 = vmatpush.bf16.msra.mxu0 0
        %1360 = vmatpush.bf16.msra.mxu0 0
        %1361 = vmatpush.bf16.msra.mxu0 0
        %1362 = vmatpush.bf16.msra.mxu0 0
        %1363 = vmatpush.bf16.msra.mxu0 0
        %1364 = vmatpush.bf16.msra.mxu0 0
        %1365 = vmatpush.bf16.msra.mxu0 0
        %1366 = vmatpush.bf16.msra.mxu0 %v1354
        %1367 = vmatmul.bf16.gmra.mxu0 %v1357
        %v1368 = vpop.f32.mrf.mxu0
        %v1369 = vadd.f32 0.0, %v1368
        %v1370 = vpop.f32.mrf.mxu0
        %1371 = vdwg.mxu0
        %v1372 = vpack.c.bf16 %v1369, %v1369
        %1374 = vrot.lane.b32.xlu0 %v1372, 96
        %v1375 = vpop.permute.xlu0 %1374
        %vm1377 = vcmask 1044224
        %1378 = vst.msk [vmem:[#allocation2] sm:$0xf] %vm1377, %v1375
        %v1379 = vld [vmem:[#allocation2] sm:$0xf]
        %v1380 = vld [vmem:[#allocation9] sm:$0xf]
        %v1381 = vld [vmem:[#allocation9 + $0x4] sm:$0xf]
        %v1382 = vld [vmem:[#allocation9 + $0x8] sm:$0xf]
        %v1383 = vld [vmem:[#allocation9 + $0xc] sm:$0xf]
        %v1384 = vld [vmem:[#allocation9 + $0x10] sm:$0xf]
        %v1385 = vld [vmem:[#allocation9 + $0x14] sm:$0xf]
        %v1386 = vld [vmem:[#allocation9 + $0x18] sm:$0xf]
        %v1387 = vld [vmem:[#allocation9 + $0x1c] sm:$0xf]
        %v1388 = vld [vmem:[#allocation9 + $0x20] sm:$0xf]
        %v1389 = vld [vmem:[#allocation9 + $0x24] sm:$0xf]
        %v1390 = vld [vmem:[#allocation9 + $0x28] sm:$0xf]
        %v1391 = vld [vmem:[#allocation9 + $0x2c] sm:$0xf]
        %v1392 = vld [vmem:[#allocation9 + $0x30] sm:$0xf]
        %v1393 = vld [vmem:[#allocation9 + $0x34] sm:$0xf]
        %v1394 = vld [vmem:[#allocation9 + $0x38] sm:$0xf]
        %v1395 = vld [vmem:[#allocation9 + $0x3c] sm:$0xf]
        %v1396 = vld [vmem:[%s13] sm:$0x1]
        %v1398 = vperm.slane %v1396, 0
        %v1416 = vunpack.c.l.b16 %v1380
        %v1417 = vunpack.c.l.b16 %v1381
        %v1418 = vunpack.c.l.b16 %v1382
        %v1419 = vunpack.c.l.b16 %v1383
        %v1420 = vunpack.c.l.b16 %v1384
        %v1421 = vunpack.c.l.b16 %v1385
        %v1422 = vunpack.c.l.b16 %v1386
        %v1423 = vunpack.c.l.b16 %v1387
        %v1424 = vunpack.c.l.b16 %v1388
        %v1425 = vunpack.c.l.b16 %v1389
        %v1426 = vunpack.c.l.b16 %v1390
        %v1427 = vunpack.c.l.b16 %v1391
        %v1428 = vunpack.c.l.b16 %v1392
        %v1429 = vunpack.c.l.b16 %v1393
        %v1430 = vunpack.c.l.b16 %v1394
        %v1431 = vunpack.c.l.b16 %v1395
        %v1432 = vpack.c.b16 %v1417, %v1416
        %v1433 = vpack.c.b16 %v1419, %v1418
        %v1434 = vpack.c.b16 %v1421, %v1420
        %v1435 = vpack.c.b16 %v1423, %v1422
        %v1436 = vpack.c.b16 %v1425, %v1424
        %v1437 = vpack.c.b16 %v1427, %v1426
        %v1438 = vpack.c.b16 %v1429, %v1428
        %v1439 = vpack.c.b16 %v1431, %v1430
        %1448 = vmatpush.bf16.msra.mxu0 %v1439
        %1449 = vmatpush.bf16.msra.mxu0 %v1438
        %1450 = vmatpush.bf16.msra.mxu0 %v1437
        %1451 = vmatpush.bf16.msra.mxu0 %v1436
        %1452 = vmatpush.bf16.msra.mxu0 %v1435
        %1453 = vmatpush.bf16.msra.mxu0 %v1434
        %1454 = vmatpush.bf16.msra.mxu0 %v1433
        %1455 = vmatpush.bf16.msra.mxu0 %v1432
        %1456 = vmatmul.bf16.gmra.mxu0 %v1379
        %v1457 = vpop.f32.mrf.mxu0
        %v1458 = vadd.f32 %v1398, %v1457
        %v1459 = vpop.f32.mrf.mxu0
        %1460 = vdwg.mxu0
        %v1461 = vadd.f32 %v914, %v1458
        %v1462 = vld [vmem:[%s14] sm:$0x1]
        %v1463 = vld [vmem:[%s15] sm:$0x1]
        %1464 = vadd.xlane.f32.xlu0 %v1461
        %v1465 = vpop.xlane.xlu0 %1464
        %v1466 = vmul.f32 %v1465, %v888
        %v1467 = vsub.f32 %v1461, %v1466
        %v1468 = vmul.f32 %v1467, %v1467
        %1469 = vadd.xlane.f32.xlu0 %v1468
        %v1470 = vpop.xlane.xlu0 %1469
        %v1471 = vmul.f32 %v1470, %v888
        %v1472 = vadd.f32 %v1471, 1e-05
        %v1473 = vrsqrt.pop %v1472
        %v1474 = vmul.f32 %v1473, %v1472
        %v1475 = vmul.f32 %v1474, %v1473
        %v1476 = vmul.f32 0.5, %v1475
        %v1477 = vsub.f32 1.5, %v1476
        %v1478 = vmul.f32 %v1473, %v1477
        %vm1479 = vweird.f32 %v1472
        %vm1480 = vweird.f32 %v1473
        %vm1481 = vmor %vm1479, %vm1480
        %v1482 = vsel %vm1481, %v1473, %v1478
        %v1483 = vmul.f32 %v1467, %v1482
        %v1485 = vperm.slane %v1462, 0
        %v1487 = vmul.f32 %v1483, %v1485
        %v1489 = vperm.slane %v1463, 0
        %v1491 = vadd.f32 %v1487, %v1489
        %v1492 = vpack.c.bf16 %v1491, %v1491
        %v1493 = vld [vmem:[#allocation11] sm:$0xff]
        %v1494 = vld [vmem:[#allocation11 + $0x8] sm:$0xff]
        %v1495 = vld [vmem:[#allocation11 + $0x10] sm:$0xff]
        %v1496 = vld [vmem:[#allocation11 + $0x18] sm:$0xff]
        %v1497 = vld [vmem:[#allocation11 + $0x20] sm:$0xff]
        %v1498 = vld [vmem:[#allocation11 + $0x28] sm:$0xff]
        %v1499 = vld [vmem:[#allocation11 + $0x30] sm:$0xff]
        %v1500 = vld [vmem:[#allocation11 + $0x38] sm:$0xff]
        %v1501 = vld [vmem:[#allocation11 + $0x40] sm:$0xff]
        %v1502 = vld [vmem:[#allocation11 + $0x48] sm:$0xff]
        %v1503 = vld [vmem:[#allocation11 + $0x50] sm:$0xff]
        %v1504 = vld [vmem:[#allocation11 + $0x58] sm:$0xff]
        %v1505 = vld [vmem:[#allocation11 + $0x60] sm:$0xff]
        %v1506 = vld [vmem:[#allocation11 + $0x68] sm:$0xff]
        %v1507 = vld [vmem:[#allocation11 + $0x70] sm:$0xff]
        %v1508 = vld [vmem:[#allocation11 + $0x78] sm:$0xff]
        %v1509 = vld [vmem:[#allocation11 + $0x80] sm:$0xff]
        %v1510 = vld [vmem:[#allocation11 + $0x88] sm:$0xff]
        %v1511 = vld [vmem:[#allocation11 + $0x90] sm:$0xff]
        %v1512 = vld [vmem:[#allocation11 + $0x98] sm:$0xff]
        %v1513 = vld [vmem:[#allocation11 + $0xa0] sm:$0xff]
        %v1514 = vld [vmem:[#allocation11 + $0xa8] sm:$0xff]
        %v1515 = vld [vmem:[#allocation11 + $0xb0] sm:$0xff]
        %v1516 = vld [vmem:[#allocation11 + $0xb8] sm:$0xff]
        %v1517 = vld [vmem:[#allocation11 + $0xc0] sm:$0xff]
        %v1518 = vld [vmem:[#allocation11 + $0xc8] sm:$0xff]
        %v1519 = vld [vmem:[#allocation11 + $0xd0] sm:$0xff]
        %v1520 = vld [vmem:[#allocation11 + $0xd8] sm:$0xff]
        %v1521 = vld [vmem:[#allocation11 + $0xe0] sm:$0xff]
        %v1522 = vld [vmem:[#allocation11 + $0xe8] sm:$0xff]
        %v1523 = vld [vmem:[#allocation11 + $0xf0] sm:$0xff]
        %v1524 = vld [vmem:[#allocation11 + $0xf8] sm:$0xff]
        %v1525 = vld [vmem:[%s17] sm:$0xf]
        %v1527 = vperm.slane %v1525, 0
        %v1528 = vperm.slane %v1525, 1
        %v1529 = vperm.slane %v1525, 2
        %v1530 = vperm.slane %v1525, 3
        %v1567 = vunpack.c.l.b16 %v1493
        %v1568 = vunpack.c.h.b16 %v1493
        %v1569 = vunpack.c.l.b16 %v1494
        %v1570 = vunpack.c.h.b16 %v1494
        %v1571 = vunpack.c.l.b16 %v1495
        %v1572 = vunpack.c.h.b16 %v1495
        %v1573 = vunpack.c.l.b16 %v1496
        %v1574 = vunpack.c.h.b16 %v1496
        %v1575 = vunpack.c.l.b16 %v1497
        %v1576 = vunpack.c.h.b16 %v1497
        %v1577 = vunpack.c.l.b16 %v1498
        %v1578 = vunpack.c.h.b16 %v1498
        %v1579 = vunpack.c.l.b16 %v1499
        %v1580 = vunpack.c.h.b16 %v1499
        %v1581 = vunpack.c.l.b16 %v1500
        %v1582 = vunpack.c.h.b16 %v1500
        %v1583 = vunpack.c.l.b16 %v1501
        %v1584 = vunpack.c.h.b16 %v1501
        %v1585 = vunpack.c.l.b16 %v1502
        %v1586 = vunpack.c.h.b16 %v1502
        %v1587 = vunpack.c.l.b16 %v1503
        %v1588 = vunpack.c.h.b16 %v1503
        %v1589 = vunpack.c.l.b16 %v1504
        %v1590 = vunpack.c.h.b16 %v1504
        %v1591 = vunpack.c.l.b16 %v1505
        %v1592 = vunpack.c.h.b16 %v1505
        %v1593 = vunpack.c.l.b16 %v1506
        %v1594 = vunpack.c.h.b16 %v1506
        %v1595 = vunpack.c.l.b16 %v1507
        %v1596 = vunpack.c.h.b16 %v1507
        %v1597 = vunpack.c.l.b16 %v1508
        %v1598 = vunpack.c.h.b16 %v1508
        %v1599 = vunpack.c.l.b16 %v1509
        %v1600 = vunpack.c.h.b16 %v1509
        %v1601 = vunpack.c.l.b16 %v1510
        %v1602 = vunpack.c.h.b16 %v1510
        %v1603 = vunpack.c.l.b16 %v1511
        %v1604 = vunpack.c.h.b16 %v1511
        %v1605 = vunpack.c.l.b16 %v1512
        %v1606 = vunpack.c.h.b16 %v1512
        %v1607 = vunpack.c.l.b16 %v1513
        %v1608 = vunpack.c.h.b16 %v1513
        %v1609 = vunpack.c.l.b16 %v1514
        %v1610 = vunpack.c.h.b16 %v1514
        %v1611 = vunpack.c.l.b16 %v1515
        %v1612 = vunpack.c.h.b16 %v1515
        %v1613 = vunpack.c.l.b16 %v1516
        %v1614 = vunpack.c.h.b16 %v1516
        %v1615 = vunpack.c.l.b16 %v1517
        %v1616 = vunpack.c.h.b16 %v1517
        %v1617 = vunpack.c.l.b16 %v1518
        %v1618 = vunpack.c.h.b16 %v1518
        %v1619 = vunpack.c.l.b16 %v1519
        %v1620 = vunpack.c.h.b16 %v1519
        %v1621 = vunpack.c.l.b16 %v1520
        %v1622 = vunpack.c.h.b16 %v1520
        %v1623 = vunpack.c.l.b16 %v1521
        %v1624 = vunpack.c.h.b16 %v1521
        %v1625 = vunpack.c.l.b16 %v1522
        %v1626 = vunpack.c.h.b16 %v1522
        %v1627 = vunpack.c.l.b16 %v1523
        %v1628 = vunpack.c.h.b16 %v1523
        %v1629 = vunpack.c.l.b16 %v1524
        %v1630 = vunpack.c.h.b16 %v1524
        %v1631 = vpack.c.b16 %v1571, %v1567
        %v1632 = vpack.c.b16 %v1572, %v1568
        %v1633 = vpack.c.b16 %v1573, %v1569
        %v1634 = vpack.c.b16 %v1574, %v1570
        %v1635 = vpack.c.b16 %v1579, %v1575
        %v1636 = vpack.c.b16 %v1580, %v1576
        %v1637 = vpack.c.b16 %v1581, %v1577
        %v1638 = vpack.c.b16 %v1582, %v1578
        %v1639 = vpack.c.b16 %v1587, %v1583
        %v1640 = vpack.c.b16 %v1588, %v1584
        %v1641 = vpack.c.b16 %v1589, %v1585
        %v1642 = vpack.c.b16 %v1590, %v1586
        %v1643 = vpack.c.b16 %v1595, %v1591
        %v1644 = vpack.c.b16 %v1596, %v1592
        %v1645 = vpack.c.b16 %v1597, %v1593
        %v1646 = vpack.c.b16 %v1598, %v1594
        %v1647 = vpack.c.b16 %v1603, %v1599
        %v1648 = vpack.c.b16 %v1604, %v1600
        %v1649 = vpack.c.b16 %v1605, %v1601
        %v1650 = vpack.c.b16 %v1606, %v1602
        %v1651 = vpack.c.b16 %v1611, %v1607
        %v1652 = vpack.c.b16 %v1612, %v1608
        %v1653 = vpack.c.b16 %v1613, %v1609
        %v1654 = vpack.c.b16 %v1614, %v1610
        %v1655 = vpack.c.b16 %v1619, %v1615
        %v1656 = vpack.c.b16 %v1620, %v1616
        %v1657 = vpack.c.b16 %v1621, %v1617
        %v1658 = vpack.c.b16 %v1622, %v1618
        %v1659 = vpack.c.b16 %v1627, %v1623
        %v1660 = vpack.c.b16 %v1628, %v1624
        %v1661 = vpack.c.b16 %v1629, %v1625
        %v1662 = vpack.c.b16 %v1630, %v1626
        %1695 = vmatpush.bf16.msra.mxu0 %v1659
        %1696 = vmatpush.bf16.msra.mxu0 %v1655
        %1697 = vmatpush.bf16.msra.mxu0 %v1651
        %1698 = vmatpush.bf16.msra.mxu0 %v1647
        %1699 = vmatpush.bf16.msra.mxu0 %v1643
        %1700 = vmatpush.bf16.msra.mxu0 %v1639
        %1701 = vmatpush.bf16.msra.mxu0 %v1635
        %1702 = vmatpush.bf16.msra.mxu0 %v1631
        %1703 = vmatmul.bf16.gmra.mxu0 %v1492
        %v1704 = vpop.f32.mrf.mxu0
        %v1705 = vadd.f32 %v1527, %v1704
        %v1706 = vpop.f32.mrf.mxu0
        %1707 = vdwg.mxu0
        %1708 = vmatpush.bf16.msra.mxu0 %v1660
        %1709 = vmatpush.bf16.msra.mxu0 %v1656
        %1710 = vmatpush.bf16.msra.mxu0 %v1652
        %1711 = vmatpush.bf16.msra.mxu0 %v1648
        %1712 = vmatpush.bf16.msra.mxu0 %v1644
        %1713 = vmatpush.bf16.msra.mxu0 %v1640
        %1714 = vmatpush.bf16.msra.mxu0 %v1636
        %1715 = vmatpush.bf16.msra.mxu0 %v1632
        %1716 = vmatmul.bf16.gmra.mxu0 %v1492
        %v1717 = vpop.f32.mrf.mxu0
        %v1718 = vadd.f32 %v1528, %v1717
        %v1719 = vpop.f32.mrf.mxu0
        %1720 = vdwg.mxu0
        %1721 = vmatpush.bf16.msra.mxu0 %v1661
        %1722 = vmatpush.bf16.msra.mxu0 %v1657
        %1723 = vmatpush.bf16.msra.mxu0 %v1653
        %1724 = vmatpush.bf16.msra.mxu0 %v1649
        %1725 = vmatpush.bf16.msra.mxu0 %v1645
        %1726 = vmatpush.bf16.msra.mxu0 %v1641
        %1727 = vmatpush.bf16.msra.mxu0 %v1637
        %1728 = vmatpush.bf16.msra.mxu0 %v1633
        %1729 = vmatmul.bf16.gmra.mxu0 %v1492
        %v1730 = vpop.f32.mrf.mxu0
        %v1731 = vadd.f32 %v1529, %v1730
        %v1732 = vpop.f32.mrf.mxu0
        %1733 = vdwg.mxu0
        %1734 = vmatpush.bf16.msra.mxu0 %v1662
        %1735 = vmatpush.bf16.msra.mxu0 %v1658
        %1736 = vmatpush.bf16.msra.mxu0 %v1654
        %1737 = vmatpush.bf16.msra.mxu0 %v1650
        %1738 = vmatpush.bf16.msra.mxu0 %v1646
        %1739 = vmatpush.bf16.msra.mxu0 %v1642
        %1740 = vmatpush.bf16.msra.mxu0 %v1638
        %1741 = vmatpush.bf16.msra.mxu0 %v1634
        %1742 = vmatmul.bf16.gmra.mxu0 %v1492
        %v1743 = vpop.f32.mrf.mxu0
        %v1744 = vadd.f32 %v1530, %v1743
        %v1745 = vpop.f32.mrf.mxu0
        %1746 = vdwg.mxu0
        %v1747 = vmax.f32 %v1705, 0.0
        %v1748 = vmax.f32 %v1718, 0.0
        %v1749 = vmax.f32 %v1731, 0.0
        %v1750 = vmax.f32 %v1744, 0.0
        %v1751 = vpack.c.bf16 %v1747, %v1747
        %v1752 = vpack.c.bf16 %v1748, %v1748
        %v1753 = vpack.c.bf16 %v1749, %v1749
        %v1754 = vpack.c.bf16 %v1750, %v1750
        %v1755 = vld [vmem:[#allocation12] sm:$0xf]
        %v1756 = vld [vmem:[#allocation12 + $0x4] sm:$0xf]
        %v1757 = vld [vmem:[#allocation12 + $0x8] sm:$0xf]
        %v1758 = vld [vmem:[#allocation12 + $0xc] sm:$0xf]
        %v1759 = vld [vmem:[#allocation12 + $0x10] sm:$0xf]
        %v1760 = vld [vmem:[#allocation12 + $0x14] sm:$0xf]
        %v1761 = vld [vmem:[#allocation12 + $0x18] sm:$0xf]
        %v1762 = vld [vmem:[#allocation12 + $0x1c] sm:$0xf]
        %v1763 = vld [vmem:[#allocation12 + $0x20] sm:$0xf]
        %v1764 = vld [vmem:[#allocation12 + $0x24] sm:$0xf]
        %v1765 = vld [vmem:[#allocation12 + $0x28] sm:$0xf]
        %v1766 = vld [vmem:[#allocation12 + $0x2c] sm:$0xf]
        %v1767 = vld [vmem:[#allocation12 + $0x30] sm:$0xf]
        %v1768 = vld [vmem:[#allocation12 + $0x34] sm:$0xf]
        %v1769 = vld [vmem:[#allocation12 + $0x38] sm:$0xf]
        %v1770 = vld [vmem:[#allocation12 + $0x3c] sm:$0xf]
        %v1771 = vld [vmem:[#allocation12 + $0x40] sm:$0xf]
        %v1772 = vld [vmem:[#allocation12 + $0x44] sm:$0xf]
        %v1773 = vld [vmem:[#allocation12 + $0x48] sm:$0xf]
        %v1774 = vld [vmem:[#allocation12 + $0x4c] sm:$0xf]
        %v1775 = vld [vmem:[#allocation12 + $0x50] sm:$0xf]
        %v1776 = vld [vmem:[#allocation12 + $0x54] sm:$0xf]
        %v1777 = vld [vmem:[#allocation12 + $0x58] sm:$0xf]
        %v1778 = vld [vmem:[#allocation12 + $0x5c] sm:$0xf]
        %v1779 = vld [vmem:[#allocation12 + $0x60] sm:$0xf]
        %v1780 = vld [vmem:[#allocation12 + $0x64] sm:$0xf]
        %v1781 = vld [vmem:[#allocation12 + $0x68] sm:$0xf]
        %v1782 = vld [vmem:[#allocation12 + $0x6c] sm:$0xf]
        %v1783 = vld [vmem:[#allocation12 + $0x70] sm:$0xf]
        %v1784 = vld [vmem:[#allocation12 + $0x74] sm:$0xf]
        %v1785 = vld [vmem:[#allocation12 + $0x78] sm:$0xf]
        %v1786 = vld [vmem:[#allocation12 + $0x7c] sm:$0xf]
        %v1787 = vld [vmem:[#allocation12 + $0x80] sm:$0xf]
        %v1788 = vld [vmem:[#allocation12 + $0x84] sm:$0xf]
        %v1789 = vld [vmem:[#allocation12 + $0x88] sm:$0xf]
        %v1790 = vld [vmem:[#allocation12 + $0x8c] sm:$0xf]
        %v1791 = vld [vmem:[#allocation12 + $0x90] sm:$0xf]
        %v1792 = vld [vmem:[#allocation12 + $0x94] sm:$0xf]
        %v1793 = vld [vmem:[#allocation12 + $0x98] sm:$0xf]
        %v1794 = vld [vmem:[#allocation12 + $0x9c] sm:$0xf]
        %v1795 = vld [vmem:[#allocation12 + $0xa0] sm:$0xf]
        %v1796 = vld [vmem:[#allocation12 + $0xa4] sm:$0xf]
        %v1797 = vld [vmem:[#allocation12 + $0xa8] sm:$0xf]
        %v1798 = vld [vmem:[#allocation12 + $0xac] sm:$0xf]
        %v1799 = vld [vmem:[#allocation12 + $0xb0] sm:$0xf]
        %v1800 = vld [vmem:[#allocation12 + $0xb4] sm:$0xf]
        %v1801 = vld [vmem:[#allocation12 + $0xb8] sm:$0xf]
        %v1802 = vld [vmem:[#allocation12 + $0xbc] sm:$0xf]
        %v1803 = vld [vmem:[#allocation12 + $0xc0] sm:$0xf]
        %v1804 = vld [vmem:[#allocation12 + $0xc4] sm:$0xf]
        %v1805 = vld [vmem:[#allocation12 + $0xc8] sm:$0xf]
        %v1806 = vld [vmem:[#allocation12 + $0xcc] sm:$0xf]
        %v1807 = vld [vmem:[#allocation12 + $0xd0] sm:$0xf]
        %v1808 = vld [vmem:[#allocation12 + $0xd4] sm:$0xf]
        %v1809 = vld [vmem:[#allocation12 + $0xd8] sm:$0xf]
        %v1810 = vld [vmem:[#allocation12 + $0xdc] sm:$0xf]
        %v1811 = vld [vmem:[#allocation12 + $0xe0] sm:$0xf]
        %v1812 = vld [vmem:[#allocation12 + $0xe4] sm:$0xf]
        %v1813 = vld [vmem:[#allocation12 + $0xe8] sm:$0xf]
        %v1814 = vld [vmem:[#allocation12 + $0xec] sm:$0xf]
        %v1815 = vld [vmem:[#allocation12 + $0xf0] sm:$0xf]
        %v1816 = vld [vmem:[#allocation12 + $0xf4] sm:$0xf]
        %v1817 = vld [vmem:[#allocation12 + $0xf8] sm:$0xf]
        %v1818 = vld [vmem:[#allocation12 + $0xfc] sm:$0xf]
        %v1819 = vld [vmem:[%s19] sm:$0x1]
        %v1821 = vperm.slane %v1819, 0
        %v1887 = vunpack.c.l.b16 %v1755
        %v1888 = vunpack.c.l.b16 %v1756
        %v1889 = vunpack.c.l.b16 %v1757
        %v1890 = vunpack.c.l.b16 %v1758
        %v1891 = vunpack.c.l.b16 %v1759
        %v1892 = vunpack.c.l.b16 %v1760
        %v1893 = vunpack.c.l.b16 %v1761
        %v1894 = vunpack.c.l.b16 %v1762
        %v1895 = vunpack.c.l.b16 %v1763
        %v1896 = vunpack.c.l.b16 %v1764
        %v1897 = vunpack.c.l.b16 %v1765
        %v1898 = vunpack.c.l.b16 %v1766
        %v1899 = vunpack.c.l.b16 %v1767
        %v1900 = vunpack.c.l.b16 %v1768
        %v1901 = vunpack.c.l.b16 %v1769
        %v1902 = vunpack.c.l.b16 %v1770
        %v1903 = vunpack.c.l.b16 %v1771
        %v1904 = vunpack.c.l.b16 %v1772
        %v1905 = vunpack.c.l.b16 %v1773
        %v1906 = vunpack.c.l.b16 %v1774
        %v1907 = vunpack.c.l.b16 %v1775
        %v1908 = vunpack.c.l.b16 %v1776
        %v1909 = vunpack.c.l.b16 %v1777
        %v1910 = vunpack.c.l.b16 %v1778
        %v1911 = vunpack.c.l.b16 %v1779
        %v1912 = vunpack.c.l.b16 %v1780
        %v1913 = vunpack.c.l.b16 %v1781
        %v1914 = vunpack.c.l.b16 %v1782
        %v1915 = vunpack.c.l.b16 %v1783
        %v1916 = vunpack.c.l.b16 %v1784
        %v1917 = vunpack.c.l.b16 %v1785
        %v1918 = vunpack.c.l.b16 %v1786
        %v1919 = vunpack.c.l.b16 %v1787
        %v1920 = vunpack.c.l.b16 %v1788
        %v1921 = vunpack.c.l.b16 %v1789
        %v1922 = vunpack.c.l.b16 %v1790
        %v1923 = vunpack.c.l.b16 %v1791
        %v1924 = vunpack.c.l.b16 %v1792
        %v1925 = vunpack.c.l.b16 %v1793
        %v1926 = vunpack.c.l.b16 %v1794
        %v1927 = vunpack.c.l.b16 %v1795
        %v1928 = vunpack.c.l.b16 %v1796
        %v1929 = vunpack.c.l.b16 %v1797
        %v1930 = vunpack.c.l.b16 %v1798
        %v1931 = vunpack.c.l.b16 %v1799
        %v1932 = vunpack.c.l.b16 %v1800
        %v1933 = vunpack.c.l.b16 %v1801
        %v1934 = vunpack.c.l.b16 %v1802
        %v1935 = vunpack.c.l.b16 %v1803
        %v1936 = vunpack.c.l.b16 %v1804
        %v1937 = vunpack.c.l.b16 %v1805
        %v1938 = vunpack.c.l.b16 %v1806
        %v1939 = vunpack.c.l.b16 %v1807
        %v1940 = vunpack.c.l.b16 %v1808
        %v1941 = vunpack.c.l.b16 %v1809
        %v1942 = vunpack.c.l.b16 %v1810
        %v1943 = vunpack.c.l.b16 %v1811
        %v1944 = vunpack.c.l.b16 %v1812
        %v1945 = vunpack.c.l.b16 %v1813
        %v1946 = vunpack.c.l.b16 %v1814
        %v1947 = vunpack.c.l.b16 %v1815
        %v1948 = vunpack.c.l.b16 %v1816
        %v1949 = vunpack.c.l.b16 %v1817
        %v1950 = vunpack.c.l.b16 %v1818
        %v1951 = vpack.c.b16 %v1888, %v1887
        %v1952 = vpack.c.b16 %v1890, %v1889
        %v1953 = vpack.c.b16 %v1892, %v1891
        %v1954 = vpack.c.b16 %v1894, %v1893
        %v1955 = vpack.c.b16 %v1896, %v1895
        %v1956 = vpack.c.b16 %v1898, %v1897
        %v1957 = vpack.c.b16 %v1900, %v1899
        %v1958 = vpack.c.b16 %v1902, %v1901
        %v1959 = vpack.c.b16 %v1904, %v1903
        %v1960 = vpack.c.b16 %v1906, %v1905
        %v1961 = vpack.c.b16 %v1908, %v1907
        %v1962 = vpack.c.b16 %v1910, %v1909
        %v1963 = vpack.c.b16 %v1912, %v1911
        %v1964 = vpack.c.b16 %v1914, %v1913
        %v1965 = vpack.c.b16 %v1916, %v1915
        %v1966 = vpack.c.b16 %v1918, %v1917
        %v1967 = vpack.c.b16 %v1920, %v1919
        %v1968 = vpack.c.b16 %v1922, %v1921
        %v1969 = vpack.c.b16 %v1924, %v1923
        %v1970 = vpack.c.b16 %v1926, %v1925
        %v1971 = vpack.c.b16 %v1928, %v1927
        %v1972 = vpack.c.b16 %v1930, %v1929
        %v1973 = vpack.c.b16 %v1932, %v1931
        %v1974 = vpack.c.b16 %v1934, %v1933
        %v1975 = vpack.c.b16 %v1936, %v1935
        %v1976 = vpack.c.b16 %v1938, %v1937
        %v1977 = vpack.c.b16 %v1940, %v1939
        %v1978 = vpack.c.b16 %v1942, %v1941
        %v1979 = vpack.c.b16 %v1944, %v1943
        %v1980 = vpack.c.b16 %v1946, %v1945
        %v1981 = vpack.c.b16 %v1948, %v1947
        %v1982 = vpack.c.b16 %v1950, %v1949
        %2015 = vmatpush.bf16.msra.mxu0 %v1958
        %2016 = vmatpush.bf16.msra.mxu0 %v1957
        %2017 = vmatpush.bf16.msra.mxu0 %v1956
        %2018 = vmatpush.bf16.msra.mxu0 %v1955
        %2019 = vmatpush.bf16.msra.mxu0 %v1954
        %2020 = vmatpush.bf16.msra.mxu0 %v1953
        %2021 = vmatpush.bf16.msra.mxu0 %v1952
        %2022 = vmatpush.bf16.msra.mxu0 %v1951
        %2023 = vmatmul.bf16.gmra.mxu0 %v1751
        %v2024 = vpop.f32.mrf.mxu0
        %v2025 = vadd.f32 %v1821, %v2024
        %v2026 = vpop.f32.mrf.mxu0
        %2027 = vdwg.mxu0
        %2028 = vmatpush.bf16.msra.mxu0 %v1966
        %2029 = vmatpush.bf16.msra.mxu0 %v1965
        %2030 = vmatpush.bf16.msra.mxu0 %v1964
        %2031 = vmatpush.bf16.msra.mxu0 %v1963
        %2032 = vmatpush.bf16.msra.mxu0 %v1962
        %2033 = vmatpush.bf16.msra.mxu0 %v1961
        %2034 = vmatpush.bf16.msra.mxu0 %v1960
        %2035 = vmatpush.bf16.msra.mxu0 %v1959
        %2036 = vmatmul.bf16.gmra.mxu0 %v1752
        %v2037 = vpop.f32.mrf.mxu0
        %v2038 = vadd.f32 %v2025, %v2037
        %v2039 = vpop.f32.mrf.mxu0
        %2040 = vdwg.mxu0
        %2041 = vmatpush.bf16.msra.mxu0 %v1974
        %2042 = vmatpush.bf16.msra.mxu0 %v1973
        %2043 = vmatpush.bf16.msra.mxu0 %v1972
        %2044 = vmatpush.bf16.msra.mxu0 %v1971
        %2045 = vmatpush.bf16.msra.mxu0 %v1970
        %2046 = vmatpush.bf16.msra.mxu0 %v1969
        %2047 = vmatpush.bf16.msra.mxu0 %v1968
        %2048 = vmatpush.bf16.msra.mxu0 %v1967
        %2049 = vmatmul.bf16.gmra.mxu0 %v1753
        %v2050 = vpop.f32.mrf.mxu0
        %v2051 = vadd.f32 %v2038, %v2050
        %v2052 = vpop.f32.mrf.mxu0
        %2053 = vdwg.mxu0
        %2054 = vmatpush.bf16.msra.mxu0 %v1982
        %2055 = vmatpush.bf16.msra.mxu0 %v1981
        %2056 = vmatpush.bf16.msra.mxu0 %v1980
        %2057 = vmatpush.bf16.msra.mxu0 %v1979
        %2058 = vmatpush.bf16.msra.mxu0 %v1978
        %2059 = vmatpush.bf16.msra.mxu0 %v1977
        %2060 = vmatpush.bf16.msra.mxu0 %v1976
        %2061 = vmatpush.bf16.msra.mxu0 %v1975
        %2062 = vmatmul.bf16.gmra.mxu0 %v1754
        %v2063 = vpop.f32.mrf.mxu0
        %v2064 = vadd.f32 %v2051, %v2063
        %v2065 = vpop.f32.mrf.mxu0
        %2066 = vdwg.mxu0
        %v2067 = vadd.f32 %v2064, %v1491
        %v2068 = vld [vmem:[%s20] sm:$0x1]
        %v2069 = vld [vmem:[%s21] sm:$0x1]
        %2070 = vadd.xlane.f32.xlu0 %v2067
        %v2071 = vpop.xlane.xlu0 %2070
        %v2072 = vmul.f32 %v2071, %v888
        %v2073 = vsub.f32 %v2067, %v2072
        %v2074 = vmul.f32 %v2073, %v2073
        %2075 = vadd.xlane.f32.xlu0 %v2074
        %v2076 = vpop.xlane.xlu0 %2075
        %v2077 = vmul.f32 %v2076, %v888
        %v2078 = vadd.f32 %v2077, 1e-05
        %v2079 = vrsqrt.pop %v2078
        %v2080 = vmul.f32 %v2079, %v2078
        %v2081 = vmul.f32 %v2080, %v2079
        %v2082 = vmul.f32 0.5, %v2081
        %v2083 = vsub.f32 1.5, %v2082
        %v2084 = vmul.f32 %v2079, %v2083
        %vm2085 = vweird.f32 %v2078
        %vm2086 = vweird.f32 %v2079
        %vm2087 = vmor %vm2085, %vm2086
        %v2088 = vsel %vm2087, %v2079, %v2084
        %v2089 = vmul.f32 %v2073, %v2088
        %v2091 = vperm.slane %v2068, 0
        %v2093 = vmul.f32 %v2089, %v2091
        %v2095 = vperm.slane %v2069, 0
        %v2097 = vadd.f32 %v2093, %v2095
        %2098 = vst [vmem:[%s798] sm:$0xff] %v2097
        %s2099 = sand.u32 %s522, 1
        %s2100 = scalar_lea.sflag [#allocation5], %s2099
        %s2101 = sand.u32 %s522, 1
        %s2102 = smul.addr %s2101, 8
        %s2103 = scalar_lea.vmem [#allocation14], %s2102
        // Predicated region
        $region133: #{tpu_custom_call.1} parent=107 // pred_check
          %p2104 = pneg %p532
        $region134: #{tpu_custom_call.1} parent=107 // pred_check_branch
          %2106 = sbr.rel (%p2104) target = $region136
        $region135: #{tpu_custom_call.1} parent=107 // pred_region
          %2108 = vsyncadd %s2100, 0
          %s2109 = smul.addr %s42, 8
          %s2110 = scalar_lea.hbm %s22, %s2109
          %s2112 = sshll.u32 %s2103, 4
          %s2113 = int_to_ptr.vmem [resolvable:$true] %s2112
          %s2114 = sshll.u32 %s2110, 4
          %s2115 = int_to_ptr.hbm [resolvable:$true] %s2114
          %2117 = dma.vmem_to_hbm [thread:$0]  %s2113, 128, %s2115, %s2100
        $region136: #{tpu_custom_call.1} parent=107 // pred_fallthru
          _
      $region108: #{tpu_custom_call.1} parent=5 // pred_fallthru
        _
      %p2118 = scmp.le.s32.totalorder 2, %s37
      // Predicated region
      $region137: #{tpu_custom_call.1} parent=5 // pred_check
        %p2119 = pneg %p2118
      $region138: #{tpu_custom_call.1} parent=5 // pred_check_branch
        %2121 = sbr.rel (%p2119) target = $region140
      $region139: #{tpu_custom_call.1} parent=5 // pred_region
        %s2122 = ssub.s32 %s37, 2
        // Predicated region
        $region141: #{tpu_custom_call.1} parent=139 // pred_check
          %p2123 = pneg %p538
        $region142: #{tpu_custom_call.1} parent=139 // pred_check_branch
          %2125 = sbr.rel (%p2123) target = $region144
        $region143: #{tpu_custom_call.1} parent=139 // pred_region
          %s2126 = sand.u32 %s523, 1
          %s2127 = scalar_lea.sflag [#allocation5], %s2126
          %s2128 = sand.u32 %s523, 1
          %s2129 = smul.addr %s2128, 8
          %s2130 = scalar_lea.vmem [#allocation14], %s2129
          %2132 = dma.done %s2127, 128
        $region144: #{tpu_custom_call.1} parent=139 // pred_fallthru
          _
      $region140: #{tpu_custom_call.1} parent=5 // pred_fallthru
        _
    $region6: #{tpu_custom_call.1} parent=1 // loop_footer
      %s41 = sadd.s32 1, %s37
    $region7: #{tpu_custom_call.1} parent=1 // loop_footer_branch
      %36 = sbr.rel target = $region3
    $region8: #{tpu_custom_call.1} parent=1 // loop_exit
      _
    %2133 = vsyncpa [#allocation4], 1
    %s2134 = scalar_lea.sflag [#allocation4], 1
    %2135 = vsyncpa %s2134, 1
    %2136 = vsyncpa [#allocation7], 1
    %2137 = vsyncpa [#allocation10], 1
    %2138 = vsyncpa [#allocation13], 1
    %2139 = vsyncpa [#allocation5], 1
    %s2140 = scalar_lea.sflag [#allocation5], 1
    %2141 = vsyncpa %s2140, 1

</llo_original>
